<compile_context>
chip_gen: v7x
topology: tpu7x:2x2x1
jax: 0.10.0
libtpu: 0.0.40
codegen_flags: <defaults>
</compile_context>

<pallas_src>
import functools

import jax
import jax.numpy as jnp
from jax.experimental import pallas as pl
from jax.experimental.pallas import tpu as pltpu

EPS = 1e-5  # nn.BatchNorm1d default eps


# ----------------------------------------------------------------------------
# Fused kernel
#   per grid step : backbone stand-in + fc1 on one batch tile, stats accumulate
#   last grid step: bn1 + relu + fc2 + bn2 on the full batch (needs full-batch stats)
# ----------------------------------------------------------------------------
def fused_simclr_kernel(x_ref, weff_ref, bstem_ref,
                        w1_ref, b1_ref, g1_ref, be1_ref,
                        w2_ref, g2_ref, be2_ref,
                        o_ref,
                        h_ref, sum_ref, sumsq_ref, *, tile_b):
    i = pl.program_id(0)
    f32 = jnp.float32
    bf16 = jnp.bfloat16

    # Zero the BN1 statistic accumulators on the first step.
    @pl.when(i == 0)
    def _():
        sum_ref[...] = jnp.zeros_like(sum_ref)
        sumsq_ref[...] = jnp.zeros_like(sumsq_ref)

    # ---- streamed per-tile stage: backbone stand-in (GAP folded) + fc1 ------
    feat = jnp.dot(x_ref[...], weff_ref[...],
                   preferred_element_type=f32)                    # (tile_b, ch) f32
    feat = jnp.maximum(feat + bstem_ref[...], 0.0)                # stem bias + ReLU

    h = jnp.dot(feat.astype(bf16), w1_ref[...],
                preferred_element_type=f32) + b1_ref[...]         # fc1 (with bias), f32

    row0 = pl.multiple_of(i * tile_b, tile_b)
    h_ref[pl.ds(row0, tile_b), :] = h.astype(bf16)                # full-batch bf16 scratch
    sum_ref[...] += jnp.sum(h, axis=0, keepdims=True)             # f32 partial sums
    sumsq_ref[...] += jnp.sum(h * h, axis=0, keepdims=True)

    # ---- tail (last step only): bn1 -> relu -> fc2 -> bn2 on full batch -----
    @pl.when(i == pl.num_programs(0) - 1)
    def _():
        batch = h_ref.shape[0]
        inv_b = 1.0 / batch

        # bn1: single-pass stats, hoisted scale/shift (one FMA per element)
        mu1 = sum_ref[...] * inv_b
        var1 = sumsq_ref[...] * inv_b - mu1 * mu1
        s1 = g1_ref[...] * jax.lax.rsqrt(var1 + EPS)
        t1 = be1_ref[...] - mu1 * s1
        hn = jnp.maximum(h_ref[...].astype(f32) * s1 + t1, 0.0)   # bn1 + ReLU

        # fc2 (bias=False)
        z = jnp.dot(hn.astype(bf16), w2_ref[...],
                    preferred_element_type=f32)                   # (B, out) f32

        # bn2: single-pass stats
        mu2 = jnp.mean(z, axis=0, keepdims=True)
        var2 = jnp.mean(z * z, axis=0, keepdims=True) - mu2 * mu2
        s2 = g2_ref[...] * jax.lax.rsqrt(var2 + EPS)
        t2 = be2_ref[...] - mu2 * s2
        o_ref[...] = z * s2 + t2


# ----------------------------------------------------------------------------
# Wrapper
# ----------------------------------------------------------------------------
def simclr_forward(x, stem, proj, *, tile_b=128):
    # tile_b: 128 fills the v5e MXU (4x128^2); use 256 on v6e/v7x for large batches.
    B, C, H, W = x.shape
    in_planes = stem["w"].shape[1]
    proj_out = proj["w2"].shape[1]
    chw = C * H * W
    assert B % tile_b == 0, (B, tile_b)

    # Fold the global-average-pool into the stem weight (exact in real arithmetic):
    #   mean_hw(x) @ W == x_flat @ (P @ W),  P[c*HW+p, c] = 1/(H*W)   (NCHW flatten order)
    w_eff = (jnp.repeat(stem["w"], H * W, axis=0) / (H * W)).astype(jnp.bfloat16)

    # bf16 MXU operands; f32 accumulation + f32 elementwise inside the kernel.
    x2 = x.reshape(B, chw).astype(jnp.bfloat16)
    w1 = proj["w1"].astype(jnp.bfloat16)
    w2 = proj["w2"].astype(jnp.bfloat16)

    full = lambda i: (0, 0)  # resident block (weights / vectors / output)

    cost = pl.CostEstimate(
        flops=2 * B * (chw * in_planes + in_planes * in_planes + in_planes * proj_out),
        transcendentals=in_planes + proj_out,
        bytes_accessed=(x2.size * 2 + w_eff.size * 2 + w1.size * 2 + w2.size * 2
                        + (in_planes * 4 + proj_out * 2) * 4 + B * proj_out * 4),
    )

    kernel = functools.partial(fused_simclr_kernel, tile_b=tile_b)
    return pl.pallas_call(
        kernel,
        out_shape=jax.ShapeDtypeStruct((B, proj_out), jnp.float32),
        grid_spec=pltpu.PrefetchScalarGridSpec(
            num_scalar_prefetch=0,
            grid=(B // tile_b,),
            in_specs=[
                pl.BlockSpec((tile_b, chw), lambda i: (i, 0)),    # image tile (pipelined)
                pl.BlockSpec((chw, in_planes), full),             # w_eff (GAP folded)
                pl.BlockSpec((1, in_planes), full),               # stem bias
                pl.BlockSpec((in_planes, in_planes), full),       # fc1 weight
                pl.BlockSpec((1, in_planes), full),               # fc1 bias
                pl.BlockSpec((1, in_planes), full),               # bn1 gamma
                pl.BlockSpec((1, in_planes), full),               # bn1 beta
                pl.BlockSpec((in_planes, proj_out), full),        # fc2 weight
                pl.BlockSpec((1, proj_out), full),                # bn2 gamma
                pl.BlockSpec((1, proj_out), full),                # bn2 beta
            ],
            out_specs=pl.BlockSpec((B, proj_out), full),          # written on last step
            scratch_shapes=[
                pltpu.VMEM((B, in_planes), jnp.bfloat16),         # full-batch h (bf16)
                pltpu.VMEM((1, in_planes), jnp.float32),          # sum(h)   accumulator
                pltpu.VMEM((1, in_planes), jnp.float32),          # sum(h^2) accumulator
            ],
        ),
        compiler_params=pltpu.CompilerParams(
            # Output / h-scratch / stat accumulators are resident across the batch-tile
            # axis (BatchNorm needs full-batch statistics) -> axis must be "arbitrary".
            dimension_semantics=("arbitrary",),
        ),
        cost_estimate=cost,
    )(x2, w_eff, stem["b"], w1, proj["b1"], proj["g1"], proj["be1"],
      w2, proj["g2"], proj["be2"])


# ----------------------------------------------------------------------------
# Parameter construction (deterministic, in-script)
# ----------------------------------------------------------------------------
def init_params(key, in_ch=3, in_planes=512, proj_out=128):
    k0, k1, k2, k3, k4 = jax.random.split(key, 5)
    stem = {
        "w": 0.1 * jax.random.normal(k0, (in_ch, in_planes), jnp.float32),
        "b": 0.01 * jax.random.normal(k1, (1, in_planes), jnp.float32),
    }
    proj = {
        "w1": (1.0 / jnp.sqrt(in_planes)) *
              jax.random.normal(k2, (in_planes, in_planes), jnp.float32),
        "b1": 0.01 * jax.random.normal(k3, (1, in_planes), jnp.float32),
        "g1": jnp.ones((1, in_planes), jnp.float32),
        "be1": jnp.zeros((1, in_planes), jnp.float32),
        "w2": (1.0 / jnp.sqrt(in_planes)) *
              jax.random.normal(k4, (in_planes, proj_out), jnp.float32),
        "g2": jnp.ones((1, proj_out), jnp.float32),
        "be2": jnp.zeros((1, proj_out), jnp.float32),
    }
    return stem, proj


# ----------------------------------------------------------------------------
# Pure-JAX reference (mirrors the kernel's MXU / scratch precision for a tight check)
# ----------------------------------------------------------------------------
def reference_forward(x, stem, proj):
    """Same math as SimCLR.forward with the GAP+linear backbone stand-in.  Mirrors the
    kernel's precision choices: bf16 matmul operands with f32 accumulation, f32 BN stats
    from the f32 h (single-pass E[x^2]-mu^2), and the bf16 rounding of h introduced by
    the bf16 VMEM scratch before normalization."""
    B, C, H, W = x.shape
    HW = H * W
    w_eff = (jnp.repeat(stem["w"], HW, axis=0) / HW).astype(jnp.bfloat16)
    x2 = x.reshape(B, C * HW).astype(jnp.bfloat16)
    feat = jnp.maximum(
        jnp.dot(x2, w_eff, preferred_element_type=jnp.float32) + stem["b"], 0.0)

    h = jnp.dot(feat.astype(jnp.bfloat16), proj["w1"].astype(jnp.bfloat16),
                preferred_element_type=jnp.float32) + proj["b1"]
    mu1 = jnp.mean(h, axis=0, keepdims=True)
    var1 = jnp.mean(h * h, axis=0, keepdims=True) - mu1 * mu1
    s1 = proj["g1"] * jax.lax.rsqrt(var1 + EPS)
    t1 = proj["be1"] - mu1 * s1
    hq = h.astype(jnp.bfloat16).astype(jnp.float32)   # mirrors the bf16 h scratch
    hn = jnp.maximum(hq * s1 + t1, 0.0)

    z = jnp.dot(hn.astype(jnp.bfloat16), proj["w2"].astype(jnp.bfloat16),
                preferred_element_type=jnp.float32)
    mu2 = jnp.mean(z, axis=0, keepdims=True)
    var2 = jnp.mean(z * z, axis=0, keepdims=True) - mu2 * mu2
    s2 = proj["g2"] * jax.lax.rsqrt(var2 + EPS)
    return z * s2 + (proj["be2"] - mu2 * s2)


if __name__ == "__main__":
    key = jax.random.PRNGKey(0)
    kx, kp = jax.random.split(key)

    B, C, H, W = 256, 3, 16, 16        # small synthetic image batch (NCHW)
    IN_PLANES, PROJ_OUT = 512, 128     # resnet18 in_planes, proj_head output_cnt
    TILE_B = 128                       # fills MXU M; grid = 2 steps (exercises streaming)

    x = jax.random.normal(kx, (B, C, H, W), jnp.float32)
    stem, proj = init_params(kp, in_ch=C, in_planes=IN_PLANES, proj_out=PROJ_OUT)

    out = simclr_forward(x, stem, proj, tile_b=TILE_B)
    out = jax.block_until_ready(out)

    ref = reference_forward(x, stem, proj)
    assert out.shape == (B, PROJ_OUT), out.shape
    assert jnp.allclose(out, ref, rtol=2e-2, atol=2e-2), \
        float(jnp.max(jnp.abs(out - ref)))

    print("KERNEL_OK")
</pallas_src>

<mosaic_0001>
module attributes {stable_mosaic.version = 11 : i64} {
  func.func @fused_simclr_kernel(%arg0: i32, %arg1: memref<128x768xbf16, #tpu.memory_space<vmem>>, %arg2: memref<768x512xbf16, #tpu.memory_space<vmem>>, %arg3: memref<1x512xf32, #tpu.memory_space<vmem>>, %arg4: memref<512x512xbf16, #tpu.memory_space<vmem>>, %arg5: memref<1x512xf32, #tpu.memory_space<vmem>>, %arg6: memref<1x512xf32, #tpu.memory_space<vmem>>, %arg7: memref<1x512xf32, #tpu.memory_space<vmem>>, %arg8: memref<512x128xbf16, #tpu.memory_space<vmem>>, %arg9: memref<1x128xf32, #tpu.memory_space<vmem>>, %arg10: memref<1x128xf32, #tpu.memory_space<vmem>>, %arg11: memref<256x128xf32, #tpu.memory_space<vmem>>, %arg12: memref<256x512xbf16, #tpu.memory_space<vmem>>, %arg13: memref<1x512xf32, #tpu.memory_space<vmem>>, %arg14: memref<1x512xf32, #tpu.memory_space<vmem>>) attributes {dimension_semantics = [#tpu.dimension_semantics<arbitrary>], iteration_bounds = array<i64: 2>, scalar_prefetch = 0 : i64, scratch_operands = 3 : i64, tpu.core_type = #tpu.core_type<tc>, window_params = [{transform_indices = @transform_0, window_bounds = array<i64: 128, 768>}, {pipeline_mode = #tpu.pipeline_mode<synchronous>, transform_indices = @transform_1, window_bounds = array<i64: 768, 512>}, {pipeline_mode = #tpu.pipeline_mode<synchronous>, transform_indices = @transform_2, window_bounds = array<i64: 1, 512>}, {pipeline_mode = #tpu.pipeline_mode<synchronous>, transform_indices = @transform_3, window_bounds = array<i64: 512, 512>}, {pipeline_mode = #tpu.pipeline_mode<synchronous>, transform_indices = @transform_4, window_bounds = array<i64: 1, 512>}, {pipeline_mode = #tpu.pipeline_mode<synchronous>, transform_indices = @transform_5, window_bounds = array<i64: 1, 512>}, {pipeline_mode = #tpu.pipeline_mode<synchronous>, transform_indices = @transform_6, window_bounds = array<i64: 1, 512>}, {pipeline_mode = #tpu.pipeline_mode<synchronous>, transform_indices = @transform_7, window_bounds = array<i64: 512, 128>}, {pipeline_mode = #tpu.pipeline_mode<synchronous>, transform_indices = @transform_8, window_bounds = array<i64: 1, 128>}, {pipeline_mode = #tpu.pipeline_mode<synchronous>, transform_indices = @transform_9, window_bounds = array<i64: 1, 128>}, {pipeline_mode = #tpu.pipeline_mode<synchronous>, transform_indices = @transform_10, window_bounds = array<i64: 256, 128>}]} {
    %c0_i32 = arith.constant 0 : i32
    %0 = arith.cmpi eq, %arg0, %c0_i32 : i32
    %1 = arith.extui %0 : i1 to i32
    %c0_i32_0 = arith.constant 0 : i32
    %2 = arith.cmpi ne, %1, %c0_i32_0 : i32
    scf.if %2 {
      %cst_24 = arith.constant 0.000000e+00 : f32
      %36 = vector.broadcast %cst_24 : f32 to vector<1x512xf32>
      %c0_25 = arith.constant 0 : index
      %c0_26 = arith.constant 0 : index
      %37 = vector.load %arg13[%c0_25, %c0_26] : memref<1x512xf32, #tpu.memory_space<vmem>>, vector<1x512xf32>
      tpu.vector_store %arg13[%c0_25, %c0_26], %36 {strides = array<i32>} : memref<1x512xf32, #tpu.memory_space<vmem>>, vector<1x512xf32>,
      %cst_27 = arith.constant 0.000000e+00 : f32
      %38 = vector.broadcast %cst_27 : f32 to vector<1x512xf32>
      %c0_28 = arith.constant 0 : index
      %c0_29 = arith.constant 0 : index
      %39 = vector.load %arg14[%c0_28, %c0_29] : memref<1x512xf32, #tpu.memory_space<vmem>>, vector<1x512xf32>
      tpu.vector_store %arg14[%c0_28, %c0_29], %38 {strides = array<i32>} : memref<1x512xf32, #tpu.memory_space<vmem>>, vector<1x512xf32>,
    } else {
    }
    %c0 = arith.constant 0 : index
    %c0_1 = arith.constant 0 : index
    %3 = vector.load %arg1[%c0, %c0_1] : memref<128x768xbf16, #tpu.memory_space<vmem>>, vector<128x768xbf16>
    %c0_2 = arith.constant 0 : index
    %c0_3 = arith.constant 0 : index
    %4 = vector.load %arg2[%c0_2, %c0_3] : memref<768x512xbf16, #tpu.memory_space<vmem>>, vector<768x512xbf16>
    %cst = arith.constant dense<0.000000e+00> : vector<128x512xf32>
    %5 = tpu.matmul %3, %4, %cst {dimension_numbers = #tpu.dot_dimension_numbers<[1], [0], [0], [1], [0, 0, 1, 1], [], []>} : vector<128x768xbf16>, vector<768x512xbf16>, vector<128x512xf32> -> vector<128x512xf32>
    %c0_4 = arith.constant 0 : index
    %c0_5 = arith.constant 0 : index
    %6 = vector.load %arg3[%c0_4, %c0_5] : memref<1x512xf32, #tpu.memory_space<vmem>>, vector<1x512xf32>
    %7 = vector.broadcast %6 : vector<1x512xf32> to vector<128x512xf32>
    %8 = arith.addf %5, %7 : vector<128x512xf32>
    %cst_6 = arith.constant 0.000000e+00 : f32
    %9 = vector.broadcast %cst_6 : f32 to vector<128x512xf32>
    %10 = arith.maximumf %8, %9 : vector<128x512xf32>
    %11 = arith.truncf %10 : vector<128x512xf32> to vector<128x512xbf16>
    %c0_7 = arith.constant 0 : index
    %c0_8 = arith.constant 0 : index
    %12 = vector.load %arg4[%c0_7, %c0_8] : memref<512x512xbf16, #tpu.memory_space<vmem>>, vector<512x512xbf16>
    %cst_9 = arith.constant dense<0.000000e+00> : vector<128x512xf32>
    %13 = tpu.matmul %11, %12, %cst_9 {dimension_numbers = #tpu.dot_dimension_numbers<[1], [0], [0], [1], [0, 0, 1, 1], [], []>} : vector<128x512xbf16>, vector<512x512xbf16>, vector<128x512xf32> -> vector<128x512xf32>
    %c0_10 = arith.constant 0 : index
    %c0_11 = arith.constant 0 : index
    %14 = vector.load %arg5[%c0_10, %c0_11] : memref<1x512xf32, #tpu.memory_space<vmem>>, vector<1x512xf32>
    %15 = vector.broadcast %14 : vector<1x512xf32> to vector<128x512xf32>
    %16 = arith.addf %13, %15 : vector<128x512xf32>
    %c128_i32 = arith.constant 128 : i32
    %17 = arith.muli %arg0, %c128_i32 : i32
    %18 = tpu.assume_multiple %17, 128 : i32
    %19 = arith.truncf %16 : vector<128x512xf32> to vector<128x512xbf16>
    %20 = arith.index_cast %18 : i32 to index
    %c0_12 = arith.constant 0 : index
    %21 = vector.load %arg12[%20, %c0_12] : memref<256x512xbf16, #tpu.memory_space<vmem>>, vector<128x512xbf16>
    tpu.vector_store %arg12[%20, %c0_12], %19 {strides = array<i32>} : memref<256x512xbf16, #tpu.memory_space<vmem>>, vector<128x512xbf16>,
    %c0_13 = arith.constant 0 : index
    %c0_14 = arith.constant 0 : index
    %22 = vector.load %arg13[%c0_13, %c0_14] : memref<1x512xf32, #tpu.memory_space<vmem>>, vector<1x512xf32>
    %cst_15 = arith.constant dense<0.000000e+00> : vector<512xf32>
    %23 = vector.multi_reduction <add>, %16, %cst_15 [0] : vector<128x512xf32> to vector<512xf32>
    %24 = vector.shape_cast %23 : vector<512xf32> to vector<1x512xf32>
    %25 = arith.addf %22, %24 : vector<1x512xf32>
    %c0_16 = arith.constant 0 : index
    %c0_17 = arith.constant 0 : index
    %26 = vector.load %arg13[%c0_16, %c0_17] : memref<1x512xf32, #tpu.memory_space<vmem>>, vector<1x512xf32>
    tpu.vector_store %arg13[%c0_16, %c0_17], %25 {strides = array<i32>} : memref<1x512xf32, #tpu.memory_space<vmem>>, vector<1x512xf32>,
    %c0_18 = arith.constant 0 : index
    %c0_19 = arith.constant 0 : index
    %27 = vector.load %arg14[%c0_18, %c0_19] : memref<1x512xf32, #tpu.memory_space<vmem>>, vector<1x512xf32>
    %28 = arith.mulf %16, %16 : vector<128x512xf32>
    %cst_20 = arith.constant dense<0.000000e+00> : vector<512xf32>
    %29 = vector.multi_reduction <add>, %28, %cst_20 [0] : vector<128x512xf32> to vector<512xf32>
    %30 = vector.shape_cast %29 : vector<512xf32> to vector<1x512xf32>
    %31 = arith.addf %27, %30 : vector<1x512xf32>
    %c0_21 = arith.constant 0 : index
    %c0_22 = arith.constant 0 : index
    %32 = vector.load %arg14[%c0_21, %c0_22] : memref<1x512xf32, #tpu.memory_space<vmem>>, vector<1x512xf32>
    tpu.vector_store %arg14[%c0_21, %c0_22], %31 {strides = array<i32>} : memref<1x512xf32, #tpu.memory_space<vmem>>, vector<1x512xf32>,
    %c1_i32 = arith.constant 1 : i32
    %33 = arith.cmpi eq, %arg0, %c1_i32 : i32
    %34 = arith.extui %33 : i1 to i32
    %c0_i32_23 = arith.constant 0 : i32
    %35 = arith.cmpi ne, %34, %c0_i32_23 : i32
    scf.if %35 {
      %c0_24 = arith.constant 0 : index
      %c0_25 = arith.constant 0 : index
      %36 = vector.load %arg13[%c0_24, %c0_25] : memref<1x512xf32, #tpu.memory_space<vmem>>, vector<1x512xf32>
      %cst_26 = arith.constant 3.906250e-03 : f32
      %37 = vector.broadcast %cst_26 : f32 to vector<1x512xf32>
      %38 = arith.mulf %36, %37 : vector<1x512xf32>
      %c0_27 = arith.constant 0 : index
      %c0_28 = arith.constant 0 : index
      %39 = vector.load %arg14[%c0_27, %c0_28] : memref<1x512xf32, #tpu.memory_space<vmem>>, vector<1x512xf32>
      %cst_29 = arith.constant 3.906250e-03 : f32
      %40 = vector.broadcast %cst_29 : f32 to vector<1x512xf32>
      %41 = arith.mulf %39, %40 : vector<1x512xf32>
      %42 = arith.mulf %38, %38 : vector<1x512xf32>
      %43 = arith.subf %41, %42 : vector<1x512xf32>
      %c0_30 = arith.constant 0 : index
      %c0_31 = arith.constant 0 : index
      %44 = vector.load %arg6[%c0_30, %c0_31] : memref<1x512xf32, #tpu.memory_space<vmem>>, vector<1x512xf32>
      %cst_32 = arith.constant 9.99999974E-6 : f32
      %45 = vector.broadcast %cst_32 : f32 to vector<1x512xf32>
      %46 = arith.addf %43, %45 : vector<1x512xf32>
      %47 = math.rsqrt %46 : vector<1x512xf32>
      %48 = arith.mulf %44, %47 : vector<1x512xf32>
      %c0_33 = arith.constant 0 : index
      %c0_34 = arith.constant 0 : index
      %49 = vector.load %arg7[%c0_33, %c0_34] : memref<1x512xf32, #tpu.memory_space<vmem>>, vector<1x512xf32>
      %50 = arith.mulf %38, %48 : vector<1x512xf32>
      %51 = arith.subf %49, %50 : vector<1x512xf32>
      %c0_35 = arith.constant 0 : index
      %c0_36 = arith.constant 0 : index
      %52 = vector.load %arg12[%c0_35, %c0_36] : memref<256x512xbf16, #tpu.memory_space<vmem>>, vector<256x512xbf16>
      %53 = arith.extf %52 : vector<256x512xbf16> to vector<256x512xf32>
      %54 = vector.broadcast %48 : vector<1x512xf32> to vector<256x512xf32>
      %55 = arith.mulf %53, %54 : vector<256x512xf32>
      %56 = vector.broadcast %51 : vector<1x512xf32> to vector<256x512xf32>
      %57 = arith.addf %55, %56 : vector<256x512xf32>
      %cst_37 = arith.constant 0.000000e+00 : f32
      %58 = vector.broadcast %cst_37 : f32 to vector<256x512xf32>
      %59 = arith.maximumf %57, %58 : vector<256x512xf32>
      %60 = arith.truncf %59 : vector<256x512xf32> to vector<256x512xbf16>
      %c0_38 = arith.constant 0 : index
      %c0_39 = arith.constant 0 : index
      %61 = vector.load %arg8[%c0_38, %c0_39] : memref<512x128xbf16, #tpu.memory_space<vmem>>, vector<512x128xbf16>
      %cst_40 = arith.constant dense<0.000000e+00> : vector<256x128xf32>
      %62 = tpu.matmul %60, %61, %cst_40 {dimension_numbers = #tpu.dot_dimension_numbers<[1], [0], [0], [1], [0, 0, 1, 1], [], []>} : vector<256x512xbf16>, vector<512x128xbf16>, vector<256x128xf32> -> vector<256x128xf32>
      %cst_41 = arith.constant dense<0.000000e+00> : vector<128xf32>
      %63 = vector.multi_reduction <add>, %62, %cst_41 [0] : vector<256x128xf32> to vector<128xf32>
      %64 = vector.shape_cast %63 : vector<128xf32> to vector<1x128xf32>
      %cst_42 = arith.constant 2.560000e+02 : f32
      %65 = vector.broadcast %cst_42 : f32 to vector<1x128xf32>
      %66 = arith.divf %64, %65 : vector<1x128xf32>
      %67 = arith.mulf %62, %62 : vector<256x128xf32>
      %cst_43 = arith.constant dense<0.000000e+00> : vector<128xf32>
      %68 = vector.multi_reduction <add>, %67, %cst_43 [0] : vector<256x128xf32> to vector<128xf32>
      %69 = vector.shape_cast %68 : vector<128xf32> to vector<1x128xf32>
      %cst_44 = arith.constant 2.560000e+02 : f32
      %70 = vector.broadcast %cst_44 : f32 to vector<1x128xf32>
      %71 = arith.divf %69, %70 : vector<1x128xf32>
      %72 = arith.mulf %66, %66 : vector<1x128xf32>
      %73 = arith.subf %71, %72 : vector<1x128xf32>
      %c0_45 = arith.constant 0 : index
      %c0_46 = arith.constant 0 : index
      %74 = vector.load %arg9[%c0_45, %c0_46] : memref<1x128xf32, #tpu.memory_space<vmem>>, vector<1x128xf32>
      %cst_47 = arith.constant 9.99999974E-6 : f32
      %75 = vector.broadcast %cst_47 : f32 to vector<1x128xf32>
      %76 = arith.addf %73, %75 : vector<1x128xf32>
      %77 = math.rsqrt %76 : vector<1x128xf32>
      %78 = arith.mulf %74, %77 : vector<1x128xf32>
      %c0_48 = arith.constant 0 : index
      %c0_49 = arith.constant 0 : index
      %79 = vector.load %arg10[%c0_48, %c0_49] : memref<1x128xf32, #tpu.memory_space<vmem>>, vector<1x128xf32>
      %80 = arith.mulf %66, %78 : vector<1x128xf32>
      %81 = arith.subf %79, %80 : vector<1x128xf32>
      %82 = vector.broadcast %78 : vector<1x128xf32> to vector<256x128xf32>
      %83 = arith.mulf %62, %82 : vector<256x128xf32>
      %84 = vector.broadcast %81 : vector<1x128xf32> to vector<256x128xf32>
      %85 = arith.addf %83, %84 : vector<256x128xf32>
      %c0_50 = arith.constant 0 : index
      %c0_51 = arith.constant 0 : index
      %86 = vector.load %arg11[%c0_50, %c0_51] : memref<256x128xf32, #tpu.memory_space<vmem>>, vector<256x128xf32>
      tpu.vector_store %arg11[%c0_50, %c0_51], %85 {strides = array<i32>} : memref<256x128xf32, #tpu.memory_space<vmem>>, vector<256x128xf32>,
    } else {
    }
    return
  }
  func.func @transform_0(%arg0: i32) -> (i32, i32) {
    %c0_i32 = arith.constant 0 : i32
    %c0_i32_0 = arith.constant 0 : i32
    return %arg0, %c0_i32 : i32, i32
  }
  func.func @transform_1(%arg0: i32) -> (i32, i32) {
    %c0_i32 = arith.constant 0 : i32
    %c0_i32_0 = arith.constant 0 : i32
    %c0_i32_1 = arith.constant 0 : i32
    return %c0_i32, %c0_i32_0 : i32, i32
  }
  func.func @transform_2(%arg0: i32) -> (i32, i32) {
    %c0_i32 = arith.constant 0 : i32
    %c0_i32_0 = arith.constant 0 : i32
    %c0_i32_1 = arith.constant 0 : i32
    return %c0_i32, %c0_i32_0 : i32, i32
  }
  func.func @transform_3(%arg0: i32) -> (i32, i32) {
    %c0_i32 = arith.constant 0 : i32
    %c0_i32_0 = arith.constant 0 : i32
    %c0_i32_1 = arith.constant 0 : i32
    return %c0_i32, %c0_i32_0 : i32, i32
  }
  func.func @transform_4(%arg0: i32) -> (i32, i32) {
    %c0_i32 = arith.constant 0 : i32
    %c0_i32_0 = arith.constant 0 : i32
    %c0_i32_1 = arith.constant 0 : i32
    return %c0_i32, %c0_i32_0 : i32, i32
  }
  func.func @transform_5(%arg0: i32) -> (i32, i32) {
    %c0_i32 = arith.constant 0 : i32
    %c0_i32_0 = arith.constant 0 : i32
    %c0_i32_1 = arith.constant 0 : i32
    return %c0_i32, %c0_i32_0 : i32, i32
  }
  func.func @transform_6(%arg0: i32) -> (i32, i32) {
    %c0_i32 = arith.constant 0 : i32
    %c0_i32_0 = arith.constant 0 : i32
    %c0_i32_1 = arith.constant 0 : i32
    return %c0_i32, %c0_i32_0 : i32, i32
  }
  func.func @transform_7(%arg0: i32) -> (i32, i32) {
    %c0_i32 = arith.constant 0 : i32
    %c0_i32_0 = arith.constant 0 : i32
    %c0_i32_1 = arith.constant 0 : i32
    return %c0_i32, %c0_i32_0 : i32, i32
  }
  func.func @transform_8(%arg0: i32) -> (i32, i32) {
    %c0_i32 = arith.constant 0 : i32
    %c0_i32_0 = arith.constant 0 : i32
    %c0_i32_1 = arith.constant 0 : i32
    return %c0_i32, %c0_i32_0 : i32, i32
  }
  func.func @transform_9(%arg0: i32) -> (i32, i32) {
    %c0_i32 = arith.constant 0 : i32
    %c0_i32_0 = arith.constant 0 : i32
    %c0_i32_1 = arith.constant 0 : i32
    return %c0_i32, %c0_i32_0 : i32, i32
  }
  func.func @transform_10(%arg0: i32) -> (i32, i32) {
    %c0_i32 = arith.constant 0 : i32
    %c0_i32_0 = arith.constant 0 : i32
    %c0_i32_1 = arith.constant 0 : i32
    return %c0_i32, %c0_i32_0 : i32, i32
  }
}

</mosaic_0001>

<llo_original>
// kernel: tpu_custom_call.1
$region0: #{tpu_custom_call.1}
  #allocation0 [shape = 'u32[]', space=smem, size = 0x4, offset = 0x4, fixed_abs, tag = 'smem constant byte address 0x4 - core index']
  #allocation1 [shape = 'u32[144,128]{1,0:T(1,128)}', space=vmem, size = 0x12000, scoped, tag = 'internal scratch']
  #allocation2 [shape = 'bf16[256,512]{1,0:T(16,128)(2,1)}', space=vmem, size = 0x40000, scoped, tag = 'scratch operand']
  #allocation3 [shape = 'f32[1,512]{1,0:T(1,128)}', space=vmem, size = 0x800, scoped, tag = 'scratch operand']
  #allocation4 [shape = 'f32[1,512]{1,0:T(1,128)}', space=vmem, size = 0x800, scoped, tag = 'scratch operand']
  %s0 = inlined_call_operand.hbm [shape: bf16[256,768], index: 0, kind: input, shape index: {}]
  %s1 = inlined_call_operand.hbm [shape: bf16[768,512], index: 1, kind: input, shape index: {}]
  %s2 = inlined_call_operand.vmem [shape: f32[1,512], index: 2, kind: input, shape index: {}]
  %s3 = inlined_call_operand.hbm [shape: bf16[512,512], index: 3, kind: input, shape index: {}]
  %s4 = inlined_call_operand.vmem [shape: f32[1,512], index: 4, kind: input, shape index: {}]
  %s5 = inlined_call_operand.vmem [shape: f32[1,512], index: 5, kind: input, shape index: {}]
  %s6 = inlined_call_operand.vmem [shape: f32[1,512], index: 6, kind: input, shape index: {}]
  %s7 = inlined_call_operand.hbm [shape: bf16[512,128], index: 7, kind: input, shape index: {}]
  %s8 = inlined_call_operand.vmem [shape: f32[1,128], index: 8, kind: input, shape index: {}]
  %s9 = inlined_call_operand.vmem [shape: f32[1,128], index: 9, kind: input, shape index: {}]
  %s10 = inlined_call_operand.hbm [shape: f32[256,128], index: 10, kind: output, shape index: {}]
  %s11 = sld [smem:[#allocation0]]
  $region97: #{tpu_custom_call.1} parent=0
    _
  %s13 = ssub.s32 1, %s11
  %s14 = scalar_select 0, %s13, %s11
  $region1: #{tpu_custom_call.1} parent=0
    #allocation5 [shape = 'u8[393216]{0}', space=vmem, size = 0x60000, scoped, tag = 'input window, operand 0']
    #allocation6 [shape = 's32[2]{0}', space=sflag, size = 0x8, scoped, tag = 'scoped memory for tpu_custom_call.1']
    #allocation7 [shape = 's32[2]{0}', space=sflag, size = 0x8, scoped, tag = 'scoped memory for tpu_custom_call.1']
    #allocation8 [shape = 'u8[786432]{0}', space=vmem, size = 0xc0000, scoped, tag = 'input window, operand 1, single buffered']
    #allocation9 [shape = 's32[1]{0}', space=sflag, size = 0x4, scoped, tag = 'scoped memory for tpu_custom_call.1']
    #allocation10 [shape = 'u8[524288]{0}', space=vmem, size = 0x80000, scoped, tag = 'input window, operand 3, single buffered']
    #allocation11 [shape = 'u8[131072]{0}', space=vmem, size = 0x20000, scoped, tag = 'input window, operand 7, single buffered']
    #allocation12 [shape = 's32[1]{0}', space=sflag, size = 0x4, scoped, tag = 'scoped memory for tpu_custom_call.1']
    #allocation13 [shape = 'u8[131072]{0}', space=vmem, size = 0x20000, scoped, tag = 'output window, operand 0, single buffered']
    %15 = vsyncpa [#allocation6], 0
    %s16 = scalar_lea.sflag [#allocation6], 1
    %17 = vsyncpa %s16, 0
    %18 = vsyncpa [#allocation9], 0
    %19 = vsyncpa [#allocation12], 0
    %20 = vsyncpa [#allocation7], 0
    loop: start=0, step=1, limit=4
    $region2: #{tpu_custom_call.1} parent=1 // loop_pre_header
      _
    $region3: #{tpu_custom_call.1} parent=1 // loop_header
      %s22 = sphi 0, %s26
      %p23 = scmp.ge.s32.totalorder %s22, 4
      %s32 = sphi 0, %s34
      %s35 = sphi 0, %s32
      %s36 = sphi 0, %s35
      %s52 = sphi 0, %s36
      %s56 = sphi 0, %s56
      %s58 = sphi 0, %s56
      %s59 = sphi 0, %s58
      %s73 = sphi 0, %s59
      %s77 = sphi 0, %s77
      %s79 = sphi 0, %s77
      %s80 = sphi 0, %s79
      %s94 = sphi 0, %s80
      %s98 = sphi 0, %s98
      %s100 = sphi 0, %s98
      %s101 = sphi 0, %s100
      %s115 = sphi 0, %s101
      %s119 = sphi 0, %s119
      %s121 = sphi 0, %s119
      %s122 = sphi 0, %s121
      %s136 = sphi 0, %s122
      %s140 = sphi 0, %s140
      %s142 = sphi 0, %s140
      %s143 = sphi 0, %s142
      %s157 = sphi 0, %s143
      %s161 = sphi 0, %s161
      %s163 = sphi 0, %s161
      %s164 = sphi 0, %s163
      %s178 = sphi 0, %s164
      %s182 = sphi 0, %s182
      %s184 = sphi 0, %s182
      %s185 = sphi 0, %s184
      %s199 = sphi 0, %s185
      %s203 = sphi 0, %s203
      %s205 = sphi 0, %s203
      %s206 = sphi 0, %s205
      %s220 = sphi 0, %s206
      %s224 = sphi 0, %s224
      %s226 = sphi 0, %s224
      %s227 = sphi 0, %s226
      %s241 = sphi 0, %s227
      %s245 = sphi 0, %s245
      %s247 = sphi 0, %s245
      %s248 = sphi 0, %s247
      %s262 = sphi 0, %s248
    $region4: #{tpu_custom_call.1} parent=1 // loop_header_branch
      %25 = sbr.rel (%p23) target = $region8
    $region5: #{tpu_custom_call.1} parent=1 // loop_body
      %s27 = ssub.s32 %s22, 1
      %s28 = ssub.s32 %s22, 2
      %s29 = sadd.s32 %s22, 1
      %s30 = ssub.s32 %s22, %s29
      %p31 = scmp.eq.s32.totalorder %s30, 0
      %s33 = sadd.s32 %s32, 1
      %s34 = scalar_select %p31, %s32, %s33
      %p37 = pneg %p31
      %p38 = scmp.eq.s32.totalorder %s22, 1
      %p39 = por %p37, %p38
      %p40 = scmp.ne.s32.totalorder %s32, %s35
      %p41 = scmp.eq.s32.totalorder %s22, 0
      %p42 = por %p40, %p41
      %p43 = scmp.ne.s32.totalorder %s32, %s35
      %p44 = scmp.eq.s32.totalorder %s27, 1
      %p45 = por %p43, %p44
      %p46 = scmp.ne.s32.totalorder %s35, %s36
      %p47 = scmp.eq.s32.totalorder %s27, 0
      %p48 = por %p46, %p47
      %p49 = scmp.ne.s32.totalorder %s35, %s36
      %p50 = scmp.eq.s32.totalorder %s28, 1
      %p51 = por %p49, %p50
      %p53 = scmp.ne.s32.totalorder %s36, %s52
      %p54 = scmp.eq.s32.totalorder %s28, 0
      %p55 = por %p53, %p54
      %s57 = sadd.s32 %s56, 1
      %p60 = scmp.eq.s32.totalorder %s22, 1
      %p61 = scmp.ne.s32.totalorder %s56, %s58
      %p62 = scmp.eq.s32.totalorder %s22, 0
      %p63 = por %p61, %p62
      %p64 = scmp.ne.s32.totalorder %s56, %s58
      %p65 = scmp.eq.s32.totalorder %s27, 1
      %p66 = por %p64, %p65
      %p67 = scmp.ne.s32.totalorder %s58, %s59
      %p68 = scmp.eq.s32.totalorder %s27, 0
      %p69 = por %p67, %p68
      %p70 = scmp.ne.s32.totalorder %s58, %s59
      %p71 = scmp.eq.s32.totalorder %s28, 1
      %p72 = por %p70, %p71
      %p74 = scmp.ne.s32.totalorder %s59, %s73
      %p75 = scmp.eq.s32.totalorder %s28, 0
      %p76 = por %p74, %p75
      %s78 = sadd.s32 %s77, 1
      %p81 = scmp.eq.s32.totalorder %s22, 1
      %p82 = scmp.ne.s32.totalorder %s77, %s79
      %p83 = scmp.eq.s32.totalorder %s22, 0
      %p84 = por %p82, %p83
      %p85 = scmp.ne.s32.totalorder %s77, %s79
      %p86 = scmp.eq.s32.totalorder %s27, 1
      %p87 = por %p85, %p86
      %p88 = scmp.ne.s32.totalorder %s79, %s80
      %p89 = scmp.eq.s32.totalorder %s27, 0
      %p90 = por %p88, %p89
      %p91 = scmp.ne.s32.totalorder %s79, %s80
      %p92 = scmp.eq.s32.totalorder %s28, 1
      %p93 = por %p91, %p92
      %p95 = scmp.ne.s32.totalorder %s80, %s94
      %p96 = scmp.eq.s32.totalorder %s28, 0
      %p97 = por %p95, %p96
      %s99 = sadd.s32 %s98, 1
      %p102 = scmp.eq.s32.totalorder %s22, 1
      %p103 = scmp.ne.s32.totalorder %s98, %s100
      %p104 = scmp.eq.s32.totalorder %s22, 0
      %p105 = por %p103, %p104
      %p106 = scmp.ne.s32.totalorder %s98, %s100
      %p107 = scmp.eq.s32.totalorder %s27, 1
      %p108 = por %p106, %p107
      %p109 = scmp.ne.s32.totalorder %s100, %s101
      %p110 = scmp.eq.s32.totalorder %s27, 0
      %p111 = por %p109, %p110
      %p112 = scmp.ne.s32.totalorder %s100, %s101
      %p113 = scmp.eq.s32.totalorder %s28, 1
      %p114 = por %p112, %p113
      %p116 = scmp.ne.s32.totalorder %s101, %s115
      %p117 = scmp.eq.s32.totalorder %s28, 0
      %p118 = por %p116, %p117
      %s120 = sadd.s32 %s119, 1
      %p123 = scmp.eq.s32.totalorder %s22, 1
      %p124 = scmp.ne.s32.totalorder %s119, %s121
      %p125 = scmp.eq.s32.totalorder %s22, 0
      %p126 = por %p124, %p125
      %p127 = scmp.ne.s32.totalorder %s119, %s121
      %p128 = scmp.eq.s32.totalorder %s27, 1
      %p129 = por %p127, %p128
      %p130 = scmp.ne.s32.totalorder %s121, %s122
      %p131 = scmp.eq.s32.totalorder %s27, 0
      %p132 = por %p130, %p131
      %p133 = scmp.ne.s32.totalorder %s121, %s122
      %p134 = scmp.eq.s32.totalorder %s28, 1
      %p135 = por %p133, %p134
      %p137 = scmp.ne.s32.totalorder %s122, %s136
      %p138 = scmp.eq.s32.totalorder %s28, 0
      %p139 = por %p137, %p138
      %s141 = sadd.s32 %s140, 1
      %p144 = scmp.eq.s32.totalorder %s22, 1
      %p145 = scmp.ne.s32.totalorder %s140, %s142
      %p146 = scmp.eq.s32.totalorder %s22, 0
      %p147 = por %p145, %p146
      %p148 = scmp.ne.s32.totalorder %s140, %s142
      %p149 = scmp.eq.s32.totalorder %s27, 1
      %p150 = por %p148, %p149
      %p151 = scmp.ne.s32.totalorder %s142, %s143
      %p152 = scmp.eq.s32.totalorder %s27, 0
      %p153 = por %p151, %p152
      %p154 = scmp.ne.s32.totalorder %s142, %s143
      %p155 = scmp.eq.s32.totalorder %s28, 1
      %p156 = por %p154, %p155
      %p158 = scmp.ne.s32.totalorder %s143, %s157
      %p159 = scmp.eq.s32.totalorder %s28, 0
      %p160 = por %p158, %p159
      %s162 = sadd.s32 %s161, 1
      %p165 = scmp.eq.s32.totalorder %s22, 1
      %p166 = scmp.ne.s32.totalorder %s161, %s163
      %p167 = scmp.eq.s32.totalorder %s22, 0
      %p168 = por %p166, %p167
      %p169 = scmp.ne.s32.totalorder %s161, %s163
      %p170 = scmp.eq.s32.totalorder %s27, 1
      %p171 = por %p169, %p170
      %p172 = scmp.ne.s32.totalorder %s163, %s164
      %p173 = scmp.eq.s32.totalorder %s27, 0
      %p174 = por %p172, %p173
      %p175 = scmp.ne.s32.totalorder %s163, %s164
      %p176 = scmp.eq.s32.totalorder %s28, 1
      %p177 = por %p175, %p176
      %p179 = scmp.ne.s32.totalorder %s164, %s178
      %p180 = scmp.eq.s32.totalorder %s28, 0
      %p181 = por %p179, %p180
      %s183 = sadd.s32 %s182, 1
      %p186 = scmp.eq.s32.totalorder %s22, 1
      %p187 = scmp.ne.s32.totalorder %s182, %s184
      %p188 = scmp.eq.s32.totalorder %s22, 0
      %p189 = por %p187, %p188
      %p190 = scmp.ne.s32.totalorder %s182, %s184
      %p191 = scmp.eq.s32.totalorder %s27, 1
      %p192 = por %p190, %p191
      %p193 = scmp.ne.s32.totalorder %s184, %s185
      %p194 = scmp.eq.s32.totalorder %s27, 0
      %p195 = por %p193, %p194
      %p196 = scmp.ne.s32.totalorder %s184, %s185
      %p197 = scmp.eq.s32.totalorder %s28, 1
      %p198 = por %p196, %p197
      %p200 = scmp.ne.s32.totalorder %s185, %s199
      %p201 = scmp.eq.s32.totalorder %s28, 0
      %p202 = por %p200, %p201
      %s204 = sadd.s32 %s203, 1
      %p207 = scmp.eq.s32.totalorder %s22, 1
      %p208 = scmp.ne.s32.totalorder %s203, %s205
      %p209 = scmp.eq.s32.totalorder %s22, 0
      %p210 = por %p208, %p209
      %p211 = scmp.ne.s32.totalorder %s203, %s205
      %p212 = scmp.eq.s32.totalorder %s27, 1
      %p213 = por %p211, %p212
      %p214 = scmp.ne.s32.totalorder %s205, %s206
      %p215 = scmp.eq.s32.totalorder %s27, 0
      %p216 = por %p214, %p215
      %p217 = scmp.ne.s32.totalorder %s205, %s206
      %p218 = scmp.eq.s32.totalorder %s28, 1
      %p219 = por %p217, %p218
      %p221 = scmp.ne.s32.totalorder %s206, %s220
      %p222 = scmp.eq.s32.totalorder %s28, 0
      %p223 = por %p221, %p222
      %s225 = sadd.s32 %s224, 1
      %p228 = scmp.eq.s32.totalorder %s22, 1
      %p229 = scmp.ne.s32.totalorder %s224, %s226
      %p230 = scmp.eq.s32.totalorder %s22, 0
      %p231 = por %p229, %p230
      %p232 = scmp.ne.s32.totalorder %s224, %s226
      %p233 = scmp.eq.s32.totalorder %s27, 1
      %p234 = por %p232, %p233
      %p235 = scmp.ne.s32.totalorder %s226, %s227
      %p236 = scmp.eq.s32.totalorder %s27, 0
      %p237 = por %p235, %p236
      %p238 = scmp.ne.s32.totalorder %s226, %s227
      %p239 = scmp.eq.s32.totalorder %s28, 1
      %p240 = por %p238, %p239
      %p242 = scmp.ne.s32.totalorder %s227, %s241
      %p243 = scmp.eq.s32.totalorder %s28, 0
      %p244 = por %p242, %p243
      %s246 = sadd.s32 %s245, 1
      %p249 = scmp.eq.s32.totalorder %s22, 1
      %p250 = scmp.ne.s32.totalorder %s245, %s247
      %p251 = scmp.eq.s32.totalorder %s22, 0
      %p252 = por %p250, %p251
      %p253 = scmp.ne.s32.totalorder %s245, %s247
      %p254 = scmp.eq.s32.totalorder %s27, 1
      %p255 = por %p253, %p254
      %p256 = scmp.ne.s32.totalorder %s247, %s248
      %p257 = scmp.eq.s32.totalorder %s27, 0
      %p258 = por %p256, %p257
      %p259 = scmp.ne.s32.totalorder %s247, %s248
      %p260 = scmp.eq.s32.totalorder %s28, 1
      %p261 = por %p259, %p260
      %p263 = scmp.ne.s32.totalorder %s248, %s262
      %p264 = scmp.eq.s32.totalorder %s28, 0
      %p265 = por %p263, %p264
      %p266 = scmp.le.s32.totalorder 1, %s22
      %p267 = scmp.lt.s32.totalorder %s22, 3
      %p268 = pnand %p266, %p267
      %p269 = pneg %p268
      // Predicated region
      $region9: #{tpu_custom_call.1} parent=5 // pred_check
        _
      $region10: #{tpu_custom_call.1} parent=5 // pred_check_branch
        %271 = sbr.rel (%p268) target = $region12
      $region11: #{tpu_custom_call.1} parent=5 // pred_region
        %s272 = ssub.s32 %s22, 1
        // Predicated region
        $region13: #{tpu_custom_call.1} parent=11 // pred_check
          %p273 = pneg %p69
        $region14: #{tpu_custom_call.1} parent=11 // pred_check_branch
          %275 = sbr.rel (%p273) target = $region16
        $region15: #{tpu_custom_call.1} parent=11 // pred_region
          %s277 = ssub.s32 24576, 24576
          %278 = vsyncadd [#allocation9], %s277
          %s279 = sshll.u32 [#allocation8], 4
          %s280 = int_to_ptr.vmem [resolvable:$true] %s279
          %285 = dma.hbm_to_vmem [thread:$0]  %s1, 24576, %s280, [#allocation9], 256, 256, 16
        $region16: #{tpu_custom_call.1} parent=11 // pred_fallthru
          _
        // Predicated region
        $region17: #{tpu_custom_call.1} parent=11 // pred_check
          %p286 = pneg %p90
        $region18: #{tpu_custom_call.1} parent=11 // pred_check_branch
          %288 = sbr.rel (%p286) target = $region20
        $region19: #{tpu_custom_call.1} parent=11 // pred_region
          _
        $region20: #{tpu_custom_call.1} parent=11 // pred_fallthru
          _
        // Predicated region
        $region21: #{tpu_custom_call.1} parent=11 // pred_check
          %p289 = pneg %p111
        $region22: #{tpu_custom_call.1} parent=11 // pred_check_branch
          %291 = sbr.rel (%p289) target = $region24
        $region23: #{tpu_custom_call.1} parent=11 // pred_region
          %s293 = ssub.s32 16384, 16384
          %294 = vsyncadd [#allocation9], %s293
          %s295 = sshll.u32 [#allocation10], 4
          %s296 = int_to_ptr.vmem [resolvable:$true] %s295
          %301 = dma.hbm_to_vmem [thread:$0]  %s3, 16384, %s296, [#allocation9], 256, 256, 16
        $region24: #{tpu_custom_call.1} parent=11 // pred_fallthru
          _
        // Predicated region
        $region25: #{tpu_custom_call.1} parent=11 // pred_check
          %p302 = pneg %p132
        $region26: #{tpu_custom_call.1} parent=11 // pred_check_branch
          %304 = sbr.rel (%p302) target = $region28
        $region27: #{tpu_custom_call.1} parent=11 // pred_region
          _
        $region28: #{tpu_custom_call.1} parent=11 // pred_fallthru
          _
        // Predicated region
        $region29: #{tpu_custom_call.1} parent=11 // pred_check
          %p305 = pneg %p153
        $region30: #{tpu_custom_call.1} parent=11 // pred_check_branch
          %307 = sbr.rel (%p305) target = $region32
        $region31: #{tpu_custom_call.1} parent=11 // pred_region
          _
        $region32: #{tpu_custom_call.1} parent=11 // pred_fallthru
          _
        // Predicated region
        $region33: #{tpu_custom_call.1} parent=11 // pred_check
          %p308 = pneg %p174
        $region34: #{tpu_custom_call.1} parent=11 // pred_check_branch
          %310 = sbr.rel (%p308) target = $region36
        $region35: #{tpu_custom_call.1} parent=11 // pred_region
          _
        $region36: #{tpu_custom_call.1} parent=11 // pred_fallthru
          _
        // Predicated region
        $region37: #{tpu_custom_call.1} parent=11 // pred_check
          %p311 = pneg %p195
        $region38: #{tpu_custom_call.1} parent=11 // pred_check_branch
          %313 = sbr.rel (%p311) target = $region40
        $region39: #{tpu_custom_call.1} parent=11 // pred_region
          %s315 = ssub.s32 4096, 4096
          %316 = vsyncadd [#allocation12], %s315
          %s317 = sshll.u32 [#allocation11], 4
          %s318 = int_to_ptr.vmem [resolvable:$true] %s317
          %323 = dma.hbm_to_vmem [thread:$0]  %s7, 4096, %s318, [#allocation12], 64, 64, 4
        $region40: #{tpu_custom_call.1} parent=11 // pred_fallthru
          _
        // Predicated region
        $region41: #{tpu_custom_call.1} parent=11 // pred_check
          %p324 = pneg %p216
        $region42: #{tpu_custom_call.1} parent=11 // pred_check_branch
          %326 = sbr.rel (%p324) target = $region44
        $region43: #{tpu_custom_call.1} parent=11 // pred_region
          _
        $region44: #{tpu_custom_call.1} parent=11 // pred_fallthru
          _
        // Predicated region
        $region45: #{tpu_custom_call.1} parent=11 // pred_check
          %p327 = pneg %p237
        $region46: #{tpu_custom_call.1} parent=11 // pred_check_branch
          %329 = sbr.rel (%p327) target = $region48
        $region47: #{tpu_custom_call.1} parent=11 // pred_region
          _
        $region48: #{tpu_custom_call.1} parent=11 // pred_fallthru
          _
      $region12: #{tpu_custom_call.1} parent=5 // pred_fallthru
        _
      %p330 = scmp.lt.s32.totalorder %s22, 2
      // Predicated region
      $region49: #{tpu_custom_call.1} parent=5 // pred_check
        %p331 = pneg %p330
      $region50: #{tpu_custom_call.1} parent=5 // pred_check_branch
        %333 = sbr.rel (%p331) target = $region52
      $region51: #{tpu_custom_call.1} parent=5 // pred_region
        // Predicated region
        $region53: #{tpu_custom_call.1} parent=51 // pred_check
          %p334 = pneg %p42
        $region54: #{tpu_custom_call.1} parent=51 // pred_check_branch
          %336 = sbr.rel (%p334) target = $region56
        $region55: #{tpu_custom_call.1} parent=51 // pred_region
          %s337 = sand.u32 %s32, 1
          %s338 = scalar_lea.sflag [#allocation6], %s337
          %s339 = sand.u32 %s32, 1
          %s340 = smul.addr %s339, 384
          %s341 = scalar_lea.vmem [#allocation5], %s340
          %s342 = smul.u32 16, %s22
          %s344 = ssub.s32 6144, 6144
          %345 = vsyncadd %s338, %s344
          %s346 = smul.addr %s342, 6
          %s347 = smul.addr %s346, 64
          %s348 = scalar_lea.hbm %s0, %s347
          %s349 = sshll.u32 %s341, 4
          %s350 = int_to_ptr.vmem [resolvable:$true] %s349
          %355 = dma.hbm_to_vmem [thread:$0]  %s348, 6144, %s350, %s338, 384, 384, 24
        $region56: #{tpu_custom_call.1} parent=51 // pred_fallthru
          _
      $region52: #{tpu_custom_call.1} parent=5 // pred_fallthru
        _
      %p356 = scmp.le.s32.totalorder 1, %s22
      %p357 = scmp.lt.s32.totalorder %s22, 3
      %p358 = pnand %p356, %p357
      %p359 = pneg %p358
      // Predicated region
      $region57: #{tpu_custom_call.1} parent=5 // pred_check
        _
      $region58: #{tpu_custom_call.1} parent=5 // pred_check_branch
        %361 = sbr.rel (%p358) target = $region60
      $region59: #{tpu_custom_call.1} parent=5 // pred_region
        %s362 = ssub.s32 %s22, 1
        %s363 = sand.u32 %s35, 1
        %s364 = scalar_lea.sflag [#allocation6], %s363
        %s365 = sand.u32 %s35, 1
        %s366 = smul.addr %s365, 384
        %s367 = scalar_lea.vmem [#allocation5], %s366
        // Predicated region
        $region61: #{tpu_custom_call.1} parent=59 // pred_check
          %p368 = pneg %p48
        $region62: #{tpu_custom_call.1} parent=59 // pred_check_branch
          %370 = sbr.rel (%p368) target = $region64
        $region63: #{tpu_custom_call.1} parent=59 // pred_region
          %371 = dma.done %s364, 6144
        $region64: #{tpu_custom_call.1} parent=59 // pred_fallthru
          _
        // Predicated region
        $region65: #{tpu_custom_call.1} parent=59 // pred_check
          %p372 = pneg %p69
        $region66: #{tpu_custom_call.1} parent=59 // pred_check_branch
          %374 = sbr.rel (%p372) target = $region68
        $region67: #{tpu_custom_call.1} parent=59 // pred_region
          %375 = dma.done [#allocation9], 24576
        $region68: #{tpu_custom_call.1} parent=59 // pred_fallthru
          _
        // Predicated region
        $region69: #{tpu_custom_call.1} parent=59 // pred_check
          %p376 = pneg %p111
        $region70: #{tpu_custom_call.1} parent=59 // pred_check_branch
          %378 = sbr.rel (%p376) target = $region72
        $region71: #{tpu_custom_call.1} parent=59 // pred_region
          %379 = dma.done [#allocation9], 16384
        $region72: #{tpu_custom_call.1} parent=59 // pred_fallthru
          _
        // Predicated region
        $region73: #{tpu_custom_call.1} parent=59 // pred_check
          %p380 = pneg %p195
        $region74: #{tpu_custom_call.1} parent=59 // pred_check_branch
          %382 = sbr.rel (%p380) target = $region76
        $region75: #{tpu_custom_call.1} parent=59 // pred_region
          %383 = dma.done [#allocation12], 4096
        $region76: #{tpu_custom_call.1} parent=59 // pred_fallthru
          _
        %s384 = sand.u32 %s35, 1
        %s385 = scalar_lea.sflag [#allocation6], %s384
        %s386 = sand.u32 %s35, 1
        %s387 = smul.addr %s386, 384
        %s388 = scalar_lea.vmem [#allocation5], %s387
        %p389 = pneg %p48
        %p390 = pneg %p45
        %p391 = pneg %p69
        %p392 = pneg %p66
        %p393 = pneg %p90
        %p394 = pneg %p87
        %p395 = pneg %p111
        %p396 = pneg %p108
        %p397 = pneg %p132
        %p398 = pneg %p129
        %p399 = pneg %p153
        %p400 = pneg %p150
        %p401 = pneg %p174
        %p402 = pneg %p171
        %p403 = pneg %p195
        %p404 = pneg %p192
        %p405 = pneg %p216
        %p406 = pneg %p213
        %p407 = pneg %p237
        %p408 = pneg %p234
        %p409 = pneg %p258
        %p410 = pneg %p255
        %s411 = smul.u32 16, %s27
        %p413 = scmp.eq.s32.totalorder %s27, 0
        // Predicated region
        $region77: #{tpu_custom_call.1} parent=59 // pred_check
          %p414 = pneg %p413
        $region78: #{tpu_custom_call.1} parent=59 // pred_check_branch
          %416 = sbr.rel (%p414) target = $region80
        $region79: #{tpu_custom_call.1} parent=59 // pred_region
          %v417 = vlaneseq
          %vm418 = vcmp.ge.s32.totalorder %v417, 0
          %vm419 = vcmp.lt.s32.totalorder %v417, 512
          %vm420 = vmand %vm418, %vm419
          %421 = vst.msk [vmem:[#allocation3] sm:$0xf] %vm420, 0.0
          %422 = vst.msk [vmem:[#allocation4] sm:$0xf] %vm420, 0.0
        $region80: #{tpu_custom_call.1} parent=59 // pred_fallthru
          _
        %v423 = vld [vmem:[%s367] sm:$0xff]
        %v424 = vld [vmem:[%s367 + $0x8] sm:$0xff]
        %v425 = vld [vmem:[%s367 + $0x10] sm:$0xff]
        %v426 = vld [vmem:[%s367 + $0x18] sm:$0xff]
        %v427 = vld [vmem:[%s367 + $0x20] sm:$0xff]
        %v428 = vld [vmem:[%s367 + $0x28] sm:$0xff]
        %v429 = vld [vmem:[%s367 + $0x30] sm:$0xff]
        %v430 = vld [vmem:[%s367 + $0x38] sm:$0xff]
        %v431 = vld [vmem:[%s367 + $0x40] sm:$0xff]
        %v432 = vld [vmem:[%s367 + $0x48] sm:$0xff]
        %v433 = vld [vmem:[%s367 + $0x50] sm:$0xff]
        %v434 = vld [vmem:[%s367 + $0x58] sm:$0xff]
        %v435 = vld [vmem:[%s367 + $0x60] sm:$0xff]
        %v436 = vld [vmem:[%s367 + $0x68] sm:$0xff]
        %v437 = vld [vmem:[%s367 + $0x70] sm:$0xff]
        %v438 = vld [vmem:[%s367 + $0x78] sm:$0xff]
        %v439 = vld [vmem:[%s367 + $0x80] sm:$0xff]
        %v440 = vld [vmem:[%s367 + $0x88] sm:$0xff]
        %v441 = vld [vmem:[%s367 + $0x90] sm:$0xff]
        %v442 = vld [vmem:[%s367 + $0x98] sm:$0xff]
        %v443 = vld [vmem:[%s367 + $0xa0] sm:$0xff]
        %v444 = vld [vmem:[%s367 + $0xa8] sm:$0xff]
        %v445 = vld [vmem:[%s367 + $0xb0] sm:$0xff]
        %v446 = vld [vmem:[%s367 + $0xb8] sm:$0xff]
        %v447 = vld [vmem:[%s367 + $0xc0] sm:$0xff]
        %v448 = vld [vmem:[%s367 + $0xc8] sm:$0xff]
        %v449 = vld [vmem:[%s367 + $0xd0] sm:$0xff]
        %v450 = vld [vmem:[%s367 + $0xd8] sm:$0xff]
        %v451 = vld [vmem:[%s367 + $0xe0] sm:$0xff]
        %v452 = vld [vmem:[%s367 + $0xe8] sm:$0xff]
        %v453 = vld [vmem:[%s367 + $0xf0] sm:$0xff]
        %v454 = vld [vmem:[%s367 + $0xf8] sm:$0xff]
        %v455 = vld [vmem:[%s367 + $0x100] sm:$0xff]
        %v456 = vld [vmem:[%s367 + $0x108] sm:$0xff]
        %v457 = vld [vmem:[%s367 + $0x110] sm:$0xff]
        %v458 = vld [vmem:[%s367 + $0x118] sm:$0xff]
        %v459 = vld [vmem:[%s367 + $0x120] sm:$0xff]
        %v460 = vld [vmem:[%s367 + $0x128] sm:$0xff]
        %v461 = vld [vmem:[%s367 + $0x130] sm:$0xff]
        %v462 = vld [vmem:[%s367 + $0x138] sm:$0xff]
        %v463 = vld [vmem:[%s367 + $0x140] sm:$0xff]
        %v464 = vld [vmem:[%s367 + $0x148] sm:$0xff]
        %v465 = vld [vmem:[%s367 + $0x150] sm:$0xff]
        %v466 = vld [vmem:[%s367 + $0x158] sm:$0xff]
        %v467 = vld [vmem:[%s367 + $0x160] sm:$0xff]
        %v468 = vld [vmem:[%s367 + $0x168] sm:$0xff]
        %v469 = vld [vmem:[%s367 + $0x170] sm:$0xff]
        %v470 = vld [vmem:[%s367 + $0x178] sm:$0xff]
        %v471 = vld [vmem:[#allocation8] sm:$0xff]
        %v472 = vld [vmem:[#allocation8 + $0x8] sm:$0xff]
        %v473 = vld [vmem:[#allocation8 + $0x10] sm:$0xff]
        %v474 = vld [vmem:[#allocation8 + $0x18] sm:$0xff]
        %v475 = vld [vmem:[#allocation8 + $0x20] sm:$0xff]
        %v476 = vld [vmem:[#allocation8 + $0x28] sm:$0xff]
        %v477 = vld [vmem:[#allocation8 + $0x30] sm:$0xff]
        %v478 = vld [vmem:[#allocation8 + $0x38] sm:$0xff]
        %v479 = vld [vmem:[#allocation8 + $0x40] sm:$0xff]
        %v480 = vld [vmem:[#allocation8 + $0x48] sm:$0xff]
        %v481 = vld [vmem:[#allocation8 + $0x50] sm:$0xff]
        %v482 = vld [vmem:[#allocation8 + $0x58] sm:$0xff]
        %v483 = vld [vmem:[#allocation8 + $0x60] sm:$0xff]
        %v484 = vld [vmem:[#allocation8 + $0x68] sm:$0xff]
        %v485 = vld [vmem:[#allocation8 + $0x70] sm:$0xff]
        %v486 = vld [vmem:[#allocation8 + $0x78] sm:$0xff]
        %v487 = vld [vmem:[#allocation8 + $0x80] sm:$0xff]
        %v488 = vld [vmem:[#allocation8 + $0x88] sm:$0xff]
        %v489 = vld [vmem:[#allocation8 + $0x90] sm:$0xff]
        %v490 = vld [vmem:[#allocation8 + $0x98] sm:$0xff]
        %v491 = vld [vmem:[#allocation8 + $0xa0] sm:$0xff]
        %v492 = vld [vmem:[#allocation8 + $0xa8] sm:$0xff]
        %v493 = vld [vmem:[#allocation8 + $0xb0] sm:$0xff]
        %v494 = vld [vmem:[#allocation8 + $0xb8] sm:$0xff]
        %v495 = vld [vmem:[#allocation8 + $0xc0] sm:$0xff]
        %v496 = vld [vmem:[#allocation8 + $0xc8] sm:$0xff]
        %v497 = vld [vmem:[#allocation8 + $0xd0] sm:$0xff]
        %v498 = vld [vmem:[#allocation8 + $0xd8] sm:$0xff]
        %v499 = vld [vmem:[#allocation8 + $0xe0] sm:$0xff]
        %v500 = vld [vmem:[#allocation8 + $0xe8] sm:$0xff]
        %v501 = vld [vmem:[#allocation8 + $0xf0] sm:$0xff]
        %v502 = vld [vmem:[#allocation8 + $0xf8] sm:$0xff]
        %v503 = vld [vmem:[#allocation8 + $0x100] sm:$0xff]
        %v504 = vld [vmem:[#allocation8 + $0x108] sm:$0xff]
        %v505 = vld [vmem:[#allocation8 + $0x110] sm:$0xff]
        %v506 = vld [vmem:[#allocation8 + $0x118] sm:$0xff]
        %v507 = vld [vmem:[#allocation8 + $0x120] sm:$0xff]
        %v508 = vld [vmem:[#allocation8 + $0x128] sm:$0xff]
        %v509 = vld [vmem:[#allocation8 + $0x130] sm:$0xff]
        %v510 = vld [vmem:[#allocation8 + $0x138] sm:$0xff]
        %v511 = vld [vmem:[#allocation8 + $0x140] sm:$0xff]
        %v512 = vld [vmem:[#allocation8 + $0x148] sm:$0xff]
        %v513 = vld [vmem:[#allocation8 + $0x150] sm:$0xff]
        %v514 = vld [vmem:[#allocation8 + $0x158] sm:$0xff]
        %v515 = vld [vmem:[#allocation8 + $0x160] sm:$0xff]
        %v516 = vld [vmem:[#allocation8 + $0x168] sm:$0xff]
        %v517 = vld [vmem:[#allocation8 + $0x170] sm:$0xff]
        %v518 = vld [vmem:[#allocation8 + $0x178] sm:$0xff]
        %v519 = vld [vmem:[#allocation8 + $0x180] sm:$0xff]
        %v520 = vld [vmem:[#allocation8 + $0x188] sm:$0xff]
        %v521 = vld [vmem:[#allocation8 + $0x190] sm:$0xff]
        %v522 = vld [vmem:[#allocation8 + $0x198] sm:$0xff]
        %v523 = vld [vmem:[#allocation8 + $0x1a0] sm:$0xff]
        %v524 = vld [vmem:[#allocation8 + $0x1a8] sm:$0xff]
        %v525 = vld [vmem:[#allocation8 + $0x1b0] sm:$0xff]
        %v526 = vld [vmem:[#allocation8 + $0x1b8] sm:$0xff]
        %v527 = vld [vmem:[#allocation8 + $0x1c0] sm:$0xff]
        %v528 = vld [vmem:[#allocation8 + $0x1c8] sm:$0xff]
        %v529 = vld [vmem:[#allocation8 + $0x1d0] sm:$0xff]
        %v530 = vld [vmem:[#allocation8 + $0x1d8] sm:$0xff]
        %v531 = vld [vmem:[#allocation8 + $0x1e0] sm:$0xff]
        %v532 = vld [vmem:[#allocation8 + $0x1e8] sm:$0xff]
        %v533 = vld [vmem:[#allocation8 + $0x1f0] sm:$0xff]
        %v534 = vld [vmem:[#allocation8 + $0x1f8] sm:$0xff]
        %v535 = vld [vmem:[#allocation8 + $0x200] sm:$0xff]
        %v536 = vld [vmem:[#allocation8 + $0x208] sm:$0xff]
        %v537 = vld [vmem:[#allocation8 + $0x210] sm:$0xff]
        %v538 = vld [vmem:[#allocation8 + $0x218] sm:$0xff]
        %v539 = vld [vmem:[#allocation8 + $0x220] sm:$0xff]
        %v540 = vld [vmem:[#allocation8 + $0x228] sm:$0xff]
        %v541 = vld [vmem:[#allocation8 + $0x230] sm:$0xff]
        %v542 = vld [vmem:[#allocation8 + $0x238] sm:$0xff]
        %v543 = vld [vmem:[#allocation8 + $0x240] sm:$0xff]
        %v544 = vld [vmem:[#allocation8 + $0x248] sm:$0xff]
        %v545 = vld [vmem:[#allocation8 + $0x250] sm:$0xff]
        %v546 = vld [vmem:[#allocation8 + $0x258] sm:$0xff]
        %v547 = vld [vmem:[#allocation8 + $0x260] sm:$0xff]
        %v548 = vld [vmem:[#allocation8 + $0x268] sm:$0xff]
        %v549 = vld [vmem:[#allocation8 + $0x270] sm:$0xff]
        %v550 = vld [vmem:[#allocation8 + $0x278] sm:$0xff]
        %v551 = vld [vmem:[#allocation8 + $0x280] sm:$0xff]
        %v552 = vld [vmem:[#allocation8 + $0x288] sm:$0xff]
        %v553 = vld [vmem:[#allocation8 + $0x290] sm:$0xff]
        %v554 = vld [vmem:[#allocation8 + $0x298] sm:$0xff]
        %v555 = vld [vmem:[#allocation8 + $0x2a0] sm:$0xff]
        %v556 = vld [vmem:[#allocation8 + $0x2a8] sm:$0xff]
        %v557 = vld [vmem:[#allocation8 + $0x2b0] sm:$0xff]
        %v558 = vld [vmem:[#allocation8 + $0x2b8] sm:$0xff]
        %v559 = vld [vmem:[#allocation8 + $0x2c0] sm:$0xff]
        %v560 = vld [vmem:[#allocation8 + $0x2c8] sm:$0xff]
        %v561 = vld [vmem:[#allocation8 + $0x2d0] sm:$0xff]
        %v562 = vld [vmem:[#allocation8 + $0x2d8] sm:$0xff]
        %v563 = vld [vmem:[#allocation8 + $0x2e0] sm:$0xff]
        %v564 = vld [vmem:[#allocation8 + $0x2e8] sm:$0xff]
        %v565 = vld [vmem:[#allocation8 + $0x2f0] sm:$0xff]
        %v566 = vld [vmem:[#allocation8 + $0x2f8] sm:$0xff]
        %v567 = vld [vmem:[#allocation8 + $0x300] sm:$0xff]
        %v568 = vld [vmem:[#allocation8 + $0x308] sm:$0xff]
        %v569 = vld [vmem:[#allocation8 + $0x310] sm:$0xff]
        %v570 = vld [vmem:[#allocation8 + $0x318] sm:$0xff]
        %v571 = vld [vmem:[#allocation8 + $0x320] sm:$0xff]
        %v572 = vld [vmem:[#allocation8 + $0x328] sm:$0xff]
        %v573 = vld [vmem:[#allocation8 + $0x330] sm:$0xff]
        %v574 = vld [vmem:[#allocation8 + $0x338] sm:$0xff]
        %v575 = vld [vmem:[#allocation8 + $0x340] sm:$0xff]
        %v576 = vld [vmem:[#allocation8 + $0x348] sm:$0xff]
        %v577 = vld [vmem:[#allocation8 + $0x350] sm:$0xff]
        %v578 = vld [vmem:[#allocation8 + $0x358] sm:$0xff]
        %v579 = vld [vmem:[#allocation8 + $0x360] sm:$0xff]
        %v580 = vld [vmem:[#allocation8 + $0x368] sm:$0xff]
        %v581 = vld [vmem:[#allocation8 + $0x370] sm:$0xff]
        %v582 = vld [vmem:[#allocation8 + $0x378] sm:$0xff]
        %v583 = vld [vmem:[#allocation8 + $0x380] sm:$0xff]
        %v584 = vld [vmem:[#allocation8 + $0x388] sm:$0xff]
        %v585 = vld [vmem:[#allocation8 + $0x390] sm:$0xff]
        %v586 = vld [vmem:[#allocation8 + $0x398] sm:$0xff]
        %v587 = vld [vmem:[#allocation8 + $0x3a0] sm:$0xff]
        %v588 = vld [vmem:[#allocation8 + $0x3a8] sm:$0xff]
        %v589 = vld [vmem:[#allocation8 + $0x3b0] sm:$0xff]
        %v590 = vld [vmem:[#allocation8 + $0x3b8] sm:$0xff]
        %v591 = vld [vmem:[#allocation8 + $0x3c0] sm:$0xff]
        %v592 = vld [vmem:[#allocation8 + $0x3c8] sm:$0xff]
        %v593 = vld [vmem:[#allocation8 + $0x3d0] sm:$0xff]
        %v594 = vld [vmem:[#allocation8 + $0x3d8] sm:$0xff]
        %v595 = vld [vmem:[#allocation8 + $0x3e0] sm:$0xff]
        %v596 = vld [vmem:[#allocation8 + $0x3e8] sm:$0xff]
        %v597 = vld [vmem:[#allocation8 + $0x3f0] sm:$0xff]
        %v598 = vld [vmem:[#allocation8 + $0x3f8] sm:$0xff]
        %v599 = vld [vmem:[#allocation8 + $0x400] sm:$0xff]
        %v600 = vld [vmem:[#allocation8 + $0x408] sm:$0xff]
        %v601 = vld [vmem:[#allocation8 + $0x410] sm:$0xff]
        %v602 = vld [vmem:[#allocation8 + $0x418] sm:$0xff]
        %v603 = vld [vmem:[#allocation8 + $0x420] sm:$0xff]
        %v604 = vld [vmem:[#allocation8 + $0x428] sm:$0xff]
        %v605 = vld [vmem:[#allocation8 + $0x430] sm:$0xff]
        %v606 = vld [vmem:[#allocation8 + $0x438] sm:$0xff]
        %v607 = vld [vmem:[#allocation8 + $0x440] sm:$0xff]
        %v608 = vld [vmem:[#allocation8 + $0x448] sm:$0xff]
        %v609 = vld [vmem:[#allocation8 + $0x450] sm:$0xff]
        %v610 = vld [vmem:[#allocation8 + $0x458] sm:$0xff]
        %v611 = vld [vmem:[#allocation8 + $0x460] sm:$0xff]
        %v612 = vld [vmem:[#allocation8 + $0x468] sm:$0xff]
        %v613 = vld [vmem:[#allocation8 + $0x470] sm:$0xff]
        %v614 = vld [vmem:[#allocation8 + $0x478] sm:$0xff]
        %v615 = vld [vmem:[#allocation8 + $0x480] sm:$0xff]
        %v616 = vld [vmem:[#allocation8 + $0x488] sm:$0xff]
        %v617 = vld [vmem:[#allocation8 + $0x490] sm:$0xff]
        %v618 = vld [vmem:[#allocation8 + $0x498] sm:$0xff]
        %v619 = vld [vmem:[#allocation8 + $0x4a0] sm:$0xff]
        %v620 = vld [vmem:[#allocation8 + $0x4a8] sm:$0xff]
        %v621 = vld [vmem:[#allocation8 + $0x4b0] sm:$0xff]
        %v622 = vld [vmem:[#allocation8 + $0x4b8] sm:$0xff]
        %v623 = vld [vmem:[#allocation8 + $0x4c0] sm:$0xff]
        %v624 = vld [vmem:[#allocation8 + $0x4c8] sm:$0xff]
        %v625 = vld [vmem:[#allocation8 + $0x4d0] sm:$0xff]
        %v626 = vld [vmem:[#allocation8 + $0x4d8] sm:$0xff]
        %v627 = vld [vmem:[#allocation8 + $0x4e0] sm:$0xff]
        %v628 = vld [vmem:[#allocation8 + $0x4e8] sm:$0xff]
        %v629 = vld [vmem:[#allocation8 + $0x4f0] sm:$0xff]
        %v630 = vld [vmem:[#allocation8 + $0x4f8] sm:$0xff]
        %v631 = vld [vmem:[#allocation8 + $0x500] sm:$0xff]
        %v632 = vld [vmem:[#allocation8 + $0x508] sm:$0xff]
        %v633 = vld [vmem:[#allocation8 + $0x510] sm:$0xff]
        %v634 = vld [vmem:[#allocation8 + $0x518] sm:$0xff]
        %v635 = vld [vmem:[#allocation8 + $0x520] sm:$0xff]
        %v636 = vld [vmem:[#allocation8 + $0x528] sm:$0xff]
        %v637 = vld [vmem:[#allocation8 + $0x530] sm:$0xff]
        %v638 = vld [vmem:[#allocation8 + $0x538] sm:$0xff]
        %v639 = vld [vmem:[#allocation8 + $0x540] sm:$0xff]
        %v640 = vld [vmem:[#allocation8 + $0x548] sm:$0xff]
        %v641 = vld [vmem:[#allocation8 + $0x550] sm:$0xff]
        %v642 = vld [vmem:[#allocation8 + $0x558] sm:$0xff]
        %v643 = vld [vmem:[#allocation8 + $0x560] sm:$0xff]
        %v644 = vld [vmem:[#allocation8 + $0x568] sm:$0xff]
        %v645 = vld [vmem:[#allocation8 + $0x570] sm:$0xff]
        %v646 = vld [vmem:[#allocation8 + $0x578] sm:$0xff]
        %v647 = vld [vmem:[#allocation8 + $0x580] sm:$0xff]
        %v648 = vld [vmem:[#allocation8 + $0x588] sm:$0xff]
        %v649 = vld [vmem:[#allocation8 + $0x590] sm:$0xff]
        %v650 = vld [vmem:[#allocation8 + $0x598] sm:$0xff]
        %v651 = vld [vmem:[#allocation8 + $0x5a0] sm:$0xff]
        %v652 = vld [vmem:[#allocation8 + $0x5a8] sm:$0xff]
        %v653 = vld [vmem:[#allocation8 + $0x5b0] sm:$0xff]
        %v654 = vld [vmem:[#allocation8 + $0x5b8] sm:$0xff]
        %v655 = vld [vmem:[#allocation8 + $0x5c0] sm:$0xff]
        %v656 = vld [vmem:[#allocation8 + $0x5c8] sm:$0xff]
        %v657 = vld [vmem:[#allocation8 + $0x5d0] sm:$0xff]
        %v658 = vld [vmem:[#allocation8 + $0x5d8] sm:$0xff]
        %v659 = vld [vmem:[#allocation8 + $0x5e0] sm:$0xff]
        %v660 = vld [vmem:[#allocation8 + $0x5e8] sm:$0xff]
        %v661 = vld [vmem:[#allocation8 + $0x5f0] sm:$0xff]
        %v662 = vld [vmem:[#allocation8 + $0x5f8] sm:$0xff]
        %v663 = vld [vmem:[%s2] sm:$0xf]
        %v665 = vlaneseq
        %v666 = vshrl.u32 %v665, 7
        %v667 = vsub.s32 0, %v666
        %v668 = vrot.slane %v663, %v667
        %v669 = vlaneseq
        %v670 = vshrl.u32 %v669, 7
        %v671 = vsub.s32 1, %v670
        %v672 = vrot.slane %v663, %v671
        %v673 = vlaneseq
        %v674 = vshrl.u32 %v673, 7
        %v675 = vsub.s32 2, %v674
        %v676 = vrot.slane %v663, %v675
        %v677 = vlaneseq
        %v678 = vshrl.u32 %v677, 7
        %v679 = vsub.s32 3, %v678
        %v680 = vrot.slane %v663, %v679
        %v733 = vunpack.c.l.b16 %v423
        %v734 = vunpack.c.h.b16 %v423
        %v735 = vunpack.c.l.b16 %v424
        %v736 = vunpack.c.h.b16 %v424
        %v737 = vunpack.c.l.b16 %v425
        %v738 = vunpack.c.h.b16 %v425
        %v739 = vunpack.c.l.b16 %v426
        %v740 = vunpack.c.h.b16 %v426
        %v741 = vunpack.c.l.b16 %v427
        %v742 = vunpack.c.h.b16 %v427
        %v743 = vunpack.c.l.b16 %v428
        %v744 = vunpack.c.h.b16 %v428
        %v745 = vunpack.c.l.b16 %v429
        %v746 = vunpack.c.h.b16 %v429
        %v747 = vunpack.c.l.b16 %v430
        %v748 = vunpack.c.h.b16 %v430
        %v749 = vunpack.c.l.b16 %v431
        %v750 = vunpack.c.h.b16 %v431
        %v751 = vunpack.c.l.b16 %v432
        %v752 = vunpack.c.h.b16 %v432
        %v753 = vunpack.c.l.b16 %v433
        %v754 = vunpack.c.h.b16 %v433
        %v755 = vunpack.c.l.b16 %v434
        %v756 = vunpack.c.h.b16 %v434
        %v757 = vunpack.c.l.b16 %v435
        %v758 = vunpack.c.h.b16 %v435
        %v759 = vunpack.c.l.b16 %v436
        %v760 = vunpack.c.h.b16 %v436
        %v761 = vunpack.c.l.b16 %v437
        %v762 = vunpack.c.h.b16 %v437
        %v763 = vunpack.c.l.b16 %v438
        %v764 = vunpack.c.h.b16 %v438
        %v765 = vunpack.c.l.b16 %v439
        %v766 = vunpack.c.h.b16 %v439
        %v767 = vunpack.c.l.b16 %v440
        %v768 = vunpack.c.h.b16 %v440
        %v769 = vunpack.c.l.b16 %v441
        %v770 = vunpack.c.h.b16 %v441
        %v771 = vunpack.c.l.b16 %v442
        %v772 = vunpack.c.h.b16 %v442
        %v773 = vunpack.c.l.b16 %v443
        %v774 = vunpack.c.h.b16 %v443
        %v775 = vunpack.c.l.b16 %v444
        %v776 = vunpack.c.h.b16 %v444
        %v777 = vunpack.c.l.b16 %v445
        %v778 = vunpack.c.h.b16 %v445
        %v779 = vunpack.c.l.b16 %v446
        %v780 = vunpack.c.h.b16 %v446
        %v781 = vunpack.c.l.b16 %v447
        %v782 = vunpack.c.h.b16 %v447
        %v783 = vunpack.c.l.b16 %v448
        %v784 = vunpack.c.h.b16 %v448
        %v785 = vunpack.c.l.b16 %v449
        %v786 = vunpack.c.h.b16 %v449
        %v787 = vunpack.c.l.b16 %v450
        %v788 = vunpack.c.h.b16 %v450
        %v789 = vunpack.c.l.b16 %v451
        %v790 = vunpack.c.h.b16 %v451
        %v791 = vunpack.c.l.b16 %v452
        %v792 = vunpack.c.h.b16 %v452
        %v793 = vunpack.c.l.b16 %v453
        %v794 = vunpack.c.h.b16 %v453
        %v795 = vunpack.c.l.b16 %v454
        %v796 = vunpack.c.h.b16 %v454
        %v797 = vunpack.c.l.b16 %v455
        %v798 = vunpack.c.h.b16 %v455
        %v799 = vunpack.c.l.b16 %v456
        %v800 = vunpack.c.h.b16 %v456
        %v801 = vunpack.c.l.b16 %v457
        %v802 = vunpack.c.h.b16 %v457
        %v803 = vunpack.c.l.b16 %v458
        %v804 = vunpack.c.h.b16 %v458
        %v805 = vunpack.c.l.b16 %v459
        %v806 = vunpack.c.h.b16 %v459
        %v807 = vunpack.c.l.b16 %v460
        %v808 = vunpack.c.h.b16 %v460
        %v809 = vunpack.c.l.b16 %v461
        %v810 = vunpack.c.h.b16 %v461
        %v811 = vunpack.c.l.b16 %v462
        %v812 = vunpack.c.h.b16 %v462
        %v813 = vunpack.c.l.b16 %v463
        %v814 = vunpack.c.h.b16 %v463
        %v815 = vunpack.c.l.b16 %v464
        %v816 = vunpack.c.h.b16 %v464
        %v817 = vunpack.c.l.b16 %v465
        %v818 = vunpack.c.h.b16 %v465
        %v819 = vunpack.c.l.b16 %v466
        %v820 = vunpack.c.h.b16 %v466
        %v821 = vunpack.c.l.b16 %v467
        %v822 = vunpack.c.h.b16 %v467
        %v823 = vunpack.c.l.b16 %v468
        %v824 = vunpack.c.h.b16 %v468
        %v825 = vunpack.c.l.b16 %v469
        %v826 = vunpack.c.h.b16 %v469
        %v827 = vunpack.c.l.b16 %v470
        %v828 = vunpack.c.h.b16 %v470
        %v829 = vpack.c.b16 %v739, %v733
        %v830 = vpack.c.b16 %v740, %v734
        %v831 = vpack.c.b16 %v741, %v735
        %v832 = vpack.c.b16 %v742, %v736
        %v833 = vpack.c.b16 %v743, %v737
        %v834 = vpack.c.b16 %v744, %v738
        %v835 = vpack.c.b16 %v751, %v745
        %v836 = vpack.c.b16 %v752, %v746
        %v837 = vpack.c.b16 %v753, %v747
        %v838 = vpack.c.b16 %v754, %v748
        %v839 = vpack.c.b16 %v755, %v749
        %v840 = vpack.c.b16 %v756, %v750
        %v841 = vpack.c.b16 %v763, %v757
        %v842 = vpack.c.b16 %v764, %v758
        %v843 = vpack.c.b16 %v765, %v759
        %v844 = vpack.c.b16 %v766, %v760
        %v845 = vpack.c.b16 %v767, %v761
        %v846 = vpack.c.b16 %v768, %v762
        %v847 = vpack.c.b16 %v775, %v769
        %v848 = vpack.c.b16 %v776, %v770
        %v849 = vpack.c.b16 %v777, %v771
        %v850 = vpack.c.b16 %v778, %v772
        %v851 = vpack.c.b16 %v779, %v773
        %v852 = vpack.c.b16 %v780, %v774
        %v853 = vpack.c.b16 %v787, %v781
        %v854 = vpack.c.b16 %v788, %v782
        %v855 = vpack.c.b16 %v789, %v783
        %v856 = vpack.c.b16 %v790, %v784
        %v857 = vpack.c.b16 %v791, %v785
        %v858 = vpack.c.b16 %v792, %v786
        %v859 = vpack.c.b16 %v799, %v793
        %v860 = vpack.c.b16 %v800, %v794
        %v861 = vpack.c.b16 %v801, %v795
        %v862 = vpack.c.b16 %v802, %v796
        %v863 = vpack.c.b16 %v803, %v797
        %v864 = vpack.c.b16 %v804, %v798
        %v865 = vpack.c.b16 %v811, %v805
        %v866 = vpack.c.b16 %v812, %v806
        %v867 = vpack.c.b16 %v813, %v807
        %v868 = vpack.c.b16 %v814, %v808
        %v869 = vpack.c.b16 %v815, %v809
        %v870 = vpack.c.b16 %v816, %v810
        %v871 = vpack.c.b16 %v823, %v817
        %v872 = vpack.c.b16 %v824, %v818
        %v873 = vpack.c.b16 %v825, %v819
        %v874 = vpack.c.b16 %v826, %v820
        %v875 = vpack.c.b16 %v827, %v821
        %v876 = vpack.c.b16 %v828, %v822
        %v1117 = vunpack.c.l.b16 %v471
        %v1118 = vunpack.c.h.b16 %v471
        %v1119 = vunpack.c.l.b16 %v472
        %v1120 = vunpack.c.h.b16 %v472
        %v1121 = vunpack.c.l.b16 %v473
        %v1122 = vunpack.c.h.b16 %v473
        %v1123 = vunpack.c.l.b16 %v474
        %v1124 = vunpack.c.h.b16 %v474
        %v1125 = vunpack.c.l.b16 %v475
        %v1126 = vunpack.c.h.b16 %v475
        %v1127 = vunpack.c.l.b16 %v476
        %v1128 = vunpack.c.h.b16 %v476
        %v1129 = vunpack.c.l.b16 %v477
        %v1130 = vunpack.c.h.b16 %v477
        %v1131 = vunpack.c.l.b16 %v478
        %v1132 = vunpack.c.h.b16 %v478
        %v1133 = vunpack.c.l.b16 %v479
        %v1134 = vunpack.c.h.b16 %v479
        %v1135 = vunpack.c.l.b16 %v480
        %v1136 = vunpack.c.h.b16 %v480
        %v1137 = vunpack.c.l.b16 %v481
        %v1138 = vunpack.c.h.b16 %v481
        %v1139 = vunpack.c.l.b16 %v482
        %v1140 = vunpack.c.h.b16 %v482
        %v1141 = vunpack.c.l.b16 %v483
        %v1142 = vunpack.c.h.b16 %v483
        %v1143 = vunpack.c.l.b16 %v484
        %v1144 = vunpack.c.h.b16 %v484
        %v1145 = vunpack.c.l.b16 %v485
        %v1146 = vunpack.c.h.b16 %v485
        %v1147 = vunpack.c.l.b16 %v486
        %v1148 = vunpack.c.h.b16 %v486
        %v1149 = vunpack.c.l.b16 %v487
        %v1150 = vunpack.c.h.b16 %v487
        %v1151 = vunpack.c.l.b16 %v488
        %v1152 = vunpack.c.h.b16 %v488
        %v1153 = vunpack.c.l.b16 %v489
        %v1154 = vunpack.c.h.b16 %v489
        %v1155 = vunpack.c.l.b16 %v490
        %v1156 = vunpack.c.h.b16 %v490
        %v1157 = vunpack.c.l.b16 %v491
        %v1158 = vunpack.c.h.b16 %v491
        %v1159 = vunpack.c.l.b16 %v492
        %v1160 = vunpack.c.h.b16 %v492
        %v1161 = vunpack.c.l.b16 %v493
        %v1162 = vunpack.c.h.b16 %v493
        %v1163 = vunpack.c.l.b16 %v494
        %v1164 = vunpack.c.h.b16 %v494
        %v1165 = vunpack.c.l.b16 %v495
        %v1166 = vunpack.c.h.b16 %v495
        %v1167 = vunpack.c.l.b16 %v496
        %v1168 = vunpack.c.h.b16 %v496
        %v1169 = vunpack.c.l.b16 %v497
        %v1170 = vunpack.c.h.b16 %v497
        %v1171 = vunpack.c.l.b16 %v498
        %v1172 = vunpack.c.h.b16 %v498
        %v1173 = vunpack.c.l.b16 %v499
        %v1174 = vunpack.c.h.b16 %v499
        %v1175 = vunpack.c.l.b16 %v500
        %v1176 = vunpack.c.h.b16 %v500
        %v1177 = vunpack.c.l.b16 %v501
        %v1178 = vunpack.c.h.b16 %v501
        %v1179 = vunpack.c.l.b16 %v502
        %v1180 = vunpack.c.h.b16 %v502
        %v1181 = vunpack.c.l.b16 %v503
        %v1182 = vunpack.c.h.b16 %v503
        %v1183 = vunpack.c.l.b16 %v504
        %v1184 = vunpack.c.h.b16 %v504
        %v1185 = vunpack.c.l.b16 %v505
        %v1186 = vunpack.c.h.b16 %v505
        %v1187 = vunpack.c.l.b16 %v506
        %v1188 = vunpack.c.h.b16 %v506
        %v1189 = vunpack.c.l.b16 %v507
        %v1190 = vunpack.c.h.b16 %v507
        %v1191 = vunpack.c.l.b16 %v508
        %v1192 = vunpack.c.h.b16 %v508
        %v1193 = vunpack.c.l.b16 %v509
        %v1194 = vunpack.c.h.b16 %v509
        %v1195 = vunpack.c.l.b16 %v510
        %v1196 = vunpack.c.h.b16 %v510
        %v1197 = vunpack.c.l.b16 %v511
        %v1198 = vunpack.c.h.b16 %v511
        %v1199 = vunpack.c.l.b16 %v512
        %v1200 = vunpack.c.h.b16 %v512
        %v1201 = vunpack.c.l.b16 %v513
        %v1202 = vunpack.c.h.b16 %v513
        %v1203 = vunpack.c.l.b16 %v514
        %v1204 = vunpack.c.h.b16 %v514
        %v1205 = vunpack.c.l.b16 %v515
        %v1206 = vunpack.c.h.b16 %v515
        %v1207 = vunpack.c.l.b16 %v516
        %v1208 = vunpack.c.h.b16 %v516
        %v1209 = vunpack.c.l.b16 %v517
        %v1210 = vunpack.c.h.b16 %v517
        %v1211 = vunpack.c.l.b16 %v518
        %v1212 = vunpack.c.h.b16 %v518
        %v1213 = vunpack.c.l.b16 %v519
        %v1214 = vunpack.c.h.b16 %v519
        %v1215 = vunpack.c.l.b16 %v520
        %v1216 = vunpack.c.h.b16 %v520
        %v1217 = vunpack.c.l.b16 %v521
        %v1218 = vunpack.c.h.b16 %v521
        %v1219 = vunpack.c.l.b16 %v522
        %v1220 = vunpack.c.h.b16 %v522
        %v1221 = vunpack.c.l.b16 %v523
        %v1222 = vunpack.c.h.b16 %v523
        %v1223 = vunpack.c.l.b16 %v524
        %v1224 = vunpack.c.h.b16 %v524
        %v1225 = vunpack.c.l.b16 %v525
        %v1226 = vunpack.c.h.b16 %v525
        %v1227 = vunpack.c.l.b16 %v526
        %v1228 = vunpack.c.h.b16 %v526
        %v1229 = vunpack.c.l.b16 %v527
        %v1230 = vunpack.c.h.b16 %v527
        %v1231 = vunpack.c.l.b16 %v528
        %v1232 = vunpack.c.h.b16 %v528
        %v1233 = vunpack.c.l.b16 %v529
        %v1234 = vunpack.c.h.b16 %v529
        %v1235 = vunpack.c.l.b16 %v530
        %v1236 = vunpack.c.h.b16 %v530
        %v1237 = vunpack.c.l.b16 %v531
        %v1238 = vunpack.c.h.b16 %v531
        %v1239 = vunpack.c.l.b16 %v532
        %v1240 = vunpack.c.h.b16 %v532
        %v1241 = vunpack.c.l.b16 %v533
        %v1242 = vunpack.c.h.b16 %v533
        %v1243 = vunpack.c.l.b16 %v534
        %v1244 = vunpack.c.h.b16 %v534
        %v1245 = vunpack.c.l.b16 %v535
        %v1246 = vunpack.c.h.b16 %v535
        %v1247 = vunpack.c.l.b16 %v536
        %v1248 = vunpack.c.h.b16 %v536
        %v1249 = vunpack.c.l.b16 %v537
        %v1250 = vunpack.c.h.b16 %v537
        %v1251 = vunpack.c.l.b16 %v538
        %v1252 = vunpack.c.h.b16 %v538
        %v1253 = vunpack.c.l.b16 %v539
        %v1254 = vunpack.c.h.b16 %v539
        %v1255 = vunpack.c.l.b16 %v540
        %v1256 = vunpack.c.h.b16 %v540
        %v1257 = vunpack.c.l.b16 %v541
        %v1258 = vunpack.c.h.b16 %v541
        %v1259 = vunpack.c.l.b16 %v542
        %v1260 = vunpack.c.h.b16 %v542
        %v1261 = vunpack.c.l.b16 %v543
        %v1262 = vunpack.c.h.b16 %v543
        %v1263 = vunpack.c.l.b16 %v544
        %v1264 = vunpack.c.h.b16 %v544
        %v1265 = vunpack.c.l.b16 %v545
        %v1266 = vunpack.c.h.b16 %v545
        %v1267 = vunpack.c.l.b16 %v546
        %v1268 = vunpack.c.h.b16 %v546
        %v1269 = vunpack.c.l.b16 %v547
        %v1270 = vunpack.c.h.b16 %v547
        %v1271 = vunpack.c.l.b16 %v548
        %v1272 = vunpack.c.h.b16 %v548
        %v1273 = vunpack.c.l.b16 %v549
        %v1274 = vunpack.c.h.b16 %v549
        %v1275 = vunpack.c.l.b16 %v550
        %v1276 = vunpack.c.h.b16 %v550
        %v1277 = vunpack.c.l.b16 %v551
        %v1278 = vunpack.c.h.b16 %v551
        %v1279 = vunpack.c.l.b16 %v552
        %v1280 = vunpack.c.h.b16 %v552
        %v1281 = vunpack.c.l.b16 %v553
        %v1282 = vunpack.c.h.b16 %v553
        %v1283 = vunpack.c.l.b16 %v554
        %v1284 = vunpack.c.h.b16 %v554
        %v1285 = vunpack.c.l.b16 %v555
        %v1286 = vunpack.c.h.b16 %v555
        %v1287 = vunpack.c.l.b16 %v556
        %v1288 = vunpack.c.h.b16 %v556
        %v1289 = vunpack.c.l.b16 %v557
        %v1290 = vunpack.c.h.b16 %v557
        %v1291 = vunpack.c.l.b16 %v558
        %v1292 = vunpack.c.h.b16 %v558
        %v1293 = vunpack.c.l.b16 %v559
        %v1294 = vunpack.c.h.b16 %v559
        %v1295 = vunpack.c.l.b16 %v560
        %v1296 = vunpack.c.h.b16 %v560
        %v1297 = vunpack.c.l.b16 %v561
        %v1298 = vunpack.c.h.b16 %v561
        %v1299 = vunpack.c.l.b16 %v562
        %v1300 = vunpack.c.h.b16 %v562
        %v1301 = vunpack.c.l.b16 %v563
        %v1302 = vunpack.c.h.b16 %v563
        %v1303 = vunpack.c.l.b16 %v564
        %v1304 = vunpack.c.h.b16 %v564
        %v1305 = vunpack.c.l.b16 %v565
        %v1306 = vunpack.c.h.b16 %v565
        %v1307 = vunpack.c.l.b16 %v566
        %v1308 = vunpack.c.h.b16 %v566
        %v1309 = vunpack.c.l.b16 %v567
        %v1310 = vunpack.c.h.b16 %v567
        %v1311 = vunpack.c.l.b16 %v568
        %v1312 = vunpack.c.h.b16 %v568
        %v1313 = vunpack.c.l.b16 %v569
        %v1314 = vunpack.c.h.b16 %v569
        %v1315 = vunpack.c.l.b16 %v570
        %v1316 = vunpack.c.h.b16 %v570
        %v1317 = vunpack.c.l.b16 %v571
        %v1318 = vunpack.c.h.b16 %v571
        %v1319 = vunpack.c.l.b16 %v572
        %v1320 = vunpack.c.h.b16 %v572
        %v1321 = vunpack.c.l.b16 %v573
        %v1322 = vunpack.c.h.b16 %v573
        %v1323 = vunpack.c.l.b16 %v574
        %v1324 = vunpack.c.h.b16 %v574
        %v1325 = vunpack.c.l.b16 %v575
        %v1326 = vunpack.c.h.b16 %v575
        %v1327 = vunpack.c.l.b16 %v576
        %v1328 = vunpack.c.h.b16 %v576
        %v1329 = vunpack.c.l.b16 %v577
        %v1330 = vunpack.c.h.b16 %v577
        %v1331 = vunpack.c.l.b16 %v578
        %v1332 = vunpack.c.h.b16 %v578
        %v1333 = vunpack.c.l.b16 %v579
        %v1334 = vunpack.c.h.b16 %v579
        %v1335 = vunpack.c.l.b16 %v580
        %v1336 = vunpack.c.h.b16 %v580
        %v1337 = vunpack.c.l.b16 %v581
        %v1338 = vunpack.c.h.b16 %v581
        %v1339 = vunpack.c.l.b16 %v582
        %v1340 = vunpack.c.h.b16 %v582
        %v1341 = vunpack.c.l.b16 %v583
        %v1342 = vunpack.c.h.b16 %v583
        %v1343 = vunpack.c.l.b16 %v584
        %v1344 = vunpack.c.h.b16 %v584
        %v1345 = vunpack.c.l.b16 %v585
        %v1346 = vunpack.c.h.b16 %v585
        %v1347 = vunpack.c.l.b16 %v586
        %v1348 = vunpack.c.h.b16 %v586
        %v1349 = vunpack.c.l.b16 %v587
        %v1350 = vunpack.c.h.b16 %v587
        %v1351 = vunpack.c.l.b16 %v588
        %v1352 = vunpack.c.h.b16 %v588
        %v1353 = vunpack.c.l.b16 %v589
        %v1354 = vunpack.c.h.b16 %v589
        %v1355 = vunpack.c.l.b16 %v590
        %v1356 = vunpack.c.h.b16 %v590
        %v1357 = vunpack.c.l.b16 %v591
        %v1358 = vunpack.c.h.b16 %v591
        %v1359 = vunpack.c.l.b16 %v592
        %v1360 = vunpack.c.h.b16 %v592
        %v1361 = vunpack.c.l.b16 %v593
        %v1362 = vunpack.c.h.b16 %v593
        %v1363 = vunpack.c.l.b16 %v594
        %v1364 = vunpack.c.h.b16 %v594
        %v1365 = vunpack.c.l.b16 %v595
        %v1366 = vunpack.c.h.b16 %v595
        %v1367 = vunpack.c.l.b16 %v596
        %v1368 = vunpack.c.h.b16 %v596
        %v1369 = vunpack.c.l.b16 %v597
        %v1370 = vunpack.c.h.b16 %v597
        %v1371 = vunpack.c.l.b16 %v598
        %v1372 = vunpack.c.h.b16 %v598
        %v1373 = vunpack.c.l.b16 %v599
        %v1374 = vunpack.c.h.b16 %v599
        %v1375 = vunpack.c.l.b16 %v600
        %v1376 = vunpack.c.h.b16 %v600
        %v1377 = vunpack.c.l.b16 %v601
        %v1378 = vunpack.c.h.b16 %v601
        %v1379 = vunpack.c.l.b16 %v602
        %v1380 = vunpack.c.h.b16 %v602
        %v1381 = vunpack.c.l.b16 %v603
        %v1382 = vunpack.c.h.b16 %v603
        %v1383 = vunpack.c.l.b16 %v604
        %v1384 = vunpack.c.h.b16 %v604
        %v1385 = vunpack.c.l.b16 %v605
        %v1386 = vunpack.c.h.b16 %v605
        %v1387 = vunpack.c.l.b16 %v606
        %v1388 = vunpack.c.h.b16 %v606
        %v1389 = vunpack.c.l.b16 %v607
        %v1390 = vunpack.c.h.b16 %v607
        %v1391 = vunpack.c.l.b16 %v608
        %v1392 = vunpack.c.h.b16 %v608
        %v1393 = vunpack.c.l.b16 %v609
        %v1394 = vunpack.c.h.b16 %v609
        %v1395 = vunpack.c.l.b16 %v610
        %v1396 = vunpack.c.h.b16 %v610
        %v1397 = vunpack.c.l.b16 %v611
        %v1398 = vunpack.c.h.b16 %v611
        %v1399 = vunpack.c.l.b16 %v612
        %v1400 = vunpack.c.h.b16 %v612
        %v1401 = vunpack.c.l.b16 %v613
        %v1402 = vunpack.c.h.b16 %v613
        %v1403 = vunpack.c.l.b16 %v614
        %v1404 = vunpack.c.h.b16 %v614
        %v1405 = vunpack.c.l.b16 %v615
        %v1406 = vunpack.c.h.b16 %v615
        %v1407 = vunpack.c.l.b16 %v616
        %v1408 = vunpack.c.h.b16 %v616
        %v1409 = vunpack.c.l.b16 %v617
        %v1410 = vunpack.c.h.b16 %v617
        %v1411 = vunpack.c.l.b16 %v618
        %v1412 = vunpack.c.h.b16 %v618
        %v1413 = vunpack.c.l.b16 %v619
        %v1414 = vunpack.c.h.b16 %v619
        %v1415 = vunpack.c.l.b16 %v620
        %v1416 = vunpack.c.h.b16 %v620
        %v1417 = vunpack.c.l.b16 %v621
        %v1418 = vunpack.c.h.b16 %v621
        %v1419 = vunpack.c.l.b16 %v622
        %v1420 = vunpack.c.h.b16 %v622
        %v1421 = vunpack.c.l.b16 %v623
        %v1422 = vunpack.c.h.b16 %v623
        %v1423 = vunpack.c.l.b16 %v624
        %v1424 = vunpack.c.h.b16 %v624
        %v1425 = vunpack.c.l.b16 %v625
        %v1426 = vunpack.c.h.b16 %v625
        %v1427 = vunpack.c.l.b16 %v626
        %v1428 = vunpack.c.h.b16 %v626
        %v1429 = vunpack.c.l.b16 %v627
        %v1430 = vunpack.c.h.b16 %v627
        %v1431 = vunpack.c.l.b16 %v628
        %v1432 = vunpack.c.h.b16 %v628
        %v1433 = vunpack.c.l.b16 %v629
        %v1434 = vunpack.c.h.b16 %v629
        %v1435 = vunpack.c.l.b16 %v630
        %v1436 = vunpack.c.h.b16 %v630
        %v1437 = vunpack.c.l.b16 %v631
        %v1438 = vunpack.c.h.b16 %v631
        %v1439 = vunpack.c.l.b16 %v632
        %v1440 = vunpack.c.h.b16 %v632
        %v1441 = vunpack.c.l.b16 %v633
        %v1442 = vunpack.c.h.b16 %v633
        %v1443 = vunpack.c.l.b16 %v634
        %v1444 = vunpack.c.h.b16 %v634
        %v1445 = vunpack.c.l.b16 %v635
        %v1446 = vunpack.c.h.b16 %v635
        %v1447 = vunpack.c.l.b16 %v636
        %v1448 = vunpack.c.h.b16 %v636
        %v1449 = vunpack.c.l.b16 %v637
        %v1450 = vunpack.c.h.b16 %v637
        %v1451 = vunpack.c.l.b16 %v638
        %v1452 = vunpack.c.h.b16 %v638
        %v1453 = vunpack.c.l.b16 %v639
        %v1454 = vunpack.c.h.b16 %v639
        %v1455 = vunpack.c.l.b16 %v640
        %v1456 = vunpack.c.h.b16 %v640
        %v1457 = vunpack.c.l.b16 %v641
        %v1458 = vunpack.c.h.b16 %v641
        %v1459 = vunpack.c.l.b16 %v642
        %v1460 = vunpack.c.h.b16 %v642
        %v1461 = vunpack.c.l.b16 %v643
        %v1462 = vunpack.c.h.b16 %v643
        %v1463 = vunpack.c.l.b16 %v644
        %v1464 = vunpack.c.h.b16 %v644
        %v1465 = vunpack.c.l.b16 %v645
        %v1466 = vunpack.c.h.b16 %v645
        %v1467 = vunpack.c.l.b16 %v646
        %v1468 = vunpack.c.h.b16 %v646
        %v1469 = vunpack.c.l.b16 %v647
        %v1470 = vunpack.c.h.b16 %v647
        %v1471 = vunpack.c.l.b16 %v648
        %v1472 = vunpack.c.h.b16 %v648
        %v1473 = vunpack.c.l.b16 %v649
        %v1474 = vunpack.c.h.b16 %v649
        %v1475 = vunpack.c.l.b16 %v650
        %v1476 = vunpack.c.h.b16 %v650
        %v1477 = vunpack.c.l.b16 %v651
        %v1478 = vunpack.c.h.b16 %v651
        %v1479 = vunpack.c.l.b16 %v652
        %v1480 = vunpack.c.h.b16 %v652
        %v1481 = vunpack.c.l.b16 %v653
        %v1482 = vunpack.c.h.b16 %v653
        %v1483 = vunpack.c.l.b16 %v654
        %v1484 = vunpack.c.h.b16 %v654
        %v1485 = vunpack.c.l.b16 %v655
        %v1486 = vunpack.c.h.b16 %v655
        %v1487 = vunpack.c.l.b16 %v656
        %v1488 = vunpack.c.h.b16 %v656
        %v1489 = vunpack.c.l.b16 %v657
        %v1490 = vunpack.c.h.b16 %v657
        %v1491 = vunpack.c.l.b16 %v658
        %v1492 = vunpack.c.h.b16 %v658
        %v1493 = vunpack.c.l.b16 %v659
        %v1494 = vunpack.c.h.b16 %v659
        %v1495 = vunpack.c.l.b16 %v660
        %v1496 = vunpack.c.h.b16 %v660
        %v1497 = vunpack.c.l.b16 %v661
        %v1498 = vunpack.c.h.b16 %v661
        %v1499 = vunpack.c.l.b16 %v662
        %v1500 = vunpack.c.h.b16 %v662
        %v1501 = vpack.c.b16 %v1121, %v1117
        %v1502 = vpack.c.b16 %v1122, %v1118
        %v1503 = vpack.c.b16 %v1123, %v1119
        %v1504 = vpack.c.b16 %v1124, %v1120
        %v1505 = vpack.c.b16 %v1129, %v1125
        %v1506 = vpack.c.b16 %v1130, %v1126
        %v1507 = vpack.c.b16 %v1131, %v1127
        %v1508 = vpack.c.b16 %v1132, %v1128
        %v1509 = vpack.c.b16 %v1137, %v1133
        %v1510 = vpack.c.b16 %v1138, %v1134
        %v1511 = vpack.c.b16 %v1139, %v1135
        %v1512 = vpack.c.b16 %v1140, %v1136
        %v1513 = vpack.c.b16 %v1145, %v1141
        %v1514 = vpack.c.b16 %v1146, %v1142
        %v1515 = vpack.c.b16 %v1147, %v1143
        %v1516 = vpack.c.b16 %v1148, %v1144
        %v1517 = vpack.c.b16 %v1153, %v1149
        %v1518 = vpack.c.b16 %v1154, %v1150
        %v1519 = vpack.c.b16 %v1155, %v1151
        %v1520 = vpack.c.b16 %v1156, %v1152
        %v1521 = vpack.c.b16 %v1161, %v1157
        %v1522 = vpack.c.b16 %v1162, %v1158
        %v1523 = vpack.c.b16 %v1163, %v1159
        %v1524 = vpack.c.b16 %v1164, %v1160
        %v1525 = vpack.c.b16 %v1169, %v1165
        %v1526 = vpack.c.b16 %v1170, %v1166
        %v1527 = vpack.c.b16 %v1171, %v1167
        %v1528 = vpack.c.b16 %v1172, %v1168
        %v1529 = vpack.c.b16 %v1177, %v1173
        %v1530 = vpack.c.b16 %v1178, %v1174
        %v1531 = vpack.c.b16 %v1179, %v1175
        %v1532 = vpack.c.b16 %v1180, %v1176
        %v1533 = vpack.c.b16 %v1185, %v1181
        %v1534 = vpack.c.b16 %v1186, %v1182
        %v1535 = vpack.c.b16 %v1187, %v1183
        %v1536 = vpack.c.b16 %v1188, %v1184
        %v1537 = vpack.c.b16 %v1193, %v1189
        %v1538 = vpack.c.b16 %v1194, %v1190
        %v1539 = vpack.c.b16 %v1195, %v1191
        %v1540 = vpack.c.b16 %v1196, %v1192
        %v1541 = vpack.c.b16 %v1201, %v1197
        %v1542 = vpack.c.b16 %v1202, %v1198
        %v1543 = vpack.c.b16 %v1203, %v1199
        %v1544 = vpack.c.b16 %v1204, %v1200
        %v1545 = vpack.c.b16 %v1209, %v1205
        %v1546 = vpack.c.b16 %v1210, %v1206
        %v1547 = vpack.c.b16 %v1211, %v1207
        %v1548 = vpack.c.b16 %v1212, %v1208
        %v1549 = vpack.c.b16 %v1217, %v1213
        %v1550 = vpack.c.b16 %v1218, %v1214
        %v1551 = vpack.c.b16 %v1219, %v1215
        %v1552 = vpack.c.b16 %v1220, %v1216
        %v1553 = vpack.c.b16 %v1225, %v1221
        %v1554 = vpack.c.b16 %v1226, %v1222
        %v1555 = vpack.c.b16 %v1227, %v1223
        %v1556 = vpack.c.b16 %v1228, %v1224
        %v1557 = vpack.c.b16 %v1233, %v1229
        %v1558 = vpack.c.b16 %v1234, %v1230
        %v1559 = vpack.c.b16 %v1235, %v1231
        %v1560 = vpack.c.b16 %v1236, %v1232
        %v1561 = vpack.c.b16 %v1241, %v1237
        %v1562 = vpack.c.b16 %v1242, %v1238
        %v1563 = vpack.c.b16 %v1243, %v1239
        %v1564 = vpack.c.b16 %v1244, %v1240
        %v1565 = vpack.c.b16 %v1249, %v1245
        %v1566 = vpack.c.b16 %v1250, %v1246
        %v1567 = vpack.c.b16 %v1251, %v1247
        %v1568 = vpack.c.b16 %v1252, %v1248
        %v1569 = vpack.c.b16 %v1257, %v1253
        %v1570 = vpack.c.b16 %v1258, %v1254
        %v1571 = vpack.c.b16 %v1259, %v1255
        %v1572 = vpack.c.b16 %v1260, %v1256
        %v1573 = vpack.c.b16 %v1265, %v1261
        %v1574 = vpack.c.b16 %v1266, %v1262
        %v1575 = vpack.c.b16 %v1267, %v1263
        %v1576 = vpack.c.b16 %v1268, %v1264
        %v1577 = vpack.c.b16 %v1273, %v1269
        %v1578 = vpack.c.b16 %v1274, %v1270
        %v1579 = vpack.c.b16 %v1275, %v1271
        %v1580 = vpack.c.b16 %v1276, %v1272
        %v1581 = vpack.c.b16 %v1281, %v1277
        %v1582 = vpack.c.b16 %v1282, %v1278
        %v1583 = vpack.c.b16 %v1283, %v1279
        %v1584 = vpack.c.b16 %v1284, %v1280
        %v1585 = vpack.c.b16 %v1289, %v1285
        %v1586 = vpack.c.b16 %v1290, %v1286
        %v1587 = vpack.c.b16 %v1291, %v1287
        %v1588 = vpack.c.b16 %v1292, %v1288
        %v1589 = vpack.c.b16 %v1297, %v1293
        %v1590 = vpack.c.b16 %v1298, %v1294
        %v1591 = vpack.c.b16 %v1299, %v1295
        %v1592 = vpack.c.b16 %v1300, %v1296
        %v1593 = vpack.c.b16 %v1305, %v1301
        %v1594 = vpack.c.b16 %v1306, %v1302
        %v1595 = vpack.c.b16 %v1307, %v1303
        %v1596 = vpack.c.b16 %v1308, %v1304
        %v1597 = vpack.c.b16 %v1313, %v1309
        %v1598 = vpack.c.b16 %v1314, %v1310
        %v1599 = vpack.c.b16 %v1315, %v1311
        %v1600 = vpack.c.b16 %v1316, %v1312
        %v1601 = vpack.c.b16 %v1321, %v1317
        %v1602 = vpack.c.b16 %v1322, %v1318
        %v1603 = vpack.c.b16 %v1323, %v1319
        %v1604 = vpack.c.b16 %v1324, %v1320
        %v1605 = vpack.c.b16 %v1329, %v1325
        %v1606 = vpack.c.b16 %v1330, %v1326
        %v1607 = vpack.c.b16 %v1331, %v1327
        %v1608 = vpack.c.b16 %v1332, %v1328
        %v1609 = vpack.c.b16 %v1337, %v1333
        %v1610 = vpack.c.b16 %v1338, %v1334
        %v1611 = vpack.c.b16 %v1339, %v1335
        %v1612 = vpack.c.b16 %v1340, %v1336
        %v1613 = vpack.c.b16 %v1345, %v1341
        %v1614 = vpack.c.b16 %v1346, %v1342
        %v1615 = vpack.c.b16 %v1347, %v1343
        %v1616 = vpack.c.b16 %v1348, %v1344
        %v1617 = vpack.c.b16 %v1353, %v1349
        %v1618 = vpack.c.b16 %v1354, %v1350
        %v1619 = vpack.c.b16 %v1355, %v1351
        %v1620 = vpack.c.b16 %v1356, %v1352
        %v1621 = vpack.c.b16 %v1361, %v1357
        %v1622 = vpack.c.b16 %v1362, %v1358
        %v1623 = vpack.c.b16 %v1363, %v1359
        %v1624 = vpack.c.b16 %v1364, %v1360
        %v1625 = vpack.c.b16 %v1369, %v1365
        %v1626 = vpack.c.b16 %v1370, %v1366
        %v1627 = vpack.c.b16 %v1371, %v1367
        %v1628 = vpack.c.b16 %v1372, %v1368
        %v1629 = vpack.c.b16 %v1377, %v1373
        %v1630 = vpack.c.b16 %v1378, %v1374
        %v1631 = vpack.c.b16 %v1379, %v1375
        %v1632 = vpack.c.b16 %v1380, %v1376
        %v1633 = vpack.c.b16 %v1385, %v1381
        %v1634 = vpack.c.b16 %v1386, %v1382
        %v1635 = vpack.c.b16 %v1387, %v1383
        %v1636 = vpack.c.b16 %v1388, %v1384
        %v1637 = vpack.c.b16 %v1393, %v1389
        %v1638 = vpack.c.b16 %v1394, %v1390
        %v1639 = vpack.c.b16 %v1395, %v1391
        %v1640 = vpack.c.b16 %v1396, %v1392
        %v1641 = vpack.c.b16 %v1401, %v1397
        %v1642 = vpack.c.b16 %v1402, %v1398
        %v1643 = vpack.c.b16 %v1403, %v1399
        %v1644 = vpack.c.b16 %v1404, %v1400
        %v1645 = vpack.c.b16 %v1409, %v1405
        %v1646 = vpack.c.b16 %v1410, %v1406
        %v1647 = vpack.c.b16 %v1411, %v1407
        %v1648 = vpack.c.b16 %v1412, %v1408
        %v1649 = vpack.c.b16 %v1417, %v1413
        %v1650 = vpack.c.b16 %v1418, %v1414
        %v1651 = vpack.c.b16 %v1419, %v1415
        %v1652 = vpack.c.b16 %v1420, %v1416
        %v1653 = vpack.c.b16 %v1425, %v1421
        %v1654 = vpack.c.b16 %v1426, %v1422
        %v1655 = vpack.c.b16 %v1427, %v1423
        %v1656 = vpack.c.b16 %v1428, %v1424
        %v1657 = vpack.c.b16 %v1433, %v1429
        %v1658 = vpack.c.b16 %v1434, %v1430
        %v1659 = vpack.c.b16 %v1435, %v1431
        %v1660 = vpack.c.b16 %v1436, %v1432
        %v1661 = vpack.c.b16 %v1441, %v1437
        %v1662 = vpack.c.b16 %v1442, %v1438
        %v1663 = vpack.c.b16 %v1443, %v1439
        %v1664 = vpack.c.b16 %v1444, %v1440
        %v1665 = vpack.c.b16 %v1449, %v1445
        %v1666 = vpack.c.b16 %v1450, %v1446
        %v1667 = vpack.c.b16 %v1451, %v1447
        %v1668 = vpack.c.b16 %v1452, %v1448
        %v1669 = vpack.c.b16 %v1457, %v1453
        %v1670 = vpack.c.b16 %v1458, %v1454
        %v1671 = vpack.c.b16 %v1459, %v1455
        %v1672 = vpack.c.b16 %v1460, %v1456
        %v1673 = vpack.c.b16 %v1465, %v1461
        %v1674 = vpack.c.b16 %v1466, %v1462
        %v1675 = vpack.c.b16 %v1467, %v1463
        %v1676 = vpack.c.b16 %v1468, %v1464
        %v1677 = vpack.c.b16 %v1473, %v1469
        %v1678 = vpack.c.b16 %v1474, %v1470
        %v1679 = vpack.c.b16 %v1475, %v1471
        %v1680 = vpack.c.b16 %v1476, %v1472
        %v1681 = vpack.c.b16 %v1481, %v1477
        %v1682 = vpack.c.b16 %v1482, %v1478
        %v1683 = vpack.c.b16 %v1483, %v1479
        %v1684 = vpack.c.b16 %v1484, %v1480
        %v1685 = vpack.c.b16 %v1489, %v1485
        %v1686 = vpack.c.b16 %v1490, %v1486
        %v1687 = vpack.c.b16 %v1491, %v1487
        %v1688 = vpack.c.b16 %v1492, %v1488
        %v1689 = vpack.c.b16 %v1497, %v1493
        %v1690 = vpack.c.b16 %v1498, %v1494
        %v1691 = vpack.c.b16 %v1499, %v1495
        %v1692 = vpack.c.b16 %v1500, %v1496
        %1885 = vmatprep.subr.bf16.mxu0 %v1502
        %1886 = vmatpush1.bf16.msra.mxu0 %v1501
        %1887 = vmatprep.subr.bf16.mxu0 %v1506
        %1888 = vmatpush1.bf16.msra.mxu0 %v1505
        %1889 = vmatprep.subr.bf16.mxu0 %v1510
        %1890 = vmatpush1.bf16.msra.mxu0 %v1509
        %1891 = vmatprep.subr.bf16.mxu0 %v1514
        %1892 = vmatpush1.bf16.msra.mxu0 %v1513
        %1893 = vmatprep.subr.bf16.mxu0 %v1518
        %1894 = vmatpush1.bf16.msra.mxu0 %v1517
        %1895 = vmatprep.subr.bf16.mxu0 %v1522
        %1896 = vmatpush1.bf16.msra.mxu0 %v1521
        %1897 = vmatprep.subr.bf16.mxu0 %v1526
        %1898 = vmatpush1.bf16.msra.mxu0 %v1525
        %1899 = vmatprep.subr.bf16.mxu0 %v1530
        %1900 = vmatpush1.bf16.msra.mxu0 %v1529
        %1901 = vmatprep.subr.bf16.mxu0 %v1534
        %1902 = vmatpush1.bf16.msra.mxu0 %v1533
        %1903 = vmatprep.subr.bf16.mxu0 %v1538
        %1904 = vmatpush1.bf16.msra.mxu0 %v1537
        %1905 = vmatprep.subr.bf16.mxu0 %v1542
        %1906 = vmatpush1.bf16.msra.mxu0 %v1541
        %1907 = vmatprep.subr.bf16.mxu0 %v1546
        %1908 = vmatpush1.bf16.msra.mxu0 %v1545
        %1909 = vmatprep.subr.bf16.mxu0 %v1550
        %1910 = vmatpush1.bf16.msra.mxu0 %v1549
        %1911 = vmatprep.subr.bf16.mxu0 %v1554
        %1912 = vmatpush1.bf16.msra.mxu0 %v1553
        %1913 = vmatprep.subr.bf16.mxu0 %v1558
        %1914 = vmatpush1.bf16.msra.mxu0 %v1557
        %1915 = vmatprep.subr.bf16.mxu0 %v1562
        %1916 = vmatpush1.bf16.msra.mxu0 %v1561
        %1917 = vmatprep.mubr.bf16.mxu0 %v830
        %1918 = vmatmul.mubr.bf16.gmra.mrb[0].mxu0 %v829
        %v1919 = vpop.f32.mrb[0].mxu0
        %v1920 = vadd.f32 %v668, %v1919
        %v1921 = vpop.f32.mrb[0].mxu0
        %v1922 = vadd.f32 %v672, %v1921
        %v1923 = vpop.f32.mrb[0].mxu0
        %v1924 = vadd.f32 %v668, %v1923
        %v1925 = vpop.f32.mrb[0].mxu0
        %v1926 = vadd.f32 %v672, %v1925
        %1927 = vmatprep.mubr.bf16.mxu0 %v836
        %1928 = vmatmul.mubr.bf16.gmra.mrb[0].mxu0 %v835
        %v1929 = vpop.f32.mrb[0].mxu0
        %v1930 = vadd.f32 %v668, %v1929
        %v1931 = vpop.f32.mrb[0].mxu0
        %v1932 = vadd.f32 %v672, %v1931
        %v1933 = vpop.f32.mrb[0].mxu0
        %v1934 = vadd.f32 %v668, %v1933
        %v1935 = vpop.f32.mrb[0].mxu0
        %v1936 = vadd.f32 %v672, %v1935
        %1937 = vmatprep.mubr.bf16.mxu0 %v842
        %1938 = vmatmul.mubr.bf16.gmra.mrb[0].mxu0 %v841
        %v1939 = vpop.f32.mrb[0].mxu0
        %v1940 = vadd.f32 %v668, %v1939
        %v1941 = vpop.f32.mrb[0].mxu0
        %v1942 = vadd.f32 %v672, %v1941
        %v1943 = vpop.f32.mrb[0].mxu0
        %v1944 = vadd.f32 %v668, %v1943
        %v1945 = vpop.f32.mrb[0].mxu0
        %v1946 = vadd.f32 %v672, %v1945
        %1947 = vmatprep.mubr.bf16.mxu0 %v848
        %1948 = vmatmul.mubr.bf16.gmra.mrb[0].mxu0 %v847
        %v1949 = vpop.f32.mrb[0].mxu0
        %v1950 = vadd.f32 %v668, %v1949
        %v1951 = vpop.f32.mrb[0].mxu0
        %v1952 = vadd.f32 %v672, %v1951
        %v1953 = vpop.f32.mrb[0].mxu0
        %v1954 = vadd.f32 %v668, %v1953
        %v1955 = vpop.f32.mrb[0].mxu0
        %v1956 = vadd.f32 %v672, %v1955
        %1957 = vmatprep.mubr.bf16.mxu0 %v854
        %1958 = vmatmul.mubr.bf16.gmra.mrb[0].mxu0 %v853
        %v1959 = vpop.f32.mrb[0].mxu0
        %v1960 = vadd.f32 %v668, %v1959
        %v1961 = vpop.f32.mrb[0].mxu0
        %v1962 = vadd.f32 %v672, %v1961
        %v1963 = vpop.f32.mrb[0].mxu0
        %v1964 = vadd.f32 %v668, %v1963
        %v1965 = vpop.f32.mrb[0].mxu0
        %v1966 = vadd.f32 %v672, %v1965
        %1967 = vmatprep.mubr.bf16.mxu0 %v860
        %1968 = vmatmul.mubr.bf16.gmra.mrb[0].mxu0 %v859
        %v1969 = vpop.f32.mrb[0].mxu0
        %v1970 = vadd.f32 %v668, %v1969
        %v1971 = vpop.f32.mrb[0].mxu0
        %v1972 = vadd.f32 %v672, %v1971
        %v1973 = vpop.f32.mrb[0].mxu0
        %v1974 = vadd.f32 %v668, %v1973
        %v1975 = vpop.f32.mrb[0].mxu0
        %v1976 = vadd.f32 %v672, %v1975
        %1977 = vmatprep.mubr.bf16.mxu0 %v866
        %1978 = vmatmul.mubr.bf16.gmra.mrb[0].mxu0 %v865
        %v1979 = vpop.f32.mrb[0].mxu0
        %v1980 = vadd.f32 %v668, %v1979
        %v1981 = vpop.f32.mrb[0].mxu0
        %v1982 = vadd.f32 %v672, %v1981
        %v1983 = vpop.f32.mrb[0].mxu0
        %v1984 = vadd.f32 %v668, %v1983
        %v1985 = vpop.f32.mrb[0].mxu0
        %v1986 = vadd.f32 %v672, %v1985
        %1987 = vmatprep.mubr.bf16.mxu0 %v872
        %1988 = vmatmul.mubr.bf16.gmra.mrb[0].mxu0 %v871
        %v1989 = vpop.f32.mrb[0].mxu0
        %v1990 = vadd.f32 %v668, %v1989
        %v1991 = vpop.f32.mrb[0].mxu0
        %v1992 = vadd.f32 %v672, %v1991
        %v1993 = vpop.f32.mrb[0].mxu0
        %v1994 = vadd.f32 %v668, %v1993
        %v1995 = vpop.f32.mrb[0].mxu0
        %v1996 = vadd.f32 %v672, %v1995
        %1997 = vdwg.mxu0
        %1998 = vmatprep.subr.bf16.mxu0 %v1566
        %1999 = vmatpush1.bf16.msra.mxu0 %v1565
        %2000 = vmatprep.subr.bf16.mxu0 %v1570
        %2001 = vmatpush1.bf16.msra.mxu0 %v1569
        %2002 = vmatprep.subr.bf16.mxu0 %v1574
        %2003 = vmatpush1.bf16.msra.mxu0 %v1573
        %2004 = vmatprep.subr.bf16.mxu0 %v1578
        %2005 = vmatpush1.bf16.msra.mxu0 %v1577
        %2006 = vmatprep.subr.bf16.mxu0 %v1582
        %2007 = vmatpush1.bf16.msra.mxu0 %v1581
        %2008 = vmatprep.subr.bf16.mxu0 %v1586
        %2009 = vmatpush1.bf16.msra.mxu0 %v1585
        %2010 = vmatprep.subr.bf16.mxu0 %v1590
        %2011 = vmatpush1.bf16.msra.mxu0 %v1589
        %2012 = vmatprep.subr.bf16.mxu0 %v1594
        %2013 = vmatpush1.bf16.msra.mxu0 %v1593
        %2014 = vmatprep.subr.bf16.mxu0 %v1598
        %2015 = vmatpush1.bf16.msra.mxu0 %v1597
        %2016 = vmatprep.subr.bf16.mxu0 %v1602
        %2017 = vmatpush1.bf16.msra.mxu0 %v1601
        %2018 = vmatprep.subr.bf16.mxu0 %v1606
        %2019 = vmatpush1.bf16.msra.mxu0 %v1605
        %2020 = vmatprep.subr.bf16.mxu0 %v1610
        %2021 = vmatpush1.bf16.msra.mxu0 %v1609
        %2022 = vmatprep.subr.bf16.mxu0 %v1614
        %2023 = vmatpush1.bf16.msra.mxu0 %v1613
        %2024 = vmatprep.subr.bf16.mxu0 %v1618
        %2025 = vmatpush1.bf16.msra.mxu0 %v1617
        %2026 = vmatprep.subr.bf16.mxu0 %v1622
        %2027 = vmatpush1.bf16.msra.mxu0 %v1621
        %2028 = vmatprep.subr.bf16.mxu0 %v1626
        %2029 = vmatpush1.bf16.msra.mxu0 %v1625
        %2030 = vmatprep.mubr.bf16.mxu0 %v832
        %2031 = vmatmul.mubr.bf16.gmra.mrb[0].mxu0 %v831
        %v2032 = vpop.f32.mrb[0].mxu0
        %v2033 = vadd.f32 %v1920, %v2032
        %v2034 = vpop.f32.mrb[0].mxu0
        %v2035 = vadd.f32 %v1922, %v2034
        %v2036 = vpop.f32.mrb[0].mxu0
        %v2037 = vadd.f32 %v1924, %v2036
        %v2038 = vpop.f32.mrb[0].mxu0
        %v2039 = vadd.f32 %v1926, %v2038
        %2040 = vmatprep.mubr.bf16.mxu0 %v838
        %2041 = vmatmul.mubr.bf16.gmra.mrb[0].mxu0 %v837
        %v2042 = vpop.f32.mrb[0].mxu0
        %v2043 = vadd.f32 %v1930, %v2042
        %v2044 = vpop.f32.mrb[0].mxu0
        %v2045 = vadd.f32 %v1932, %v2044
        %v2046 = vpop.f32.mrb[0].mxu0
        %v2047 = vadd.f32 %v1934, %v2046
        %v2048 = vpop.f32.mrb[0].mxu0
        %v2049 = vadd.f32 %v1936, %v2048
        %2050 = vmatprep.mubr.bf16.mxu0 %v844
        %2051 = vmatmul.mubr.bf16.gmra.mrb[0].mxu0 %v843
        %v2052 = vpop.f32.mrb[0].mxu0
        %v2053 = vadd.f32 %v1940, %v2052
        %v2054 = vpop.f32.mrb[0].mxu0
        %v2055 = vadd.f32 %v1942, %v2054
        %v2056 = vpop.f32.mrb[0].mxu0
        %v2057 = vadd.f32 %v1944, %v2056
        %v2058 = vpop.f32.mrb[0].mxu0
        %v2059 = vadd.f32 %v1946, %v2058
        %2060 = vmatprep.mubr.bf16.mxu0 %v850
        %2061 = vmatmul.mubr.bf16.gmra.mrb[0].mxu0 %v849
        %v2062 = vpop.f32.mrb[0].mxu0
        %v2063 = vadd.f32 %v1950, %v2062
        %v2064 = vpop.f32.mrb[0].mxu0
        %v2065 = vadd.f32 %v1952, %v2064
        %v2066 = vpop.f32.mrb[0].mxu0
        %v2067 = vadd.f32 %v1954, %v2066
        %v2068 = vpop.f32.mrb[0].mxu0
        %v2069 = vadd.f32 %v1956, %v2068
        %2070 = vmatprep.mubr.bf16.mxu0 %v856
        %2071 = vmatmul.mubr.bf16.gmra.mrb[0].mxu0 %v855
        %v2072 = vpop.f32.mrb[0].mxu0
        %v2073 = vadd.f32 %v1960, %v2072
        %v2074 = vpop.f32.mrb[0].mxu0
        %v2075 = vadd.f32 %v1962, %v2074
        %v2076 = vpop.f32.mrb[0].mxu0
        %v2077 = vadd.f32 %v1964, %v2076
        %v2078 = vpop.f32.mrb[0].mxu0
        %v2079 = vadd.f32 %v1966, %v2078
        %2080 = vmatprep.mubr.bf16.mxu0 %v862
        %2081 = vmatmul.mubr.bf16.gmra.mrb[0].mxu0 %v861
        %v2082 = vpop.f32.mrb[0].mxu0
        %v2083 = vadd.f32 %v1970, %v2082
        %v2084 = vpop.f32.mrb[0].mxu0
        %v2085 = vadd.f32 %v1972, %v2084
        %v2086 = vpop.f32.mrb[0].mxu0
        %v2087 = vadd.f32 %v1974, %v2086
        %v2088 = vpop.f32.mrb[0].mxu0
        %v2089 = vadd.f32 %v1976, %v2088
        %2090 = vmatprep.mubr.bf16.mxu0 %v868
        %2091 = vmatmul.mubr.bf16.gmra.mrb[0].mxu0 %v867
        %v2092 = vpop.f32.mrb[0].mxu0
        %v2093 = vadd.f32 %v1980, %v2092
        %v2094 = vpop.f32.mrb[0].mxu0
        %v2095 = vadd.f32 %v1982, %v2094
        %v2096 = vpop.f32.mrb[0].mxu0
        %v2097 = vadd.f32 %v1984, %v2096
        %v2098 = vpop.f32.mrb[0].mxu0
        %v2099 = vadd.f32 %v1986, %v2098
        %2100 = vmatprep.mubr.bf16.mxu0 %v874
        %2101 = vmatmul.mubr.bf16.gmra.mrb[0].mxu0 %v873
        %v2102 = vpop.f32.mrb[0].mxu0
        %v2103 = vadd.f32 %v1990, %v2102
        %v2104 = vpop.f32.mrb[0].mxu0
        %v2105 = vadd.f32 %v1992, %v2104
        %v2106 = vpop.f32.mrb[0].mxu0
        %v2107 = vadd.f32 %v1994, %v2106
        %v2108 = vpop.f32.mrb[0].mxu0
        %v2109 = vadd.f32 %v1996, %v2108
        %2110 = vdwg.mxu0
        %2111 = vmatprep.subr.bf16.mxu0 %v1630
        %2112 = vmatpush1.bf16.msra.mxu0 %v1629
        %2113 = vmatprep.subr.bf16.mxu0 %v1634
        %2114 = vmatpush1.bf16.msra.mxu0 %v1633
        %2115 = vmatprep.subr.bf16.mxu0 %v1638
        %2116 = vmatpush1.bf16.msra.mxu0 %v1637
        %2117 = vmatprep.subr.bf16.mxu0 %v1642
        %2118 = vmatpush1.bf16.msra.mxu0 %v1641
        %2119 = vmatprep.subr.bf16.mxu0 %v1646
        %2120 = vmatpush1.bf16.msra.mxu0 %v1645
        %2121 = vmatprep.subr.bf16.mxu0 %v1650
        %2122 = vmatpush1.bf16.msra.mxu0 %v1649
        %2123 = vmatprep.subr.bf16.mxu0 %v1654
        %2124 = vmatpush1.bf16.msra.mxu0 %v1653
        %2125 = vmatprep.subr.bf16.mxu0 %v1658
        %2126 = vmatpush1.bf16.msra.mxu0 %v1657
        %2127 = vmatprep.subr.bf16.mxu0 %v1662
        %2128 = vmatpush1.bf16.msra.mxu0 %v1661
        %2129 = vmatprep.subr.bf16.mxu0 %v1666
        %2130 = vmatpush1.bf16.msra.mxu0 %v1665
        %2131 = vmatprep.subr.bf16.mxu0 %v1670
        %2132 = vmatpush1.bf16.msra.mxu0 %v1669
        %2133 = vmatprep.subr.bf16.mxu0 %v1674
        %2134 = vmatpush1.bf16.msra.mxu0 %v1673
        %2135 = vmatprep.subr.bf16.mxu0 %v1678
        %2136 = vmatpush1.bf16.msra.mxu0 %v1677
        %2137 = vmatprep.subr.bf16.mxu0 %v1682
        %2138 = vmatpush1.bf16.msra.mxu0 %v1681
        %2139 = vmatprep.subr.bf16.mxu0 %v1686
        %2140 = vmatpush1.bf16.msra.mxu0 %v1685
        %2141 = vmatprep.subr.bf16.mxu0 %v1690
        %2142 = vmatpush1.bf16.msra.mxu0 %v1689
        %2143 = vmatprep.mubr.bf16.mxu0 %v834
        %2144 = vmatmul.mubr.bf16.gmra.mrb[0].mxu0 %v833
        %v2145 = vpop.f32.mrb[0].mxu0
        %v2146 = vadd.f32 %v2033, %v2145
        %v2147 = vpop.f32.mrb[0].mxu0
        %v2148 = vadd.f32 %v2035, %v2147
        %v2149 = vpop.f32.mrb[0].mxu0
        %v2150 = vadd.f32 %v2037, %v2149
        %v2151 = vpop.f32.mrb[0].mxu0
        %v2152 = vadd.f32 %v2039, %v2151
        %2153 = vmatprep.mubr.bf16.mxu0 %v840
        %2154 = vmatmul.mubr.bf16.gmra.mrb[0].mxu0 %v839
        %v2155 = vpop.f32.mrb[0].mxu0
        %v2156 = vadd.f32 %v2043, %v2155
        %v2157 = vpop.f32.mrb[0].mxu0
        %v2158 = vadd.f32 %v2045, %v2157
        %v2159 = vpop.f32.mrb[0].mxu0
        %v2160 = vadd.f32 %v2047, %v2159
        %v2161 = vpop.f32.mrb[0].mxu0
        %v2162 = vadd.f32 %v2049, %v2161
        %2163 = vmatprep.mubr.bf16.mxu0 %v846
        %2164 = vmatmul.mubr.bf16.gmra.mrb[0].mxu0 %v845
        %v2165 = vpop.f32.mrb[0].mxu0
        %v2166 = vadd.f32 %v2053, %v2165
        %v2167 = vpop.f32.mrb[0].mxu0
        %v2168 = vadd.f32 %v2055, %v2167
        %v2169 = vpop.f32.mrb[0].mxu0
        %v2170 = vadd.f32 %v2057, %v2169
        %v2171 = vpop.f32.mrb[0].mxu0
        %v2172 = vadd.f32 %v2059, %v2171
        %2173 = vmatprep.mubr.bf16.mxu0 %v852
        %2174 = vmatmul.mubr.bf16.gmra.mrb[0].mxu0 %v851
        %v2175 = vpop.f32.mrb[0].mxu0
        %v2176 = vadd.f32 %v2063, %v2175
        %v2177 = vpop.f32.mrb[0].mxu0
        %v2178 = vadd.f32 %v2065, %v2177
        %v2179 = vpop.f32.mrb[0].mxu0
        %v2180 = vadd.f32 %v2067, %v2179
        %v2181 = vpop.f32.mrb[0].mxu0
        %v2182 = vadd.f32 %v2069, %v2181
        %2183 = vmatprep.mubr.bf16.mxu0 %v858
        %2184 = vmatmul.mubr.bf16.gmra.mrb[0].mxu0 %v857
        %v2185 = vpop.f32.mrb[0].mxu0
        %v2186 = vadd.f32 %v2073, %v2185
        %v2187 = vpop.f32.mrb[0].mxu0
        %v2188 = vadd.f32 %v2075, %v2187
        %v2189 = vpop.f32.mrb[0].mxu0
        %v2190 = vadd.f32 %v2077, %v2189
        %v2191 = vpop.f32.mrb[0].mxu0
        %v2192 = vadd.f32 %v2079, %v2191
        %2193 = vmatprep.mubr.bf16.mxu0 %v864
        %2194 = vmatmul.mubr.bf16.gmra.mrb[0].mxu0 %v863
        %v2195 = vpop.f32.mrb[0].mxu0
        %v2196 = vadd.f32 %v2083, %v2195
        %v2197 = vpop.f32.mrb[0].mxu0
        %v2198 = vadd.f32 %v2085, %v2197
        %v2199 = vpop.f32.mrb[0].mxu0
        %v2200 = vadd.f32 %v2087, %v2199
        %v2201 = vpop.f32.mrb[0].mxu0
        %v2202 = vadd.f32 %v2089, %v2201
        %2203 = vmatprep.mubr.bf16.mxu0 %v870
        %2204 = vmatmul.mubr.bf16.gmra.mrb[0].mxu0 %v869
        %v2205 = vpop.f32.mrb[0].mxu0
        %v2206 = vadd.f32 %v2093, %v2205
        %v2207 = vpop.f32.mrb[0].mxu0
        %v2208 = vadd.f32 %v2095, %v2207
        %v2209 = vpop.f32.mrb[0].mxu0
        %v2210 = vadd.f32 %v2097, %v2209
        %v2211 = vpop.f32.mrb[0].mxu0
        %v2212 = vadd.f32 %v2099, %v2211
        %2213 = vmatprep.mubr.bf16.mxu0 %v876
        %2214 = vmatmul.mubr.bf16.gmra.mrb[0].mxu0 %v875
        %v2215 = vpop.f32.mrb[0].mxu0
        %v2216 = vadd.f32 %v2103, %v2215
        %v2217 = vpop.f32.mrb[0].mxu0
        %v2218 = vadd.f32 %v2105, %v2217
        %v2219 = vpop.f32.mrb[0].mxu0
        %v2220 = vadd.f32 %v2107, %v2219
        %v2221 = vpop.f32.mrb[0].mxu0
        %v2222 = vadd.f32 %v2109, %v2221
        %2223 = vdwg.mxu0
        %2224 = vmatprep.subr.bf16.mxu0 %v1504
        %2225 = vmatpush1.bf16.msra.mxu0 %v1503
        %2226 = vmatprep.subr.bf16.mxu0 %v1508
        %2227 = vmatpush1.bf16.msra.mxu0 %v1507
        %2228 = vmatprep.subr.bf16.mxu0 %v1512
        %2229 = vmatpush1.bf16.msra.mxu0 %v1511
        %2230 = vmatprep.subr.bf16.mxu0 %v1516
        %2231 = vmatpush1.bf16.msra.mxu0 %v1515
        %2232 = vmatprep.subr.bf16.mxu0 %v1520
        %2233 = vmatpush1.bf16.msra.mxu0 %v1519
        %2234 = vmatprep.subr.bf16.mxu0 %v1524
        %2235 = vmatpush1.bf16.msra.mxu0 %v1523
        %2236 = vmatprep.subr.bf16.mxu0 %v1528
        %2237 = vmatpush1.bf16.msra.mxu0 %v1527
        %2238 = vmatprep.subr.bf16.mxu0 %v1532
        %2239 = vmatpush1.bf16.msra.mxu0 %v1531
        %2240 = vmatprep.subr.bf16.mxu0 %v1536
        %2241 = vmatpush1.bf16.msra.mxu0 %v1535
        %2242 = vmatprep.subr.bf16.mxu0 %v1540
        %2243 = vmatpush1.bf16.msra.mxu0 %v1539
        %2244 = vmatprep.subr.bf16.mxu0 %v1544
        %2245 = vmatpush1.bf16.msra.mxu0 %v1543
        %2246 = vmatprep.subr.bf16.mxu0 %v1548
        %2247 = vmatpush1.bf16.msra.mxu0 %v1547
        %2248 = vmatprep.subr.bf16.mxu0 %v1552
        %2249 = vmatpush1.bf16.msra.mxu0 %v1551
        %2250 = vmatprep.subr.bf16.mxu0 %v1556
        %2251 = vmatpush1.bf16.msra.mxu0 %v1555
        %2252 = vmatprep.subr.bf16.mxu0 %v1560
        %2253 = vmatpush1.bf16.msra.mxu0 %v1559
        %2254 = vmatprep.subr.bf16.mxu0 %v1564
        %2255 = vmatpush1.bf16.msra.mxu0 %v1563
        %2256 = vmatprep.mubr.bf16.mxu0 %v830
        %2257 = vmatmul.mubr.bf16.gmra.mrb[0].mxu0 %v829
        %v2258 = vpop.f32.mrb[0].mxu0
        %v2259 = vadd.f32 %v676, %v2258
        %v2260 = vpop.f32.mrb[0].mxu0
        %v2261 = vadd.f32 %v680, %v2260
        %v2262 = vpop.f32.mrb[0].mxu0
        %v2263 = vadd.f32 %v676, %v2262
        %v2264 = vpop.f32.mrb[0].mxu0
        %v2265 = vadd.f32 %v680, %v2264
        %2266 = vmatprep.mubr.bf16.mxu0 %v836
        %2267 = vmatmul.mubr.bf16.gmra.mrb[0].mxu0 %v835
        %v2268 = vpop.f32.mrb[0].mxu0
        %v2269 = vadd.f32 %v676, %v2268
        %v2270 = vpop.f32.mrb[0].mxu0
        %v2271 = vadd.f32 %v680, %v2270
        %v2272 = vpop.f32.mrb[0].mxu0
        %v2273 = vadd.f32 %v676, %v2272
        %v2274 = vpop.f32.mrb[0].mxu0
        %v2275 = vadd.f32 %v680, %v2274
        %2276 = vmatprep.mubr.bf16.mxu0 %v842
        %2277 = vmatmul.mubr.bf16.gmra.mrb[0].mxu0 %v841
        %v2278 = vpop.f32.mrb[0].mxu0
        %v2279 = vadd.f32 %v676, %v2278
        %v2280 = vpop.f32.mrb[0].mxu0
        %v2281 = vadd.f32 %v680, %v2280
        %v2282 = vpop.f32.mrb[0].mxu0
        %v2283 = vadd.f32 %v676, %v2282
        %v2284 = vpop.f32.mrb[0].mxu0
        %v2285 = vadd.f32 %v680, %v2284
        %2286 = vmatprep.mubr.bf16.mxu0 %v848
        %2287 = vmatmul.mubr.bf16.gmra.mrb[0].mxu0 %v847
        %v2288 = vpop.f32.mrb[0].mxu0
        %v2289 = vadd.f32 %v676, %v2288
        %v2290 = vpop.f32.mrb[0].mxu0
        %v2291 = vadd.f32 %v680, %v2290
        %v2292 = vpop.f32.mrb[0].mxu0
        %v2293 = vadd.f32 %v676, %v2292
        %v2294 = vpop.f32.mrb[0].mxu0
        %v2295 = vadd.f32 %v680, %v2294
        %2296 = vmatprep.mubr.bf16.mxu0 %v854
        %2297 = vmatmul.mubr.bf16.gmra.mrb[0].mxu0 %v853
        %v2298 = vpop.f32.mrb[0].mxu0
        %v2299 = vadd.f32 %v676, %v2298
        %v2300 = vpop.f32.mrb[0].mxu0
        %v2301 = vadd.f32 %v680, %v2300
        %v2302 = vpop.f32.mrb[0].mxu0
        %v2303 = vadd.f32 %v676, %v2302
        %v2304 = vpop.f32.mrb[0].mxu0
        %v2305 = vadd.f32 %v680, %v2304
        %2306 = vmatprep.mubr.bf16.mxu0 %v860
        %2307 = vmatmul.mubr.bf16.gmra.mrb[0].mxu0 %v859
        %v2308 = vpop.f32.mrb[0].mxu0
        %v2309 = vadd.f32 %v676, %v2308
        %v2310 = vpop.f32.mrb[0].mxu0
        %v2311 = vadd.f32 %v680, %v2310
        %v2312 = vpop.f32.mrb[0].mxu0
        %v2313 = vadd.f32 %v676, %v2312
        %v2314 = vpop.f32.mrb[0].mxu0
        %v2315 = vadd.f32 %v680, %v2314
        %2316 = vmatprep.mubr.bf16.mxu0 %v866
        %2317 = vmatmul.mubr.bf16.gmra.mrb[0].mxu0 %v865
        %v2318 = vpop.f32.mrb[0].mxu0
        %v2319 = vadd.f32 %v676, %v2318
        %v2320 = vpop.f32.mrb[0].mxu0
        %v2321 = vadd.f32 %v680, %v2320
        %v2322 = vpop.f32.mrb[0].mxu0
        %v2323 = vadd.f32 %v676, %v2322
        %v2324 = vpop.f32.mrb[0].mxu0
        %v2325 = vadd.f32 %v680, %v2324
        %2326 = vmatprep.mubr.bf16.mxu0 %v872
        %2327 = vmatmul.mubr.bf16.gmra.mrb[0].mxu0 %v871
        %v2328 = vpop.f32.mrb[0].mxu0
        %v2329 = vadd.f32 %v676, %v2328
        %v2330 = vpop.f32.mrb[0].mxu0
        %v2331 = vadd.f32 %v680, %v2330
        %v2332 = vpop.f32.mrb[0].mxu0
        %v2333 = vadd.f32 %v676, %v2332
        %v2334 = vpop.f32.mrb[0].mxu0
        %v2335 = vadd.f32 %v680, %v2334
        %2336 = vdwg.mxu0
        %2337 = vmatprep.subr.bf16.mxu0 %v1568
        %2338 = vmatpush1.bf16.msra.mxu0 %v1567
        %2339 = vmatprep.subr.bf16.mxu0 %v1572
        %2340 = vmatpush1.bf16.msra.mxu0 %v1571
        %2341 = vmatprep.subr.bf16.mxu0 %v1576
        %2342 = vmatpush1.bf16.msra.mxu0 %v1575
        %2343 = vmatprep.subr.bf16.mxu0 %v1580
        %2344 = vmatpush1.bf16.msra.mxu0 %v1579
        %2345 = vmatprep.subr.bf16.mxu0 %v1584
        %2346 = vmatpush1.bf16.msra.mxu0 %v1583
        %2347 = vmatprep.subr.bf16.mxu0 %v1588
        %2348 = vmatpush1.bf16.msra.mxu0 %v1587
        %2349 = vmatprep.subr.bf16.mxu0 %v1592
        %2350 = vmatpush1.bf16.msra.mxu0 %v1591
        %2351 = vmatprep.subr.bf16.mxu0 %v1596
        %2352 = vmatpush1.bf16.msra.mxu0 %v1595
        %2353 = vmatprep.subr.bf16.mxu0 %v1600
        %2354 = vmatpush1.bf16.msra.mxu0 %v1599
        %2355 = vmatprep.subr.bf16.mxu0 %v1604
        %2356 = vmatpush1.bf16.msra.mxu0 %v1603
        %2357 = vmatprep.subr.bf16.mxu0 %v1608
        %2358 = vmatpush1.bf16.msra.mxu0 %v1607
        %2359 = vmatprep.subr.bf16.mxu0 %v1612
        %2360 = vmatpush1.bf16.msra.mxu0 %v1611
        %2361 = vmatprep.subr.bf16.mxu0 %v1616
        %2362 = vmatpush1.bf16.msra.mxu0 %v1615
        %2363 = vmatprep.subr.bf16.mxu0 %v1620
        %2364 = vmatpush1.bf16.msra.mxu0 %v1619
        %2365 = vmatprep.subr.bf16.mxu0 %v1624
        %2366 = vmatpush1.bf16.msra.mxu0 %v1623
        %2367 = vmatprep.subr.bf16.mxu0 %v1628
        %2368 = vmatpush1.bf16.msra.mxu0 %v1627
        %2369 = vmatprep.mubr.bf16.mxu0 %v832
        %2370 = vmatmul.mubr.bf16.gmra.mrb[0].mxu0 %v831
        %v2371 = vpop.f32.mrb[0].mxu0
        %v2372 = vadd.f32 %v2259, %v2371
        %v2373 = vpop.f32.mrb[0].mxu0
        %v2374 = vadd.f32 %v2261, %v2373
        %v2375 = vpop.f32.mrb[0].mxu0
        %v2376 = vadd.f32 %v2263, %v2375
        %v2377 = vpop.f32.mrb[0].mxu0
        %v2378 = vadd.f32 %v2265, %v2377
        %2379 = vmatprep.mubr.bf16.mxu0 %v838
        %2380 = vmatmul.mubr.bf16.gmra.mrb[0].mxu0 %v837
        %v2381 = vpop.f32.mrb[0].mxu0
        %v2382 = vadd.f32 %v2269, %v2381
        %v2383 = vpop.f32.mrb[0].mxu0
        %v2384 = vadd.f32 %v2271, %v2383
        %v2385 = vpop.f32.mrb[0].mxu0
        %v2386 = vadd.f32 %v2273, %v2385
        %v2387 = vpop.f32.mrb[0].mxu0
        %v2388 = vadd.f32 %v2275, %v2387
        %2389 = vmatprep.mubr.bf16.mxu0 %v844
        %2390 = vmatmul.mubr.bf16.gmra.mrb[0].mxu0 %v843
        %v2391 = vpop.f32.mrb[0].mxu0
        %v2392 = vadd.f32 %v2279, %v2391
        %v2393 = vpop.f32.mrb[0].mxu0
        %v2394 = vadd.f32 %v2281, %v2393
        %v2395 = vpop.f32.mrb[0].mxu0
        %v2396 = vadd.f32 %v2283, %v2395
        %v2397 = vpop.f32.mrb[0].mxu0
        %v2398 = vadd.f32 %v2285, %v2397
        %2399 = vmatprep.mubr.bf16.mxu0 %v850
        %2400 = vmatmul.mubr.bf16.gmra.mrb[0].mxu0 %v849
        %v2401 = vpop.f32.mrb[0].mxu0
        %v2402 = vadd.f32 %v2289, %v2401
        %v2403 = vpop.f32.mrb[0].mxu0
        %v2404 = vadd.f32 %v2291, %v2403
        %v2405 = vpop.f32.mrb[0].mxu0
        %v2406 = vadd.f32 %v2293, %v2405
        %v2407 = vpop.f32.mrb[0].mxu0
        %v2408 = vadd.f32 %v2295, %v2407
        %2409 = vmatprep.mubr.bf16.mxu0 %v856
        %2410 = vmatmul.mubr.bf16.gmra.mrb[0].mxu0 %v855
        %v2411 = vpop.f32.mrb[0].mxu0
        %v2412 = vadd.f32 %v2299, %v2411
        %v2413 = vpop.f32.mrb[0].mxu0
        %v2414 = vadd.f32 %v2301, %v2413
        %v2415 = vpop.f32.mrb[0].mxu0
        %v2416 = vadd.f32 %v2303, %v2415
        %v2417 = vpop.f32.mrb[0].mxu0
        %v2418 = vadd.f32 %v2305, %v2417
        %2419 = vmatprep.mubr.bf16.mxu0 %v862
        %2420 = vmatmul.mubr.bf16.gmra.mrb[0].mxu0 %v861
        %v2421 = vpop.f32.mrb[0].mxu0
        %v2422 = vadd.f32 %v2309, %v2421
        %v2423 = vpop.f32.mrb[0].mxu0
        %v2424 = vadd.f32 %v2311, %v2423
        %v2425 = vpop.f32.mrb[0].mxu0
        %v2426 = vadd.f32 %v2313, %v2425
        %v2427 = vpop.f32.mrb[0].mxu0
        %v2428 = vadd.f32 %v2315, %v2427
        %2429 = vmatprep.mubr.bf16.mxu0 %v868
        %2430 = vmatmul.mubr.bf16.gmra.mrb[0].mxu0 %v867
        %v2431 = vpop.f32.mrb[0].mxu0
        %v2432 = vadd.f32 %v2319, %v2431
        %v2433 = vpop.f32.mrb[0].mxu0
        %v2434 = vadd.f32 %v2321, %v2433
        %v2435 = vpop.f32.mrb[0].mxu0
        %v2436 = vadd.f32 %v2323, %v2435
        %v2437 = vpop.f32.mrb[0].mxu0
        %v2438 = vadd.f32 %v2325, %v2437
        %2439 = vmatprep.mubr.bf16.mxu0 %v874
        %2440 = vmatmul.mubr.bf16.gmra.mrb[0].mxu0 %v873
        %v2441 = vpop.f32.mrb[0].mxu0
        %v2442 = vadd.f32 %v2329, %v2441
        %v2443 = vpop.f32.mrb[0].mxu0
        %v2444 = vadd.f32 %v2331, %v2443
        %v2445 = vpop.f32.mrb[0].mxu0
        %v2446 = vadd.f32 %v2333, %v2445
        %v2447 = vpop.f32.mrb[0].mxu0
        %v2448 = vadd.f32 %v2335, %v2447
        %2449 = vdwg.mxu0
        %2450 = vmatprep.subr.bf16.mxu0 %v1632
        %2451 = vmatpush1.bf16.msra.mxu0 %v1631
        %2452 = vmatprep.subr.bf16.mxu0 %v1636
        %2453 = vmatpush1.bf16.msra.mxu0 %v1635
        %2454 = vmatprep.subr.bf16.mxu0 %v1640
        %2455 = vmatpush1.bf16.msra.mxu0 %v1639
        %2456 = vmatprep.subr.bf16.mxu0 %v1644
        %2457 = vmatpush1.bf16.msra.mxu0 %v1643
        %2458 = vmatprep.subr.bf16.mxu0 %v1648
        %2459 = vmatpush1.bf16.msra.mxu0 %v1647
        %2460 = vmatprep.subr.bf16.mxu0 %v1652
        %2461 = vmatpush1.bf16.msra.mxu0 %v1651
        %2462 = vmatprep.subr.bf16.mxu0 %v1656
        %2463 = vmatpush1.bf16.msra.mxu0 %v1655
        %2464 = vmatprep.subr.bf16.mxu0 %v1660
        %2465 = vmatpush1.bf16.msra.mxu0 %v1659
        %2466 = vmatprep.subr.bf16.mxu0 %v1664
        %2467 = vmatpush1.bf16.msra.mxu0 %v1663
        %2468 = vmatprep.subr.bf16.mxu0 %v1668
        %2469 = vmatpush1.bf16.msra.mxu0 %v1667
        %2470 = vmatprep.subr.bf16.mxu0 %v1672
        %2471 = vmatpush1.bf16.msra.mxu0 %v1671
        %2472 = vmatprep.subr.bf16.mxu0 %v1676
        %2473 = vmatpush1.bf16.msra.mxu0 %v1675
        %2474 = vmatprep.subr.bf16.mxu0 %v1680
        %2475 = vmatpush1.bf16.msra.mxu0 %v1679
        %2476 = vmatprep.subr.bf16.mxu0 %v1684
        %2477 = vmatpush1.bf16.msra.mxu0 %v1683
        %2478 = vmatprep.subr.bf16.mxu0 %v1688
        %2479 = vmatpush1.bf16.msra.mxu0 %v1687
        %2480 = vmatprep.subr.bf16.mxu0 %v1692
        %2481 = vmatpush1.bf16.msra.mxu0 %v1691
        %2482 = vmatprep.mubr.bf16.mxu0 %v834
        %2483 = vmatmul.mubr.bf16.gmra.mrb[0].mxu0 %v833
        %v2484 = vpop.f32.mrb[0].mxu0
        %v2485 = vadd.f32 %v2372, %v2484
        %v2486 = vpop.f32.mrb[0].mxu0
        %v2487 = vadd.f32 %v2374, %v2486
        %v2488 = vpop.f32.mrb[0].mxu0
        %v2489 = vadd.f32 %v2376, %v2488
        %v2490 = vpop.f32.mrb[0].mxu0
        %v2491 = vadd.f32 %v2378, %v2490
        %2492 = vmatprep.mubr.bf16.mxu0 %v840
        %2493 = vmatmul.mubr.bf16.gmra.mrb[0].mxu0 %v839
        %v2494 = vpop.f32.mrb[0].mxu0
        %v2495 = vadd.f32 %v2382, %v2494
        %v2496 = vpop.f32.mrb[0].mxu0
        %v2497 = vadd.f32 %v2384, %v2496
        %v2498 = vpop.f32.mrb[0].mxu0
        %v2499 = vadd.f32 %v2386, %v2498
        %v2500 = vpop.f32.mrb[0].mxu0
        %v2501 = vadd.f32 %v2388, %v2500
        %2502 = vmatprep.mubr.bf16.mxu0 %v846
        %2503 = vmatmul.mubr.bf16.gmra.mrb[0].mxu0 %v845
        %v2504 = vpop.f32.mrb[0].mxu0
        %v2505 = vadd.f32 %v2392, %v2504
        %v2506 = vpop.f32.mrb[0].mxu0
        %v2507 = vadd.f32 %v2394, %v2506
        %v2508 = vpop.f32.mrb[0].mxu0
        %v2509 = vadd.f32 %v2396, %v2508
        %v2510 = vpop.f32.mrb[0].mxu0
        %v2511 = vadd.f32 %v2398, %v2510
        %2512 = vmatprep.mubr.bf16.mxu0 %v852
        %2513 = vmatmul.mubr.bf16.gmra.mrb[0].mxu0 %v851
        %v2514 = vpop.f32.mrb[0].mxu0
        %v2515 = vadd.f32 %v2402, %v2514
        %v2516 = vpop.f32.mrb[0].mxu0
        %v2517 = vadd.f32 %v2404, %v2516
        %v2518 = vpop.f32.mrb[0].mxu0
        %v2519 = vadd.f32 %v2406, %v2518
        %v2520 = vpop.f32.mrb[0].mxu0
        %v2521 = vadd.f32 %v2408, %v2520
        %2522 = vmatprep.mubr.bf16.mxu0 %v858
        %2523 = vmatmul.mubr.bf16.gmra.mrb[0].mxu0 %v857
        %v2524 = vpop.f32.mrb[0].mxu0
        %v2525 = vadd.f32 %v2412, %v2524
        %v2526 = vpop.f32.mrb[0].mxu0
        %v2527 = vadd.f32 %v2414, %v2526
        %v2528 = vpop.f32.mrb[0].mxu0
        %v2529 = vadd.f32 %v2416, %v2528
        %v2530 = vpop.f32.mrb[0].mxu0
        %v2531 = vadd.f32 %v2418, %v2530
        %2532 = vmatprep.mubr.bf16.mxu0 %v864
        %2533 = vmatmul.mubr.bf16.gmra.mrb[0].mxu0 %v863
        %v2534 = vpop.f32.mrb[0].mxu0
        %v2535 = vadd.f32 %v2422, %v2534
        %v2536 = vpop.f32.mrb[0].mxu0
        %v2537 = vadd.f32 %v2424, %v2536
        %v2538 = vpop.f32.mrb[0].mxu0
        %v2539 = vadd.f32 %v2426, %v2538
        %v2540 = vpop.f32.mrb[0].mxu0
        %v2541 = vadd.f32 %v2428, %v2540
        %2542 = vmatprep.mubr.bf16.mxu0 %v870
        %2543 = vmatmul.mubr.bf16.gmra.mrb[0].mxu0 %v869
        %v2544 = vpop.f32.mrb[0].mxu0
        %v2545 = vadd.f32 %v2432, %v2544
        %v2546 = vpop.f32.mrb[0].mxu0
        %v2547 = vadd.f32 %v2434, %v2546
        %v2548 = vpop.f32.mrb[0].mxu0
        %v2549 = vadd.f32 %v2436, %v2548
        %v2550 = vpop.f32.mrb[0].mxu0
        %v2551 = vadd.f32 %v2438, %v2550
        %2552 = vmatprep.mubr.bf16.mxu0 %v876
        %2553 = vmatmul.mubr.bf16.gmra.mrb[0].mxu0 %v875
        %v2554 = vpop.f32.mrb[0].mxu0
        %v2555 = vadd.f32 %v2442, %v2554
        %v2556 = vpop.f32.mrb[0].mxu0
        %v2557 = vadd.f32 %v2444, %v2556
        %v2558 = vpop.f32.mrb[0].mxu0
        %v2559 = vadd.f32 %v2446, %v2558
        %v2560 = vpop.f32.mrb[0].mxu0
        %v2561 = vadd.f32 %v2448, %v2560
        %2562 = vdwg.mxu0
        %v2563 = vmax.f32 %v2146, 0.0
        %v2564 = vmax.f32 %v2148, 0.0
        %v2565 = vmax.f32 %v2485, 0.0
        %v2566 = vmax.f32 %v2487, 0.0
        %v2567 = vmax.f32 %v2150, 0.0
        %v2568 = vmax.f32 %v2152, 0.0
        %v2569 = vmax.f32 %v2489, 0.0
        %v2570 = vmax.f32 %v2491, 0.0
        %v2571 = vmax.f32 %v2156, 0.0
        %v2572 = vmax.f32 %v2158, 0.0
        %v2573 = vmax.f32 %v2495, 0.0
        %v2574 = vmax.f32 %v2497, 0.0
        %v2575 = vmax.f32 %v2160, 0.0
        %v2576 = vmax.f32 %v2162, 0.0
        %v2577 = vmax.f32 %v2499, 0.0
        %v2578 = vmax.f32 %v2501, 0.0
        %v2579 = vmax.f32 %v2166, 0.0
        %v2580 = vmax.f32 %v2168, 0.0
        %v2581 = vmax.f32 %v2505, 0.0
        %v2582 = vmax.f32 %v2507, 0.0
        %v2583 = vmax.f32 %v2170, 0.0
        %v2584 = vmax.f32 %v2172, 0.0
        %v2585 = vmax.f32 %v2509, 0.0
        %v2586 = vmax.f32 %v2511, 0.0
        %v2587 = vmax.f32 %v2176, 0.0
        %v2588 = vmax.f32 %v2178, 0.0
        %v2589 = vmax.f32 %v2515, 0.0
        %v2590 = vmax.f32 %v2517, 0.0
        %v2591 = vmax.f32 %v2180, 0.0
        %v2592 = vmax.f32 %v2182, 0.0
        %v2593 = vmax.f32 %v2519, 0.0
        %v2594 = vmax.f32 %v2521, 0.0
        %v2595 = vmax.f32 %v2186, 0.0
        %v2596 = vmax.f32 %v2188, 0.0
        %v2597 = vmax.f32 %v2525, 0.0
        %v2598 = vmax.f32 %v2527, 0.0
        %v2599 = vmax.f32 %v2190, 0.0
        %v2600 = vmax.f32 %v2192, 0.0
        %v2601 = vmax.f32 %v2529, 0.0
        %v2602 = vmax.f32 %v2531, 0.0
        %v2603 = vmax.f32 %v2196, 0.0
        %v2604 = vmax.f32 %v2198, 0.0
        %v2605 = vmax.f32 %v2535, 0.0
        %v2606 = vmax.f32 %v2537, 0.0
        %v2607 = vmax.f32 %v2200, 0.0
        %v2608 = vmax.f32 %v2202, 0.0
        %v2609 = vmax.f32 %v2539, 0.0
        %v2610 = vmax.f32 %v2541, 0.0
        %v2611 = vmax.f32 %v2206, 0.0
        %v2612 = vmax.f32 %v2208, 0.0
        %v2613 = vmax.f32 %v2545, 0.0
        %v2614 = vmax.f32 %v2547, 0.0
        %v2615 = vmax.f32 %v2210, 0.0
        %v2616 = vmax.f32 %v2212, 0.0
        %v2617 = vmax.f32 %v2549, 0.0
        %v2618 = vmax.f32 %v2551, 0.0
        %v2619 = vmax.f32 %v2216, 0.0
        %v2620 = vmax.f32 %v2218, 0.0
        %v2621 = vmax.f32 %v2555, 0.0
        %v2622 = vmax.f32 %v2557, 0.0
        %v2623 = vmax.f32 %v2220, 0.0
        %v2624 = vmax.f32 %v2222, 0.0
        %v2625 = vmax.f32 %v2559, 0.0
        %v2626 = vmax.f32 %v2561, 0.0
        %v2627 = vpack.c.bf16 %v2567, %v2563
        %v2628 = vpack.c.bf16 %v2568, %v2564
        %v2629 = vpack.c.bf16 %v2569, %v2565
        %v2630 = vpack.c.bf16 %v2570, %v2566
        %v2631 = vpack.c.bf16 %v2575, %v2571
        %v2632 = vpack.c.bf16 %v2576, %v2572
        %v2633 = vpack.c.bf16 %v2577, %v2573
        %v2634 = vpack.c.bf16 %v2578, %v2574
        %v2635 = vpack.c.bf16 %v2583, %v2579
        %v2636 = vpack.c.bf16 %v2584, %v2580
        %v2637 = vpack.c.bf16 %v2585, %v2581
        %v2638 = vpack.c.bf16 %v2586, %v2582
        %v2639 = vpack.c.bf16 %v2591, %v2587
        %v2640 = vpack.c.bf16 %v2592, %v2588
        %v2641 = vpack.c.bf16 %v2593, %v2589
        %v2642 = vpack.c.bf16 %v2594, %v2590
        %v2643 = vpack.c.bf16 %v2599, %v2595
        %v2644 = vpack.c.bf16 %v2600, %v2596
        %v2645 = vpack.c.bf16 %v2601, %v2597
        %v2646 = vpack.c.bf16 %v2602, %v2598
        %v2647 = vpack.c.bf16 %v2607, %v2603
        %v2648 = vpack.c.bf16 %v2608, %v2604
        %v2649 = vpack.c.bf16 %v2609, %v2605
        %v2650 = vpack.c.bf16 %v2610, %v2606
        %v2651 = vpack.c.bf16 %v2615, %v2611
        %v2652 = vpack.c.bf16 %v2616, %v2612
        %v2653 = vpack.c.bf16 %v2617, %v2613
        %v2654 = vpack.c.bf16 %v2618, %v2614
        %v2655 = vpack.c.bf16 %v2623, %v2619
        %v2656 = vpack.c.bf16 %v2624, %v2620
        %v2657 = vpack.c.bf16 %v2625, %v2621
        %v2658 = vpack.c.bf16 %v2626, %v2622
        %v2659 = vld [vmem:[#allocation10] sm:$0xff]
        %v2660 = vld [vmem:[#allocation10 + $0x8] sm:$0xff]
        %v2661 = vld [vmem:[#allocation10 + $0x10] sm:$0xff]
        %v2662 = vld [vmem:[#allocation10 + $0x18] sm:$0xff]
        %v2663 = vld [vmem:[#allocation10 + $0x20] sm:$0xff]
        %v2664 = vld [vmem:[#allocation10 + $0x28] sm:$0xff]
        %v2665 = vld [vmem:[#allocation10 + $0x30] sm:$0xff]
        %v2666 = vld [vmem:[#allocation10 + $0x38] sm:$0xff]
        %v2667 = vld [vmem:[#allocation10 + $0x40] sm:$0xff]
        %v2668 = vld [vmem:[#allocation10 + $0x48] sm:$0xff]
        %v2669 = vld [vmem:[#allocation10 + $0x50] sm:$0xff]
        %v2670 = vld [vmem:[#allocation10 + $0x58] sm:$0xff]
        %v2671 = vld [vmem:[#allocation10 + $0x60] sm:$0xff]
        %v2672 = vld [vmem:[#allocation10 + $0x68] sm:$0xff]
        %v2673 = vld [vmem:[#allocation10 + $0x70] sm:$0xff]
        %v2674 = vld [vmem:[#allocation10 + $0x78] sm:$0xff]
        %v2675 = vld [vmem:[#allocation10 + $0x80] sm:$0xff]
        %v2676 = vld [vmem:[#allocation10 + $0x88] sm:$0xff]
        %v2677 = vld [vmem:[#allocation10 + $0x90] sm:$0xff]
        %v2678 = vld [vmem:[#allocation10 + $0x98] sm:$0xff]
        %v2679 = vld [vmem:[#allocation10 + $0xa0] sm:$0xff]
        %v2680 = vld [vmem:[#allocation10 + $0xa8] sm:$0xff]
        %v2681 = vld [vmem:[#allocation10 + $0xb0] sm:$0xff]
        %v2682 = vld [vmem:[#allocation10 + $0xb8] sm:$0xff]
        %v2683 = vld [vmem:[#allocation10 + $0xc0] sm:$0xff]
        %v2684 = vld [vmem:[#allocation10 + $0xc8] sm:$0xff]
        %v2685 = vld [vmem:[#allocation10 + $0xd0] sm:$0xff]
        %v2686 = vld [vmem:[#allocation10 + $0xd8] sm:$0xff]
        %v2687 = vld [vmem:[#allocation10 + $0xe0] sm:$0xff]
        %v2688 = vld [vmem:[#allocation10 + $0xe8] sm:$0xff]
        %v2689 = vld [vmem:[#allocation10 + $0xf0] sm:$0xff]
        %v2690 = vld [vmem:[#allocation10 + $0xf8] sm:$0xff]
        %v2691 = vld [vmem:[#allocation10 + $0x100] sm:$0xff]
        %v2692 = vld [vmem:[#allocation10 + $0x108] sm:$0xff]
        %v2693 = vld [vmem:[#allocation10 + $0x110] sm:$0xff]
        %v2694 = vld [vmem:[#allocation10 + $0x118] sm:$0xff]
        %v2695 = vld [vmem:[#allocation10 + $0x120] sm:$0xff]
        %v2696 = vld [vmem:[#allocation10 + $0x128] sm:$0xff]
        %v2697 = vld [vmem:[#allocation10 + $0x130] sm:$0xff]
        %v2698 = vld [vmem:[#allocation10 + $0x138] sm:$0xff]
        %v2699 = vld [vmem:[#allocation10 + $0x140] sm:$0xff]
        %v2700 = vld [vmem:[#allocation10 + $0x148] sm:$0xff]
        %v2701 = vld [vmem:[#allocation10 + $0x150] sm:$0xff]
        %v2702 = vld [vmem:[#allocation10 + $0x158] sm:$0xff]
        %v2703 = vld [vmem:[#allocation10 + $0x160] sm:$0xff]
        %v2704 = vld [vmem:[#allocation10 + $0x168] sm:$0xff]
        %v2705 = vld [vmem:[#allocation10 + $0x170] sm:$0xff]
        %v2706 = vld [vmem:[#allocation10 + $0x178] sm:$0xff]
        %v2707 = vld [vmem:[#allocation10 + $0x180] sm:$0xff]
        %v2708 = vld [vmem:[#allocation10 + $0x188] sm:$0xff]
        %v2709 = vld [vmem:[#allocation10 + $0x190] sm:$0xff]
        %v2710 = vld [vmem:[#allocation10 + $0x198] sm:$0xff]
        %v2711 = vld [vmem:[#allocation10 + $0x1a0] sm:$0xff]
        %v2712 = vld [vmem:[#allocation10 + $0x1a8] sm:$0xff]
        %v2713 = vld [vmem:[#allocation10 + $0x1b0] sm:$0xff]
        %v2714 = vld [vmem:[#allocation10 + $0x1b8] sm:$0xff]
        %v2715 = vld [vmem:[#allocation10 + $0x1c0] sm:$0xff]
        %v2716 = vld [vmem:[#allocation10 + $0x1c8] sm:$0xff]
        %v2717 = vld [vmem:[#allocation10 + $0x1d0] sm:$0xff]
        %v2718 = vld [vmem:[#allocation10 + $0x1d8] sm:$0xff]
        %v2719 = vld [vmem:[#allocation10 + $0x1e0] sm:$0xff]
        %v2720 = vld [vmem:[#allocation10 + $0x1e8] sm:$0xff]
        %v2721 = vld [vmem:[#allocation10 + $0x1f0] sm:$0xff]
        %v2722 = vld [vmem:[#allocation10 + $0x1f8] sm:$0xff]
        %v2723 = vld [vmem:[#allocation10 + $0x200] sm:$0xff]
        %v2724 = vld [vmem:[#allocation10 + $0x208] sm:$0xff]
        %v2725 = vld [vmem:[#allocation10 + $0x210] sm:$0xff]
        %v2726 = vld [vmem:[#allocation10 + $0x218] sm:$0xff]
        %v2727 = vld [vmem:[#allocation10 + $0x220] sm:$0xff]
        %v2728 = vld [vmem:[#allocation10 + $0x228] sm:$0xff]
        %v2729 = vld [vmem:[#allocation10 + $0x230] sm:$0xff]
        %v2730 = vld [vmem:[#allocation10 + $0x238] sm:$0xff]
        %v2731 = vld [vmem:[#allocation10 + $0x240] sm:$0xff]
        %v2732 = vld [vmem:[#allocation10 + $0x248] sm:$0xff]
        %v2733 = vld [vmem:[#allocation10 + $0x250] sm:$0xff]
        %v2734 = vld [vmem:[#allocation10 + $0x258] sm:$0xff]
        %v2735 = vld [vmem:[#allocation10 + $0x260] sm:$0xff]
        %v2736 = vld [vmem:[#allocation10 + $0x268] sm:$0xff]
        %v2737 = vld [vmem:[#allocation10 + $0x270] sm:$0xff]
        %v2738 = vld [vmem:[#allocation10 + $0x278] sm:$0xff]
        %v2739 = vld [vmem:[#allocation10 + $0x280] sm:$0xff]
        %v2740 = vld [vmem:[#allocation10 + $0x288] sm:$0xff]
        %v2741 = vld [vmem:[#allocation10 + $0x290] sm:$0xff]
        %v2742 = vld [vmem:[#allocation10 + $0x298] sm:$0xff]
        %v2743 = vld [vmem:[#allocation10 + $0x2a0] sm:$0xff]
        %v2744 = vld [vmem:[#allocation10 + $0x2a8] sm:$0xff]
        %v2745 = vld [vmem:[#allocation10 + $0x2b0] sm:$0xff]
        %v2746 = vld [vmem:[#allocation10 + $0x2b8] sm:$0xff]
        %v2747 = vld [vmem:[#allocation10 + $0x2c0] sm:$0xff]
        %v2748 = vld [vmem:[#allocation10 + $0x2c8] sm:$0xff]
        %v2749 = vld [vmem:[#allocation10 + $0x2d0] sm:$0xff]
        %v2750 = vld [vmem:[#allocation10 + $0x2d8] sm:$0xff]
        %v2751 = vld [vmem:[#allocation10 + $0x2e0] sm:$0xff]
        %v2752 = vld [vmem:[#allocation10 + $0x2e8] sm:$0xff]
        %v2753 = vld [vmem:[#allocation10 + $0x2f0] sm:$0xff]
        %v2754 = vld [vmem:[#allocation10 + $0x2f8] sm:$0xff]
        %v2755 = vld [vmem:[#allocation10 + $0x300] sm:$0xff]
        %v2756 = vld [vmem:[#allocation10 + $0x308] sm:$0xff]
        %v2757 = vld [vmem:[#allocation10 + $0x310] sm:$0xff]
        %v2758 = vld [vmem:[#allocation10 + $0x318] sm:$0xff]
        %v2759 = vld [vmem:[#allocation10 + $0x320] sm:$0xff]
        %v2760 = vld [vmem:[#allocation10 + $0x328] sm:$0xff]
        %v2761 = vld [vmem:[#allocation10 + $0x330] sm:$0xff]
        %v2762 = vld [vmem:[#allocation10 + $0x338] sm:$0xff]
        %v2763 = vld [vmem:[#allocation10 + $0x340] sm:$0xff]
        %v2764 = vld [vmem:[#allocation10 + $0x348] sm:$0xff]
        %v2765 = vld [vmem:[#allocation10 + $0x350] sm:$0xff]
        %v2766 = vld [vmem:[#allocation10 + $0x358] sm:$0xff]
        %v2767 = vld [vmem:[#allocation10 + $0x360] sm:$0xff]
        %v2768 = vld [vmem:[#allocation10 + $0x368] sm:$0xff]
        %v2769 = vld [vmem:[#allocation10 + $0x370] sm:$0xff]
        %v2770 = vld [vmem:[#allocation10 + $0x378] sm:$0xff]
        %v2771 = vld [vmem:[#allocation10 + $0x380] sm:$0xff]
        %v2772 = vld [vmem:[#allocation10 + $0x388] sm:$0xff]
        %v2773 = vld [vmem:[#allocation10 + $0x390] sm:$0xff]
        %v2774 = vld [vmem:[#allocation10 + $0x398] sm:$0xff]
        %v2775 = vld [vmem:[#allocation10 + $0x3a0] sm:$0xff]
        %v2776 = vld [vmem:[#allocation10 + $0x3a8] sm:$0xff]
        %v2777 = vld [vmem:[#allocation10 + $0x3b0] sm:$0xff]
        %v2778 = vld [vmem:[#allocation10 + $0x3b8] sm:$0xff]
        %v2779 = vld [vmem:[#allocation10 + $0x3c0] sm:$0xff]
        %v2780 = vld [vmem:[#allocation10 + $0x3c8] sm:$0xff]
        %v2781 = vld [vmem:[#allocation10 + $0x3d0] sm:$0xff]
        %v2782 = vld [vmem:[#allocation10 + $0x3d8] sm:$0xff]
        %v2783 = vld [vmem:[#allocation10 + $0x3e0] sm:$0xff]
        %v2784 = vld [vmem:[#allocation10 + $0x3e8] sm:$0xff]
        %v2785 = vld [vmem:[#allocation10 + $0x3f0] sm:$0xff]
        %v2786 = vld [vmem:[#allocation10 + $0x3f8] sm:$0xff]
        %v2787 = vld [vmem:[%s4] sm:$0xf]
        %v2789 = vlaneseq
        %v2790 = vshrl.u32 %v2789, 7
        %v2791 = vsub.s32 0, %v2790
        %v2792 = vrot.slane %v2787, %v2791
        %v2793 = vlaneseq
        %v2794 = vshrl.u32 %v2793, 7
        %v2795 = vsub.s32 1, %v2794
        %v2796 = vrot.slane %v2787, %v2795
        %v2797 = vlaneseq
        %v2798 = vshrl.u32 %v2797, 7
        %v2799 = vsub.s32 2, %v2798
        %v2800 = vrot.slane %v2787, %v2799
        %v2801 = vlaneseq
        %v2802 = vshrl.u32 %v2801, 7
        %v2803 = vsub.s32 3, %v2802
        %v2804 = vrot.slane %v2787, %v2803
        %v2937 = vunpack.c.l.b16 %v2659
        %v2938 = vunpack.c.h.b16 %v2659
        %v2939 = vunpack.c.l.b16 %v2660
        %v2940 = vunpack.c.h.b16 %v2660
        %v2941 = vunpack.c.l.b16 %v2661
        %v2942 = vunpack.c.h.b16 %v2661
        %v2943 = vunpack.c.l.b16 %v2662
        %v2944 = vunpack.c.h.b16 %v2662
        %v2945 = vunpack.c.l.b16 %v2663
        %v2946 = vunpack.c.h.b16 %v2663
        %v2947 = vunpack.c.l.b16 %v2664
        %v2948 = vunpack.c.h.b16 %v2664
        %v2949 = vunpack.c.l.b16 %v2665
        %v2950 = vunpack.c.h.b16 %v2665
        %v2951 = vunpack.c.l.b16 %v2666
        %v2952 = vunpack.c.h.b16 %v2666
        %v2953 = vunpack.c.l.b16 %v2667
        %v2954 = vunpack.c.h.b16 %v2667
        %v2955 = vunpack.c.l.b16 %v2668
        %v2956 = vunpack.c.h.b16 %v2668
        %v2957 = vunpack.c.l.b16 %v2669
        %v2958 = vunpack.c.h.b16 %v2669
        %v2959 = vunpack.c.l.b16 %v2670
        %v2960 = vunpack.c.h.b16 %v2670
        %v2961 = vunpack.c.l.b16 %v2671
        %v2962 = vunpack.c.h.b16 %v2671
        %v2963 = vunpack.c.l.b16 %v2672
        %v2964 = vunpack.c.h.b16 %v2672
        %v2965 = vunpack.c.l.b16 %v2673
        %v2966 = vunpack.c.h.b16 %v2673
        %v2967 = vunpack.c.l.b16 %v2674
        %v2968 = vunpack.c.h.b16 %v2674
        %v2969 = vunpack.c.l.b16 %v2675
        %v2970 = vunpack.c.h.b16 %v2675
        %v2971 = vunpack.c.l.b16 %v2676
        %v2972 = vunpack.c.h.b16 %v2676
        %v2973 = vunpack.c.l.b16 %v2677
        %v2974 = vunpack.c.h.b16 %v2677
        %v2975 = vunpack.c.l.b16 %v2678
        %v2976 = vunpack.c.h.b16 %v2678
        %v2977 = vunpack.c.l.b16 %v2679
        %v2978 = vunpack.c.h.b16 %v2679
        %v2979 = vunpack.c.l.b16 %v2680
        %v2980 = vunpack.c.h.b16 %v2680
        %v2981 = vunpack.c.l.b16 %v2681
        %v2982 = vunpack.c.h.b16 %v2681
        %v2983 = vunpack.c.l.b16 %v2682
        %v2984 = vunpack.c.h.b16 %v2682
        %v2985 = vunpack.c.l.b16 %v2683
        %v2986 = vunpack.c.h.b16 %v2683
        %v2987 = vunpack.c.l.b16 %v2684
        %v2988 = vunpack.c.h.b16 %v2684
        %v2989 = vunpack.c.l.b16 %v2685
        %v2990 = vunpack.c.h.b16 %v2685
        %v2991 = vunpack.c.l.b16 %v2686
        %v2992 = vunpack.c.h.b16 %v2686
        %v2993 = vunpack.c.l.b16 %v2687
        %v2994 = vunpack.c.h.b16 %v2687
        %v2995 = vunpack.c.l.b16 %v2688
        %v2996 = vunpack.c.h.b16 %v2688
        %v2997 = vunpack.c.l.b16 %v2689
        %v2998 = vunpack.c.h.b16 %v2689
        %v2999 = vunpack.c.l.b16 %v2690
        %v3000 = vunpack.c.h.b16 %v2690
        %v3001 = vunpack.c.l.b16 %v2691
        %v3002 = vunpack.c.h.b16 %v2691
        %v3003 = vunpack.c.l.b16 %v2692
        %v3004 = vunpack.c.h.b16 %v2692
        %v3005 = vunpack.c.l.b16 %v2693
        %v3006 = vunpack.c.h.b16 %v2693
        %v3007 = vunpack.c.l.b16 %v2694
        %v3008 = vunpack.c.h.b16 %v2694
        %v3009 = vunpack.c.l.b16 %v2695
        %v3010 = vunpack.c.h.b16 %v2695
        %v3011 = vunpack.c.l.b16 %v2696
        %v3012 = vunpack.c.h.b16 %v2696
        %v3013 = vunpack.c.l.b16 %v2697
        %v3014 = vunpack.c.h.b16 %v2697
        %v3015 = vunpack.c.l.b16 %v2698
        %v3016 = vunpack.c.h.b16 %v2698
        %v3017 = vunpack.c.l.b16 %v2699
        %v3018 = vunpack.c.h.b16 %v2699
        %v3019 = vunpack.c.l.b16 %v2700
        %v3020 = vunpack.c.h.b16 %v2700
        %v3021 = vunpack.c.l.b16 %v2701
        %v3022 = vunpack.c.h.b16 %v2701
        %v3023 = vunpack.c.l.b16 %v2702
        %v3024 = vunpack.c.h.b16 %v2702
        %v3025 = vunpack.c.l.b16 %v2703
        %v3026 = vunpack.c.h.b16 %v2703
        %v3027 = vunpack.c.l.b16 %v2704
        %v3028 = vunpack.c.h.b16 %v2704
        %v3029 = vunpack.c.l.b16 %v2705
        %v3030 = vunpack.c.h.b16 %v2705
        %v3031 = vunpack.c.l.b16 %v2706
        %v3032 = vunpack.c.h.b16 %v2706
        %v3033 = vunpack.c.l.b16 %v2707
        %v3034 = vunpack.c.h.b16 %v2707
        %v3035 = vunpack.c.l.b16 %v2708
        %v3036 = vunpack.c.h.b16 %v2708
        %v3037 = vunpack.c.l.b16 %v2709
        %v3038 = vunpack.c.h.b16 %v2709
        %v3039 = vunpack.c.l.b16 %v2710
        %v3040 = vunpack.c.h.b16 %v2710
        %v3041 = vunpack.c.l.b16 %v2711
        %v3042 = vunpack.c.h.b16 %v2711
        %v3043 = vunpack.c.l.b16 %v2712
        %v3044 = vunpack.c.h.b16 %v2712
        %v3045 = vunpack.c.l.b16 %v2713
        %v3046 = vunpack.c.h.b16 %v2713
        %v3047 = vunpack.c.l.b16 %v2714
        %v3048 = vunpack.c.h.b16 %v2714
        %v3049 = vunpack.c.l.b16 %v2715
        %v3050 = vunpack.c.h.b16 %v2715
        %v3051 = vunpack.c.l.b16 %v2716
        %v3052 = vunpack.c.h.b16 %v2716
        %v3053 = vunpack.c.l.b16 %v2717
        %v3054 = vunpack.c.h.b16 %v2717
        %v3055 = vunpack.c.l.b16 %v2718
        %v3056 = vunpack.c.h.b16 %v2718
        %v3057 = vunpack.c.l.b16 %v2719
        %v3058 = vunpack.c.h.b16 %v2719
        %v3059 = vunpack.c.l.b16 %v2720
        %v3060 = vunpack.c.h.b16 %v2720
        %v3061 = vunpack.c.l.b16 %v2721
        %v3062 = vunpack.c.h.b16 %v2721
        %v3063 = vunpack.c.l.b16 %v2722
        %v3064 = vunpack.c.h.b16 %v2722
        %v3065 = vunpack.c.l.b16 %v2723
        %v3066 = vunpack.c.h.b16 %v2723
        %v3067 = vunpack.c.l.b16 %v2724
        %v3068 = vunpack.c.h.b16 %v2724
        %v3069 = vunpack.c.l.b16 %v2725
        %v3070 = vunpack.c.h.b16 %v2725
        %v3071 = vunpack.c.l.b16 %v2726
        %v3072 = vunpack.c.h.b16 %v2726
        %v3073 = vunpack.c.l.b16 %v2727
        %v3074 = vunpack.c.h.b16 %v2727
        %v3075 = vunpack.c.l.b16 %v2728
        %v3076 = vunpack.c.h.b16 %v2728
        %v3077 = vunpack.c.l.b16 %v2729
        %v3078 = vunpack.c.h.b16 %v2729
        %v3079 = vunpack.c.l.b16 %v2730
        %v3080 = vunpack.c.h.b16 %v2730
        %v3081 = vunpack.c.l.b16 %v2731
        %v3082 = vunpack.c.h.b16 %v2731
        %v3083 = vunpack.c.l.b16 %v2732
        %v3084 = vunpack.c.h.b16 %v2732
        %v3085 = vunpack.c.l.b16 %v2733
        %v3086 = vunpack.c.h.b16 %v2733
        %v3087 = vunpack.c.l.b16 %v2734
        %v3088 = vunpack.c.h.b16 %v2734
        %v3089 = vunpack.c.l.b16 %v2735
        %v3090 = vunpack.c.h.b16 %v2735
        %v3091 = vunpack.c.l.b16 %v2736
        %v3092 = vunpack.c.h.b16 %v2736
        %v3093 = vunpack.c.l.b16 %v2737
        %v3094 = vunpack.c.h.b16 %v2737
        %v3095 = vunpack.c.l.b16 %v2738
        %v3096 = vunpack.c.h.b16 %v2738
        %v3097 = vunpack.c.l.b16 %v2739
        %v3098 = vunpack.c.h.b16 %v2739
        %v3099 = vunpack.c.l.b16 %v2740
        %v3100 = vunpack.c.h.b16 %v2740
        %v3101 = vunpack.c.l.b16 %v2741
        %v3102 = vunpack.c.h.b16 %v2741
        %v3103 = vunpack.c.l.b16 %v2742
        %v3104 = vunpack.c.h.b16 %v2742
        %v3105 = vunpack.c.l.b16 %v2743
        %v3106 = vunpack.c.h.b16 %v2743
        %v3107 = vunpack.c.l.b16 %v2744
        %v3108 = vunpack.c.h.b16 %v2744
        %v3109 = vunpack.c.l.b16 %v2745
        %v3110 = vunpack.c.h.b16 %v2745
        %v3111 = vunpack.c.l.b16 %v2746
        %v3112 = vunpack.c.h.b16 %v2746
        %v3113 = vunpack.c.l.b16 %v2747
        %v3114 = vunpack.c.h.b16 %v2747
        %v3115 = vunpack.c.l.b16 %v2748
        %v3116 = vunpack.c.h.b16 %v2748
        %v3117 = vunpack.c.l.b16 %v2749
        %v3118 = vunpack.c.h.b16 %v2749
        %v3119 = vunpack.c.l.b16 %v2750
        %v3120 = vunpack.c.h.b16 %v2750
        %v3121 = vunpack.c.l.b16 %v2751
        %v3122 = vunpack.c.h.b16 %v2751
        %v3123 = vunpack.c.l.b16 %v2752
        %v3124 = vunpack.c.h.b16 %v2752
        %v3125 = vunpack.c.l.b16 %v2753
        %v3126 = vunpack.c.h.b16 %v2753
        %v3127 = vunpack.c.l.b16 %v2754
        %v3128 = vunpack.c.h.b16 %v2754
        %v3129 = vunpack.c.l.b16 %v2755
        %v3130 = vunpack.c.h.b16 %v2755
        %v3131 = vunpack.c.l.b16 %v2756
        %v3132 = vunpack.c.h.b16 %v2756
        %v3133 = vunpack.c.l.b16 %v2757
        %v3134 = vunpack.c.h.b16 %v2757
        %v3135 = vunpack.c.l.b16 %v2758
        %v3136 = vunpack.c.h.b16 %v2758
        %v3137 = vunpack.c.l.b16 %v2759
        %v3138 = vunpack.c.h.b16 %v2759
        %v3139 = vunpack.c.l.b16 %v2760
        %v3140 = vunpack.c.h.b16 %v2760
        %v3141 = vunpack.c.l.b16 %v2761
        %v3142 = vunpack.c.h.b16 %v2761
        %v3143 = vunpack.c.l.b16 %v2762
        %v3144 = vunpack.c.h.b16 %v2762
        %v3145 = vunpack.c.l.b16 %v2763
        %v3146 = vunpack.c.h.b16 %v2763
        %v3147 = vunpack.c.l.b16 %v2764
        %v3148 = vunpack.c.h.b16 %v2764
        %v3149 = vunpack.c.l.b16 %v2765
        %v3150 = vunpack.c.h.b16 %v2765
        %v3151 = vunpack.c.l.b16 %v2766
        %v3152 = vunpack.c.h.b16 %v2766
        %v3153 = vunpack.c.l.b16 %v2767
        %v3154 = vunpack.c.h.b16 %v2767
        %v3155 = vunpack.c.l.b16 %v2768
        %v3156 = vunpack.c.h.b16 %v2768
        %v3157 = vunpack.c.l.b16 %v2769
        %v3158 = vunpack.c.h.b16 %v2769
        %v3159 = vunpack.c.l.b16 %v2770
        %v3160 = vunpack.c.h.b16 %v2770
        %v3161 = vunpack.c.l.b16 %v2771
        %v3162 = vunpack.c.h.b16 %v2771
        %v3163 = vunpack.c.l.b16 %v2772
        %v3164 = vunpack.c.h.b16 %v2772
        %v3165 = vunpack.c.l.b16 %v2773
        %v3166 = vunpack.c.h.b16 %v2773
        %v3167 = vunpack.c.l.b16 %v2774
        %v3168 = vunpack.c.h.b16 %v2774
        %v3169 = vunpack.c.l.b16 %v2775
        %v3170 = vunpack.c.h.b16 %v2775
        %v3171 = vunpack.c.l.b16 %v2776
        %v3172 = vunpack.c.h.b16 %v2776
        %v3173 = vunpack.c.l.b16 %v2777
        %v3174 = vunpack.c.h.b16 %v2777
        %v3175 = vunpack.c.l.b16 %v2778
        %v3176 = vunpack.c.h.b16 %v2778
        %v3177 = vunpack.c.l.b16 %v2779
        %v3178 = vunpack.c.h.b16 %v2779
        %v3179 = vunpack.c.l.b16 %v2780
        %v3180 = vunpack.c.h.b16 %v2780
        %v3181 = vunpack.c.l.b16 %v2781
        %v3182 = vunpack.c.h.b16 %v2781
        %v3183 = vunpack.c.l.b16 %v2782
        %v3184 = vunpack.c.h.b16 %v2782
        %v3185 = vunpack.c.l.b16 %v2783
        %v3186 = vunpack.c.h.b16 %v2783
        %v3187 = vunpack.c.l.b16 %v2784
        %v3188 = vunpack.c.h.b16 %v2784
        %v3189 = vunpack.c.l.b16 %v2785
        %v3190 = vunpack.c.h.b16 %v2785
        %v3191 = vunpack.c.l.b16 %v2786
        %v3192 = vunpack.c.h.b16 %v2786
        %v3193 = vpack.c.b16 %v2941, %v2937
        %v3194 = vpack.c.b16 %v2942, %v2938
        %v3195 = vpack.c.b16 %v2943, %v2939
        %v3196 = vpack.c.b16 %v2944, %v2940
        %v3197 = vpack.c.b16 %v2949, %v2945
        %v3198 = vpack.c.b16 %v2950, %v2946
        %v3199 = vpack.c.b16 %v2951, %v2947
        %v3200 = vpack.c.b16 %v2952, %v2948
        %v3201 = vpack.c.b16 %v2957, %v2953
        %v3202 = vpack.c.b16 %v2958, %v2954
        %v3203 = vpack.c.b16 %v2959, %v2955
        %v3204 = vpack.c.b16 %v2960, %v2956
        %v3205 = vpack.c.b16 %v2965, %v2961
        %v3206 = vpack.c.b16 %v2966, %v2962
        %v3207 = vpack.c.b16 %v2967, %v2963
        %v3208 = vpack.c.b16 %v2968, %v2964
        %v3209 = vpack.c.b16 %v2973, %v2969
        %v3210 = vpack.c.b16 %v2974, %v2970
        %v3211 = vpack.c.b16 %v2975, %v2971
        %v3212 = vpack.c.b16 %v2976, %v2972
        %v3213 = vpack.c.b16 %v2981, %v2977
        %v3214 = vpack.c.b16 %v2982, %v2978
        %v3215 = vpack.c.b16 %v2983, %v2979
        %v3216 = vpack.c.b16 %v2984, %v2980
        %v3217 = vpack.c.b16 %v2989, %v2985
        %v3218 = vpack.c.b16 %v2990, %v2986
        %v3219 = vpack.c.b16 %v2991, %v2987
        %v3220 = vpack.c.b16 %v2992, %v2988
        %v3221 = vpack.c.b16 %v2997, %v2993
        %v3222 = vpack.c.b16 %v2998, %v2994
        %v3223 = vpack.c.b16 %v2999, %v2995
        %v3224 = vpack.c.b16 %v3000, %v2996
        %v3225 = vpack.c.b16 %v3005, %v3001
        %v3226 = vpack.c.b16 %v3006, %v3002
        %v3227 = vpack.c.b16 %v3007, %v3003
        %v3228 = vpack.c.b16 %v3008, %v3004
        %v3229 = vpack.c.b16 %v3013, %v3009
        %v3230 = vpack.c.b16 %v3014, %v3010
        %v3231 = vpack.c.b16 %v3015, %v3011
        %v3232 = vpack.c.b16 %v3016, %v3012
        %v3233 = vpack.c.b16 %v3021, %v3017
        %v3234 = vpack.c.b16 %v3022, %v3018
        %v3235 = vpack.c.b16 %v3023, %v3019
        %v3236 = vpack.c.b16 %v3024, %v3020
        %v3237 = vpack.c.b16 %v3029, %v3025
        %v3238 = vpack.c.b16 %v3030, %v3026
        %v3239 = vpack.c.b16 %v3031, %v3027
        %v3240 = vpack.c.b16 %v3032, %v3028
        %v3241 = vpack.c.b16 %v3037, %v3033
        %v3242 = vpack.c.b16 %v3038, %v3034
        %v3243 = vpack.c.b16 %v3039, %v3035
        %v3244 = vpack.c.b16 %v3040, %v3036
        %v3245 = vpack.c.b16 %v3045, %v3041
        %v3246 = vpack.c.b16 %v3046, %v3042
        %v3247 = vpack.c.b16 %v3047, %v3043
        %v3248 = vpack.c.b16 %v3048, %v3044
        %v3249 = vpack.c.b16 %v3053, %v3049
        %v3250 = vpack.c.b16 %v3054, %v3050
        %v3251 = vpack.c.b16 %v3055, %v3051
        %v3252 = vpack.c.b16 %v3056, %v3052
        %v3253 = vpack.c.b16 %v3061, %v3057
        %v3254 = vpack.c.b16 %v3062, %v3058
        %v3255 = vpack.c.b16 %v3063, %v3059
        %v3256 = vpack.c.b16 %v3064, %v3060
        %v3257 = vpack.c.b16 %v3069, %v3065
        %v3258 = vpack.c.b16 %v3070, %v3066
        %v3259 = vpack.c.b16 %v3071, %v3067
        %v3260 = vpack.c.b16 %v3072, %v3068
        %v3261 = vpack.c.b16 %v3077, %v3073
        %v3262 = vpack.c.b16 %v3078, %v3074
        %v3263 = vpack.c.b16 %v3079, %v3075
        %v3264 = vpack.c.b16 %v3080, %v3076
        %v3265 = vpack.c.b16 %v3085, %v3081
        %v3266 = vpack.c.b16 %v3086, %v3082
        %v3267 = vpack.c.b16 %v3087, %v3083
        %v3268 = vpack.c.b16 %v3088, %v3084
        %v3269 = vpack.c.b16 %v3093, %v3089
        %v3270 = vpack.c.b16 %v3094, %v3090
        %v3271 = vpack.c.b16 %v3095, %v3091
        %v3272 = vpack.c.b16 %v3096, %v3092
        %v3273 = vpack.c.b16 %v3101, %v3097
        %v3274 = vpack.c.b16 %v3102, %v3098
        %v3275 = vpack.c.b16 %v3103, %v3099
        %v3276 = vpack.c.b16 %v3104, %v3100
        %v3277 = vpack.c.b16 %v3109, %v3105
        %v3278 = vpack.c.b16 %v3110, %v3106
        %v3279 = vpack.c.b16 %v3111, %v3107
        %v3280 = vpack.c.b16 %v3112, %v3108
        %v3281 = vpack.c.b16 %v3117, %v3113
        %v3282 = vpack.c.b16 %v3118, %v3114
        %v3283 = vpack.c.b16 %v3119, %v3115
        %v3284 = vpack.c.b16 %v3120, %v3116
        %v3285 = vpack.c.b16 %v3125, %v3121
        %v3286 = vpack.c.b16 %v3126, %v3122
        %v3287 = vpack.c.b16 %v3127, %v3123
        %v3288 = vpack.c.b16 %v3128, %v3124
        %v3289 = vpack.c.b16 %v3133, %v3129
        %v3290 = vpack.c.b16 %v3134, %v3130
        %v3291 = vpack.c.b16 %v3135, %v3131
        %v3292 = vpack.c.b16 %v3136, %v3132
        %v3293 = vpack.c.b16 %v3141, %v3137
        %v3294 = vpack.c.b16 %v3142, %v3138
        %v3295 = vpack.c.b16 %v3143, %v3139
        %v3296 = vpack.c.b16 %v3144, %v3140
        %v3297 = vpack.c.b16 %v3149, %v3145
        %v3298 = vpack.c.b16 %v3150, %v3146
        %v3299 = vpack.c.b16 %v3151, %v3147
        %v3300 = vpack.c.b16 %v3152, %v3148
        %v3301 = vpack.c.b16 %v3157, %v3153
        %v3302 = vpack.c.b16 %v3158, %v3154
        %v3303 = vpack.c.b16 %v3159, %v3155
        %v3304 = vpack.c.b16 %v3160, %v3156
        %v3305 = vpack.c.b16 %v3165, %v3161
        %v3306 = vpack.c.b16 %v3166, %v3162
        %v3307 = vpack.c.b16 %v3167, %v3163
        %v3308 = vpack.c.b16 %v3168, %v3164
        %v3309 = vpack.c.b16 %v3173, %v3169
        %v3310 = vpack.c.b16 %v3174, %v3170
        %v3311 = vpack.c.b16 %v3175, %v3171
        %v3312 = vpack.c.b16 %v3176, %v3172
        %v3313 = vpack.c.b16 %v3181, %v3177
        %v3314 = vpack.c.b16 %v3182, %v3178
        %v3315 = vpack.c.b16 %v3183, %v3179
        %v3316 = vpack.c.b16 %v3184, %v3180
        %v3317 = vpack.c.b16 %v3189, %v3185
        %v3318 = vpack.c.b16 %v3190, %v3186
        %v3319 = vpack.c.b16 %v3191, %v3187
        %v3320 = vpack.c.b16 %v3192, %v3188
        %3449 = vmatprep.subr.bf16.mxu0 %v3194
        %3450 = vmatpush1.bf16.msra.mxu0 %v3193
        %3451 = vmatprep.subr.bf16.mxu0 %v3198
        %3452 = vmatpush1.bf16.msra.mxu0 %v3197
        %3453 = vmatprep.subr.bf16.mxu0 %v3202
        %3454 = vmatpush1.bf16.msra.mxu0 %v3201
        %3455 = vmatprep.subr.bf16.mxu0 %v3206
        %3456 = vmatpush1.bf16.msra.mxu0 %v3205
        %3457 = vmatprep.subr.bf16.mxu0 %v3210
        %3458 = vmatpush1.bf16.msra.mxu0 %v3209
        %3459 = vmatprep.subr.bf16.mxu0 %v3214
        %3460 = vmatpush1.bf16.msra.mxu0 %v3213
        %3461 = vmatprep.subr.bf16.mxu0 %v3218
        %3462 = vmatpush1.bf16.msra.mxu0 %v3217
        %3463 = vmatprep.subr.bf16.mxu0 %v3222
        %3464 = vmatpush1.bf16.msra.mxu0 %v3221
        %3465 = vmatprep.subr.bf16.mxu0 %v3226
        %3466 = vmatpush1.bf16.msra.mxu0 %v3225
        %3467 = vmatprep.subr.bf16.mxu0 %v3230
        %3468 = vmatpush1.bf16.msra.mxu0 %v3229
        %3469 = vmatprep.subr.bf16.mxu0 %v3234
        %3470 = vmatpush1.bf16.msra.mxu0 %v3233
        %3471 = vmatprep.subr.bf16.mxu0 %v3238
        %3472 = vmatpush1.bf16.msra.mxu0 %v3237
        %3473 = vmatprep.subr.bf16.mxu0 %v3242
        %3474 = vmatpush1.bf16.msra.mxu0 %v3241
        %3475 = vmatprep.subr.bf16.mxu0 %v3246
        %3476 = vmatpush1.bf16.msra.mxu0 %v3245
        %3477 = vmatprep.subr.bf16.mxu0 %v3250
        %3478 = vmatpush1.bf16.msra.mxu0 %v3249
        %3479 = vmatprep.subr.bf16.mxu0 %v3254
        %3480 = vmatpush1.bf16.msra.mxu0 %v3253
        %3481 = vmatprep.mubr.bf16.mxu0 %v2628
        %3482 = vmatmul.mubr.bf16.gmra.mrb[0].mxu0 %v2627
        %v3483 = vpop.f32.mrb[0].mxu0
        %v3484 = vadd.f32 %v2792, %v3483
        %v3485 = vpop.f32.mrb[0].mxu0
        %v3486 = vadd.f32 %v2796, %v3485
        %v3487 = vpop.f32.mrb[0].mxu0
        %v3488 = vadd.f32 %v2792, %v3487
        %v3489 = vpop.f32.mrb[0].mxu0
        %v3490 = vadd.f32 %v2796, %v3489
        %3491 = vmatprep.mubr.bf16.mxu0 %v2632
        %3492 = vmatmul.mubr.bf16.gmra.mrb[0].mxu0 %v2631
        %v3493 = vpop.f32.mrb[0].mxu0
        %v3494 = vadd.f32 %v2792, %v3493
        %v3495 = vpop.f32.mrb[0].mxu0
        %v3496 = vadd.f32 %v2796, %v3495
        %v3497 = vpop.f32.mrb[0].mxu0
        %v3498 = vadd.f32 %v2792, %v3497
        %v3499 = vpop.f32.mrb[0].mxu0
        %v3500 = vadd.f32 %v2796, %v3499
        %3501 = vmatprep.mubr.bf16.mxu0 %v2636
        %3502 = vmatmul.mubr.bf16.gmra.mrb[0].mxu0 %v2635
        %v3503 = vpop.f32.mrb[0].mxu0
        %v3504 = vadd.f32 %v2792, %v3503
        %v3505 = vpop.f32.mrb[0].mxu0
        %v3506 = vadd.f32 %v2796, %v3505
        %v3507 = vpop.f32.mrb[0].mxu0
        %v3508 = vadd.f32 %v2792, %v3507
        %v3509 = vpop.f32.mrb[0].mxu0
        %v3510 = vadd.f32 %v2796, %v3509
        %3511 = vmatprep.mubr.bf16.mxu0 %v2640
        %3512 = vmatmul.mubr.bf16.gmra.mrb[0].mxu0 %v2639
        %v3513 = vpop.f32.mrb[0].mxu0
        %v3514 = vadd.f32 %v2792, %v3513
        %v3515 = vpop.f32.mrb[0].mxu0
        %v3516 = vadd.f32 %v2796, %v3515
        %v3517 = vpop.f32.mrb[0].mxu0
        %v3518 = vadd.f32 %v2792, %v3517
        %v3519 = vpop.f32.mrb[0].mxu0
        %v3520 = vadd.f32 %v2796, %v3519
        %3521 = vmatprep.mubr.bf16.mxu0 %v2644
        %3522 = vmatmul.mubr.bf16.gmra.mrb[0].mxu0 %v2643
        %v3523 = vpop.f32.mrb[0].mxu0
        %v3524 = vadd.f32 %v2792, %v3523
        %v3525 = vpop.f32.mrb[0].mxu0
        %v3526 = vadd.f32 %v2796, %v3525
        %v3527 = vpop.f32.mrb[0].mxu0
        %v3528 = vadd.f32 %v2792, %v3527
        %v3529 = vpop.f32.mrb[0].mxu0
        %v3530 = vadd.f32 %v2796, %v3529
        %3531 = vmatprep.mubr.bf16.mxu0 %v2648
        %3532 = vmatmul.mubr.bf16.gmra.mrb[0].mxu0 %v2647
        %v3533 = vpop.f32.mrb[0].mxu0
        %v3534 = vadd.f32 %v2792, %v3533
        %v3535 = vpop.f32.mrb[0].mxu0
        %v3536 = vadd.f32 %v2796, %v3535
        %v3537 = vpop.f32.mrb[0].mxu0
        %v3538 = vadd.f32 %v2792, %v3537
        %v3539 = vpop.f32.mrb[0].mxu0
        %v3540 = vadd.f32 %v2796, %v3539
        %3541 = vmatprep.mubr.bf16.mxu0 %v2652
        %3542 = vmatmul.mubr.bf16.gmra.mrb[0].mxu0 %v2651
        %v3543 = vpop.f32.mrb[0].mxu0
        %v3544 = vadd.f32 %v2792, %v3543
        %v3545 = vpop.f32.mrb[0].mxu0
        %v3546 = vadd.f32 %v2796, %v3545
        %v3547 = vpop.f32.mrb[0].mxu0
        %v3548 = vadd.f32 %v2792, %v3547
        %v3549 = vpop.f32.mrb[0].mxu0
        %v3550 = vadd.f32 %v2796, %v3549
        %3551 = vmatprep.mubr.bf16.mxu0 %v2656
        %3552 = vmatmul.mubr.bf16.gmra.mrb[0].mxu0 %v2655
        %v3553 = vpop.f32.mrb[0].mxu0
        %v3554 = vadd.f32 %v2792, %v3553
        %v3555 = vpop.f32.mrb[0].mxu0
        %v3556 = vadd.f32 %v2796, %v3555
        %v3557 = vpop.f32.mrb[0].mxu0
        %v3558 = vadd.f32 %v2792, %v3557
        %v3559 = vpop.f32.mrb[0].mxu0
        %v3560 = vadd.f32 %v2796, %v3559
        %3561 = vdwg.mxu0
        %3562 = vmatprep.subr.bf16.mxu0 %v3258
        %3563 = vmatpush1.bf16.msra.mxu0 %v3257
        %3564 = vmatprep.subr.bf16.mxu0 %v3262
        %3565 = vmatpush1.bf16.msra.mxu0 %v3261
        %3566 = vmatprep.subr.bf16.mxu0 %v3266
        %3567 = vmatpush1.bf16.msra.mxu0 %v3265
        %3568 = vmatprep.subr.bf16.mxu0 %v3270
        %3569 = vmatpush1.bf16.msra.mxu0 %v3269
        %3570 = vmatprep.subr.bf16.mxu0 %v3274
        %3571 = vmatpush1.bf16.msra.mxu0 %v3273
        %3572 = vmatprep.subr.bf16.mxu0 %v3278
        %3573 = vmatpush1.bf16.msra.mxu0 %v3277
        %3574 = vmatprep.subr.bf16.mxu0 %v3282
        %3575 = vmatpush1.bf16.msra.mxu0 %v3281
        %3576 = vmatprep.subr.bf16.mxu0 %v3286
        %3577 = vmatpush1.bf16.msra.mxu0 %v3285
        %3578 = vmatprep.subr.bf16.mxu0 %v3290
        %3579 = vmatpush1.bf16.msra.mxu0 %v3289
        %3580 = vmatprep.subr.bf16.mxu0 %v3294
        %3581 = vmatpush1.bf16.msra.mxu0 %v3293
        %3582 = vmatprep.subr.bf16.mxu0 %v3298
        %3583 = vmatpush1.bf16.msra.mxu0 %v3297
        %3584 = vmatprep.subr.bf16.mxu0 %v3302
        %3585 = vmatpush1.bf16.msra.mxu0 %v3301
        %3586 = vmatprep.subr.bf16.mxu0 %v3306
        %3587 = vmatpush1.bf16.msra.mxu0 %v3305
        %3588 = vmatprep.subr.bf16.mxu0 %v3310
        %3589 = vmatpush1.bf16.msra.mxu0 %v3309
        %3590 = vmatprep.subr.bf16.mxu0 %v3314
        %3591 = vmatpush1.bf16.msra.mxu0 %v3313
        %3592 = vmatprep.subr.bf16.mxu0 %v3318
        %3593 = vmatpush1.bf16.msra.mxu0 %v3317
        %3594 = vmatprep.mubr.bf16.mxu0 %v2630
        %3595 = vmatmul.mubr.bf16.gmra.mrb[0].mxu0 %v2629
        %v3596 = vpop.f32.mrb[0].mxu0
        %v3597 = vadd.f32 %v3484, %v3596
        %v3598 = vpop.f32.mrb[0].mxu0
        %v3599 = vadd.f32 %v3486, %v3598
        %v3600 = vpop.f32.mrb[0].mxu0
        %v3601 = vadd.f32 %v3488, %v3600
        %v3602 = vpop.f32.mrb[0].mxu0
        %v3603 = vadd.f32 %v3490, %v3602
        %3604 = vmatprep.mubr.bf16.mxu0 %v2634
        %3605 = vmatmul.mubr.bf16.gmra.mrb[0].mxu0 %v2633
        %v3606 = vpop.f32.mrb[0].mxu0
        %v3607 = vadd.f32 %v3494, %v3606
        %v3608 = vpop.f32.mrb[0].mxu0
        %v3609 = vadd.f32 %v3496, %v3608
        %v3610 = vpop.f32.mrb[0].mxu0
        %v3611 = vadd.f32 %v3498, %v3610
        %v3612 = vpop.f32.mrb[0].mxu0
        %v3613 = vadd.f32 %v3500, %v3612
        %3614 = vmatprep.mubr.bf16.mxu0 %v2638
        %3615 = vmatmul.mubr.bf16.gmra.mrb[0].mxu0 %v2637
        %v3616 = vpop.f32.mrb[0].mxu0
        %v3617 = vadd.f32 %v3504, %v3616
        %v3618 = vpop.f32.mrb[0].mxu0
        %v3619 = vadd.f32 %v3506, %v3618
        %v3620 = vpop.f32.mrb[0].mxu0
        %v3621 = vadd.f32 %v3508, %v3620
        %v3622 = vpop.f32.mrb[0].mxu0
        %v3623 = vadd.f32 %v3510, %v3622
        %3624 = vmatprep.mubr.bf16.mxu0 %v2642
        %3625 = vmatmul.mubr.bf16.gmra.mrb[0].mxu0 %v2641
        %v3626 = vpop.f32.mrb[0].mxu0
        %v3627 = vadd.f32 %v3514, %v3626
        %v3628 = vpop.f32.mrb[0].mxu0
        %v3629 = vadd.f32 %v3516, %v3628
        %v3630 = vpop.f32.mrb[0].mxu0
        %v3631 = vadd.f32 %v3518, %v3630
        %v3632 = vpop.f32.mrb[0].mxu0
        %v3633 = vadd.f32 %v3520, %v3632
        %3634 = vmatprep.mubr.bf16.mxu0 %v2646
        %3635 = vmatmul.mubr.bf16.gmra.mrb[0].mxu0 %v2645
        %v3636 = vpop.f32.mrb[0].mxu0
        %v3637 = vadd.f32 %v3524, %v3636
        %v3638 = vpop.f32.mrb[0].mxu0
        %v3639 = vadd.f32 %v3526, %v3638
        %v3640 = vpop.f32.mrb[0].mxu0
        %v3641 = vadd.f32 %v3528, %v3640
        %v3642 = vpop.f32.mrb[0].mxu0
        %v3643 = vadd.f32 %v3530, %v3642
        %3644 = vmatprep.mubr.bf16.mxu0 %v2650
        %3645 = vmatmul.mubr.bf16.gmra.mrb[0].mxu0 %v2649
        %v3646 = vpop.f32.mrb[0].mxu0
        %v3647 = vadd.f32 %v3534, %v3646
        %v3648 = vpop.f32.mrb[0].mxu0
        %v3649 = vadd.f32 %v3536, %v3648
        %v3650 = vpop.f32.mrb[0].mxu0
        %v3651 = vadd.f32 %v3538, %v3650
        %v3652 = vpop.f32.mrb[0].mxu0
        %v3653 = vadd.f32 %v3540, %v3652
        %3654 = vmatprep.mubr.bf16.mxu0 %v2654
        %3655 = vmatmul.mubr.bf16.gmra.mrb[0].mxu0 %v2653
        %v3656 = vpop.f32.mrb[0].mxu0
        %v3657 = vadd.f32 %v3544, %v3656
        %v3658 = vpop.f32.mrb[0].mxu0
        %v3659 = vadd.f32 %v3546, %v3658
        %v3660 = vpop.f32.mrb[0].mxu0
        %v3661 = vadd.f32 %v3548, %v3660
        %v3662 = vpop.f32.mrb[0].mxu0
        %v3663 = vadd.f32 %v3550, %v3662
        %3664 = vmatprep.mubr.bf16.mxu0 %v2658
        %3665 = vmatmul.mubr.bf16.gmra.mrb[0].mxu0 %v2657
        %v3666 = vpop.f32.mrb[0].mxu0
        %v3667 = vadd.f32 %v3554, %v3666
        %v3668 = vpop.f32.mrb[0].mxu0
        %v3669 = vadd.f32 %v3556, %v3668
        %v3670 = vpop.f32.mrb[0].mxu0
        %v3671 = vadd.f32 %v3558, %v3670
        %v3672 = vpop.f32.mrb[0].mxu0
        %v3673 = vadd.f32 %v3560, %v3672
        %3674 = vdwg.mxu0
        %3675 = vmatprep.subr.bf16.mxu0 %v3196
        %3676 = vmatpush1.bf16.msra.mxu0 %v3195
        %3677 = vmatprep.subr.bf16.mxu0 %v3200
        %3678 = vmatpush1.bf16.msra.mxu0 %v3199
        %3679 = vmatprep.subr.bf16.mxu0 %v3204
        %3680 = vmatpush1.bf16.msra.mxu0 %v3203
        %3681 = vmatprep.subr.bf16.mxu0 %v3208
        %3682 = vmatpush1.bf16.msra.mxu0 %v3207
        %3683 = vmatprep.subr.bf16.mxu0 %v3212
        %3684 = vmatpush1.bf16.msra.mxu0 %v3211
        %3685 = vmatprep.subr.bf16.mxu0 %v3216
        %3686 = vmatpush1.bf16.msra.mxu0 %v3215
        %3687 = vmatprep.subr.bf16.mxu0 %v3220
        %3688 = vmatpush1.bf16.msra.mxu0 %v3219
        %3689 = vmatprep.subr.bf16.mxu0 %v3224
        %3690 = vmatpush1.bf16.msra.mxu0 %v3223
        %3691 = vmatprep.subr.bf16.mxu0 %v3228
        %3692 = vmatpush1.bf16.msra.mxu0 %v3227
        %3693 = vmatprep.subr.bf16.mxu0 %v3232
        %3694 = vmatpush1.bf16.msra.mxu0 %v3231
        %3695 = vmatprep.subr.bf16.mxu0 %v3236
        %3696 = vmatpush1.bf16.msra.mxu0 %v3235
        %3697 = vmatprep.subr.bf16.mxu0 %v3240
        %3698 = vmatpush1.bf16.msra.mxu0 %v3239
        %3699 = vmatprep.subr.bf16.mxu0 %v3244
        %3700 = vmatpush1.bf16.msra.mxu0 %v3243
        %3701 = vmatprep.subr.bf16.mxu0 %v3248
        %3702 = vmatpush1.bf16.msra.mxu0 %v3247
        %3703 = vmatprep.subr.bf16.mxu0 %v3252
        %3704 = vmatpush1.bf16.msra.mxu0 %v3251
        %3705 = vmatprep.subr.bf16.mxu0 %v3256
        %3706 = vmatpush1.bf16.msra.mxu0 %v3255
        %3707 = vmatprep.mubr.bf16.mxu0 %v2628
        %3708 = vmatmul.mubr.bf16.gmra.mrb[0].mxu0 %v2627
        %v3709 = vpop.f32.mrb[0].mxu0
        %v3710 = vadd.f32 %v2800, %v3709
        %v3711 = vpop.f32.mrb[0].mxu0
        %v3712 = vadd.f32 %v2804, %v3711
        %v3713 = vpop.f32.mrb[0].mxu0
        %v3714 = vadd.f32 %v2800, %v3713
        %v3715 = vpop.f32.mrb[0].mxu0
        %v3716 = vadd.f32 %v2804, %v3715
        %3717 = vmatprep.mubr.bf16.mxu0 %v2632
        %3718 = vmatmul.mubr.bf16.gmra.mrb[0].mxu0 %v2631
        %v3719 = vpop.f32.mrb[0].mxu0
        %v3720 = vadd.f32 %v2800, %v3719
        %v3721 = vpop.f32.mrb[0].mxu0
        %v3722 = vadd.f32 %v2804, %v3721
        %v3723 = vpop.f32.mrb[0].mxu0
        %v3724 = vadd.f32 %v2800, %v3723
        %v3725 = vpop.f32.mrb[0].mxu0
        %v3726 = vadd.f32 %v2804, %v3725
        %3727 = vmatprep.mubr.bf16.mxu0 %v2636
        %3728 = vmatmul.mubr.bf16.gmra.mrb[0].mxu0 %v2635
        %v3729 = vpop.f32.mrb[0].mxu0
        %v3730 = vadd.f32 %v2800, %v3729
        %v3731 = vpop.f32.mrb[0].mxu0
        %v3732 = vadd.f32 %v2804, %v3731
        %v3733 = vpop.f32.mrb[0].mxu0
        %v3734 = vadd.f32 %v2800, %v3733
        %v3735 = vpop.f32.mrb[0].mxu0
        %v3736 = vadd.f32 %v2804, %v3735
        %3737 = vmatprep.mubr.bf16.mxu0 %v2640
        %3738 = vmatmul.mubr.bf16.gmra.mrb[0].mxu0 %v2639
        %v3739 = vpop.f32.mrb[0].mxu0
        %v3740 = vadd.f32 %v2800, %v3739
        %v3741 = vpop.f32.mrb[0].mxu0
        %v3742 = vadd.f32 %v2804, %v3741
        %v3743 = vpop.f32.mrb[0].mxu0
        %v3744 = vadd.f32 %v2800, %v3743
        %v3745 = vpop.f32.mrb[0].mxu0
        %v3746 = vadd.f32 %v2804, %v3745
        %3747 = vmatprep.mubr.bf16.mxu0 %v2644
        %3748 = vmatmul.mubr.bf16.gmra.mrb[0].mxu0 %v2643
        %v3749 = vpop.f32.mrb[0].mxu0
        %v3750 = vadd.f32 %v2800, %v3749
        %v3751 = vpop.f32.mrb[0].mxu0
        %v3752 = vadd.f32 %v2804, %v3751
        %v3753 = vpop.f32.mrb[0].mxu0
        %v3754 = vadd.f32 %v2800, %v3753
        %v3755 = vpop.f32.mrb[0].mxu0
        %v3756 = vadd.f32 %v2804, %v3755
        %3757 = vmatprep.mubr.bf16.mxu0 %v2648
        %3758 = vmatmul.mubr.bf16.gmra.mrb[0].mxu0 %v2647
        %v3759 = vpop.f32.mrb[0].mxu0
        %v3760 = vadd.f32 %v2800, %v3759
        %v3761 = vpop.f32.mrb[0].mxu0
        %v3762 = vadd.f32 %v2804, %v3761
        %v3763 = vpop.f32.mrb[0].mxu0
        %v3764 = vadd.f32 %v2800, %v3763
        %v3765 = vpop.f32.mrb[0].mxu0
        %v3766 = vadd.f32 %v2804, %v3765
        %3767 = vmatprep.mubr.bf16.mxu0 %v2652
        %3768 = vmatmul.mubr.bf16.gmra.mrb[0].mxu0 %v2651
        %v3769 = vpop.f32.mrb[0].mxu0
        %v3770 = vadd.f32 %v2800, %v3769
        %v3771 = vpop.f32.mrb[0].mxu0
        %v3772 = vadd.f32 %v2804, %v3771
        %v3773 = vpop.f32.mrb[0].mxu0
        %v3774 = vadd.f32 %v2800, %v3773
        %v3775 = vpop.f32.mrb[0].mxu0
        %v3776 = vadd.f32 %v2804, %v3775
        %3777 = vmatprep.mubr.bf16.mxu0 %v2656
        %3778 = vmatmul.mubr.bf16.gmra.mrb[0].mxu0 %v2655
        %v3779 = vpop.f32.mrb[0].mxu0
        %v3780 = vadd.f32 %v2800, %v3779
        %v3781 = vpop.f32.mrb[0].mxu0
        %v3782 = vadd.f32 %v2804, %v3781
        %v3783 = vpop.f32.mrb[0].mxu0
        %v3784 = vadd.f32 %v2800, %v3783
        %v3785 = vpop.f32.mrb[0].mxu0
        %v3786 = vadd.f32 %v2804, %v3785
        %3787 = vdwg.mxu0
        %3788 = vmatprep.subr.bf16.mxu0 %v3260
        %3789 = vmatpush1.bf16.msra.mxu0 %v3259
        %3790 = vmatprep.subr.bf16.mxu0 %v3264
        %3791 = vmatpush1.bf16.msra.mxu0 %v3263
        %3792 = vmatprep.subr.bf16.mxu0 %v3268
        %3793 = vmatpush1.bf16.msra.mxu0 %v3267
        %3794 = vmatprep.subr.bf16.mxu0 %v3272
        %3795 = vmatpush1.bf16.msra.mxu0 %v3271
        %3796 = vmatprep.subr.bf16.mxu0 %v3276
        %3797 = vmatpush1.bf16.msra.mxu0 %v3275
        %3798 = vmatprep.subr.bf16.mxu0 %v3280
        %3799 = vmatpush1.bf16.msra.mxu0 %v3279
        %3800 = vmatprep.subr.bf16.mxu0 %v3284
        %3801 = vmatpush1.bf16.msra.mxu0 %v3283
        %3802 = vmatprep.subr.bf16.mxu0 %v3288
        %3803 = vmatpush1.bf16.msra.mxu0 %v3287
        %3804 = vmatprep.subr.bf16.mxu0 %v3292
        %3805 = vmatpush1.bf16.msra.mxu0 %v3291
        %3806 = vmatprep.subr.bf16.mxu0 %v3296
        %3807 = vmatpush1.bf16.msra.mxu0 %v3295
        %3808 = vmatprep.subr.bf16.mxu0 %v3300
        %3809 = vmatpush1.bf16.msra.mxu0 %v3299
        %3810 = vmatprep.subr.bf16.mxu0 %v3304
        %3811 = vmatpush1.bf16.msra.mxu0 %v3303
        %3812 = vmatprep.subr.bf16.mxu0 %v3308
        %3813 = vmatpush1.bf16.msra.mxu0 %v3307
        %3814 = vmatprep.subr.bf16.mxu0 %v3312
        %3815 = vmatpush1.bf16.msra.mxu0 %v3311
        %3816 = vmatprep.subr.bf16.mxu0 %v3316
        %3817 = vmatpush1.bf16.msra.mxu0 %v3315
        %3818 = vmatprep.subr.bf16.mxu0 %v3320
        %3819 = vmatpush1.bf16.msra.mxu0 %v3319
        %3820 = vmatprep.mubr.bf16.mxu0 %v2630
        %3821 = vmatmul.mubr.bf16.gmra.mrb[0].mxu0 %v2629
        %v3822 = vpop.f32.mrb[0].mxu0
        %v3823 = vadd.f32 %v3710, %v3822
        %v3824 = vpop.f32.mrb[0].mxu0
        %v3825 = vadd.f32 %v3712, %v3824
        %v3826 = vpop.f32.mrb[0].mxu0
        %v3827 = vadd.f32 %v3714, %v3826
        %v3828 = vpop.f32.mrb[0].mxu0
        %v3829 = vadd.f32 %v3716, %v3828
        %3830 = vmatprep.mubr.bf16.mxu0 %v2634
        %3831 = vmatmul.mubr.bf16.gmra.mrb[0].mxu0 %v2633
        %v3832 = vpop.f32.mrb[0].mxu0
        %v3833 = vadd.f32 %v3720, %v3832
        %v3834 = vpop.f32.mrb[0].mxu0
        %v3835 = vadd.f32 %v3722, %v3834
        %v3836 = vpop.f32.mrb[0].mxu0
        %v3837 = vadd.f32 %v3724, %v3836
        %v3838 = vpop.f32.mrb[0].mxu0
        %v3839 = vadd.f32 %v3726, %v3838
        %3840 = vmatprep.mubr.bf16.mxu0 %v2638
        %3841 = vmatmul.mubr.bf16.gmra.mrb[0].mxu0 %v2637
        %v3842 = vpop.f32.mrb[0].mxu0
        %v3843 = vadd.f32 %v3730, %v3842
        %v3844 = vpop.f32.mrb[0].mxu0
        %v3845 = vadd.f32 %v3732, %v3844
        %v3846 = vpop.f32.mrb[0].mxu0
        %v3847 = vadd.f32 %v3734, %v3846
        %v3848 = vpop.f32.mrb[0].mxu0
        %v3849 = vadd.f32 %v3736, %v3848
        %3850 = vmatprep.mubr.bf16.mxu0 %v2642
        %3851 = vmatmul.mubr.bf16.gmra.mrb[0].mxu0 %v2641
        %v3852 = vpop.f32.mrb[0].mxu0
        %v3853 = vadd.f32 %v3740, %v3852
        %v3854 = vpop.f32.mrb[0].mxu0
        %v3855 = vadd.f32 %v3742, %v3854
        %v3856 = vpop.f32.mrb[0].mxu0
        %v3857 = vadd.f32 %v3744, %v3856
        %v3858 = vpop.f32.mrb[0].mxu0
        %v3859 = vadd.f32 %v3746, %v3858
        %3860 = vmatprep.mubr.bf16.mxu0 %v2646
        %3861 = vmatmul.mubr.bf16.gmra.mrb[0].mxu0 %v2645
        %v3862 = vpop.f32.mrb[0].mxu0
        %v3863 = vadd.f32 %v3750, %v3862
        %v3864 = vpop.f32.mrb[0].mxu0
        %v3865 = vadd.f32 %v3752, %v3864
        %v3866 = vpop.f32.mrb[0].mxu0
        %v3867 = vadd.f32 %v3754, %v3866
        %v3868 = vpop.f32.mrb[0].mxu0
        %v3869 = vadd.f32 %v3756, %v3868
        %3870 = vmatprep.mubr.bf16.mxu0 %v2650
        %3871 = vmatmul.mubr.bf16.gmra.mrb[0].mxu0 %v2649
        %v3872 = vpop.f32.mrb[0].mxu0
        %v3873 = vadd.f32 %v3760, %v3872
        %v3874 = vpop.f32.mrb[0].mxu0
        %v3875 = vadd.f32 %v3762, %v3874
        %v3876 = vpop.f32.mrb[0].mxu0
        %v3877 = vadd.f32 %v3764, %v3876
        %v3878 = vpop.f32.mrb[0].mxu0
        %v3879 = vadd.f32 %v3766, %v3878
        %3880 = vmatprep.mubr.bf16.mxu0 %v2654
        %3881 = vmatmul.mubr.bf16.gmra.mrb[0].mxu0 %v2653
        %v3882 = vpop.f32.mrb[0].mxu0
        %v3883 = vadd.f32 %v3770, %v3882
        %v3884 = vpop.f32.mrb[0].mxu0
        %v3885 = vadd.f32 %v3772, %v3884
        %v3886 = vpop.f32.mrb[0].mxu0
        %v3887 = vadd.f32 %v3774, %v3886
        %v3888 = vpop.f32.mrb[0].mxu0
        %v3889 = vadd.f32 %v3776, %v3888
        %3890 = vmatprep.mubr.bf16.mxu0 %v2658
        %3891 = vmatmul.mubr.bf16.gmra.mrb[0].mxu0 %v2657
        %v3892 = vpop.f32.mrb[0].mxu0
        %v3893 = vadd.f32 %v3780, %v3892
        %v3894 = vpop.f32.mrb[0].mxu0
        %v3895 = vadd.f32 %v3782, %v3894
        %v3896 = vpop.f32.mrb[0].mxu0
        %v3897 = vadd.f32 %v3784, %v3896
        %v3898 = vpop.f32.mrb[0].mxu0
        %v3899 = vadd.f32 %v3786, %v3898
        %3900 = vdwg.mxu0
        %s3901 = smul.u32 %s27, 128
        %v3902 = vpack.c.bf16 %v3601, %v3597
        %v3903 = vpack.c.bf16 %v3603, %v3599
        %v3904 = vpack.c.bf16 %v3827, %v3823
        %v3905 = vpack.c.bf16 %v3829, %v3825
        %v3906 = vpack.c.bf16 %v3611, %v3607
        %v3907 = vpack.c.bf16 %v3613, %v3609
        %v3908 = vpack.c.bf16 %v3837, %v3833
        %v3909 = vpack.c.bf16 %v3839, %v3835
        %v3910 = vpack.c.bf16 %v3621, %v3617
        %v3911 = vpack.c.bf16 %v3623, %v3619
        %v3912 = vpack.c.bf16 %v3847, %v3843
        %v3913 = vpack.c.bf16 %v3849, %v3845
        %v3914 = vpack.c.bf16 %v3631, %v3627
        %v3915 = vpack.c.bf16 %v3633, %v3629
        %v3916 = vpack.c.bf16 %v3857, %v3853
        %v3917 = vpack.c.bf16 %v3859, %v3855
        %v3918 = vpack.c.bf16 %v3641, %v3637
        %v3919 = vpack.c.bf16 %v3643, %v3639
        %v3920 = vpack.c.bf16 %v3867, %v3863
        %v3921 = vpack.c.bf16 %v3869, %v3865
        %v3922 = vpack.c.bf16 %v3651, %v3647
        %v3923 = vpack.c.bf16 %v3653, %v3649
        %v3924 = vpack.c.bf16 %v3877, %v3873
        %v3925 = vpack.c.bf16 %v3879, %v3875
        %v3926 = vpack.c.bf16 %v3661, %v3657
        %v3927 = vpack.c.bf16 %v3663, %v3659
        %v3928 = vpack.c.bf16 %v3887, %v3883
        %v3929 = vpack.c.bf16 %v3889, %v3885
        %v3930 = vpack.c.bf16 %v3671, %v3667
        %v3931 = vpack.c.bf16 %v3673, %v3669
        %v3932 = vpack.c.bf16 %v3897, %v3893
        %v3933 = vpack.c.bf16 %v3899, %v3895
        %s3934 = sshra.s32 %s3901, 4
        %s3935 = sand.u32 %s3901, 15
        %s3936 = smul.u32 %s3934, 4
        %s3937 = smul.addr %s3936, 8
        %s3938 = scalar_lea.vmem [#allocation2], %s3937
        %3939 = vst [vmem:[%s3938] sm:$0xff] %v3902
        %3940 = vst [vmem:[%s3938 + $0x8] sm:$0xff] %v3903
        %3941 = vst [vmem:[%s3938 + $0x10] sm:$0xff] %v3904
        %3942 = vst [vmem:[%s3938 + $0x18] sm:$0xff] %v3905
        %3943 = vst [vmem:[%s3938 + $0x20] sm:$0xff] %v3906
        %3944 = vst [vmem:[%s3938 + $0x28] sm:$0xff] %v3907
        %3945 = vst [vmem:[%s3938 + $0x30] sm:$0xff] %v3908
        %3946 = vst [vmem:[%s3938 + $0x38] sm:$0xff] %v3909
        %3947 = vst [vmem:[%s3938 + $0x40] sm:$0xff] %v3910
        %3948 = vst [vmem:[%s3938 + $0x48] sm:$0xff] %v3911
        %3949 = vst [vmem:[%s3938 + $0x50] sm:$0xff] %v3912
        %3950 = vst [vmem:[%s3938 + $0x58] sm:$0xff] %v3913
        %3951 = vst [vmem:[%s3938 + $0x60] sm:$0xff] %v3914
        %3952 = vst [vmem:[%s3938 + $0x68] sm:$0xff] %v3915
        %3953 = vst [vmem:[%s3938 + $0x70] sm:$0xff] %v3916
        %3954 = vst [vmem:[%s3938 + $0x78] sm:$0xff] %v3917
        %3955 = vst [vmem:[%s3938 + $0x80] sm:$0xff] %v3918
        %3956 = vst [vmem:[%s3938 + $0x88] sm:$0xff] %v3919
        %3957 = vst [vmem:[%s3938 + $0x90] sm:$0xff] %v3920
        %3958 = vst [vmem:[%s3938 + $0x98] sm:$0xff] %v3921
        %3959 = vst [vmem:[%s3938 + $0xa0] sm:$0xff] %v3922
        %3960 = vst [vmem:[%s3938 + $0xa8] sm:$0xff] %v3923
        %3961 = vst [vmem:[%s3938 + $0xb0] sm:$0xff] %v3924
        %3962 = vst [vmem:[%s3938 + $0xb8] sm:$0xff] %v3925
        %3963 = vst [vmem:[%s3938 + $0xc0] sm:$0xff] %v3926
        %3964 = vst [vmem:[%s3938 + $0xc8] sm:$0xff] %v3927
        %3965 = vst [vmem:[%s3938 + $0xd0] sm:$0xff] %v3928
        %3966 = vst [vmem:[%s3938 + $0xd8] sm:$0xff] %v3929
        %3967 = vst [vmem:[%s3938 + $0xe0] sm:$0xff] %v3930
        %3968 = vst [vmem:[%s3938 + $0xe8] sm:$0xff] %v3931
        %3969 = vst [vmem:[%s3938 + $0xf0] sm:$0xff] %v3932
        %3970 = vst [vmem:[%s3938 + $0xf8] sm:$0xff] %v3933
        %v3971 = vld [vmem:[#allocation3] sm:$0xf]
        %v3972 = vadd.f32 %v3597, %v3601
        %v3973 = vadd.f32 %v3972, %v3607
        %v3974 = vadd.f32 %v3973, %v3611
        %v3975 = vadd.f32 %v3974, %v3617
        %v3976 = vadd.f32 %v3975, %v3621
        %v3977 = vadd.f32 %v3976, %v3627
        %v3978 = vadd.f32 %v3977, %v3631
        %v3979 = vadd.f32 %v3978, %v3637
        %v3980 = vadd.f32 %v3979, %v3641
        %v3981 = vadd.f32 %v3980, %v3647
        %v3982 = vadd.f32 %v3981, %v3651
        %v3983 = vadd.f32 %v3982, %v3657
        %v3984 = vadd.f32 %v3983, %v3661
        %v3985 = vadd.f32 %v3984, %v3667
        %v3986 = vadd.f32 %v3985, %v3671
        %v3987 = vrot.slane %v3986, 4
        %v3988 = vadd.f32 %v3986, %v3987
        %v3989 = vrot.slane %v3988, 2
        %v3990 = vadd.f32 %v3988, %v3989
        %v3991 = vrot.slane %v3990, 1
        %v3992 = vadd.f32 %v3990, %v3991
        %v3993 = vadd.f32 %v3599, %v3603
        %v3994 = vadd.f32 %v3993, %v3609
        %v3995 = vadd.f32 %v3994, %v3613
        %v3996 = vadd.f32 %v3995, %v3619
        %v3997 = vadd.f32 %v3996, %v3623
        %v3998 = vadd.f32 %v3997, %v3629
        %v3999 = vadd.f32 %v3998, %v3633
        %v4000 = vadd.f32 %v3999, %v3639
        %v4001 = vadd.f32 %v4000, %v3643
        %v4002 = vadd.f32 %v4001, %v3649
        %v4003 = vadd.f32 %v4002, %v3653
        %v4004 = vadd.f32 %v4003, %v3659
        %v4005 = vadd.f32 %v4004, %v3663
        %v4006 = vadd.f32 %v4005, %v3669
        %v4007 = vadd.f32 %v4006, %v3673
        %v4008 = vrot.slane %v4007, 4
        %v4009 = vadd.f32 %v4007, %v4008
        %v4010 = vrot.slane %v4009, 2
        %v4011 = vadd.f32 %v4009, %v4010
        %v4012 = vrot.slane %v4011, 1
        %v4013 = vadd.f32 %v4011, %v4012
        %v4014 = vadd.f32 %v3823, %v3827
        %v4015 = vadd.f32 %v4014, %v3833
        %v4016 = vadd.f32 %v4015, %v3837
        %v4017 = vadd.f32 %v4016, %v3843
        %v4018 = vadd.f32 %v4017, %v3847
        %v4019 = vadd.f32 %v4018, %v3853
        %v4020 = vadd.f32 %v4019, %v3857
        %v4021 = vadd.f32 %v4020, %v3863
        %v4022 = vadd.f32 %v4021, %v3867
        %v4023 = vadd.f32 %v4022, %v3873
        %v4024 = vadd.f32 %v4023, %v3877
        %v4025 = vadd.f32 %v4024, %v3883
        %v4026 = vadd.f32 %v4025, %v3887
        %v4027 = vadd.f32 %v4026, %v3893
        %v4028 = vadd.f32 %v4027, %v3897
        %v4029 = vrot.slane %v4028, 4
        %v4030 = vadd.f32 %v4028, %v4029
        %v4031 = vrot.slane %v4030, 2
        %v4032 = vadd.f32 %v4030, %v4031
        %v4033 = vrot.slane %v4032, 1
        %v4034 = vadd.f32 %v4032, %v4033
        %v4035 = vadd.f32 %v3825, %v3829
        %v4036 = vadd.f32 %v4035, %v3835
        %v4037 = vadd.f32 %v4036, %v3839
        %v4038 = vadd.f32 %v4037, %v3845
        %v4039 = vadd.f32 %v4038, %v3849
        %v4040 = vadd.f32 %v4039, %v3855
        %v4041 = vadd.f32 %v4040, %v3859
        %v4042 = vadd.f32 %v4041, %v3865
        %v4043 = vadd.f32 %v4042, %v3869
        %v4044 = vadd.f32 %v4043, %v3875
        %v4045 = vadd.f32 %v4044, %v3879
        %v4046 = vadd.f32 %v4045, %v3885
        %v4047 = vadd.f32 %v4046, %v3889
        %v4048 = vadd.f32 %v4047, %v3895
        %v4049 = vadd.f32 %v4048, %v3899
        %v4050 = vrot.slane %v4049, 4
        %v4051 = vadd.f32 %v4049, %v4050
        %v4052 = vrot.slane %v4051, 2
        %v4053 = vadd.f32 %v4051, %v4052
        %v4054 = vrot.slane %v4053, 1
        %v4055 = vadd.f32 %v4053, %v4054
        %v4060 = vcombine.low %v3992, %v4013
        %v4061 = vcombine.low %v4034, %v4055
        %v4063 = vunpack.c.l.s4 1966171168
        %v4064 = vunpack.c.0.s8 %v4063
        %v4065 = vlaneseq
        %v4066 = vshrl.u32 %v4065, 7
        %v4067 = vsub.s32 %v4064, %v4066
        %v4068 = vrot.slane %v4060, %v4067
        %v4070 = vunpack.c.l.s4 1966171168
        %v4071 = vunpack.c.0.s8 %v4070
        %v4072 = vlaneseq
        %v4073 = vshrl.u32 %v4072, 7
        %v4074 = vsub.s32 %v4071, %v4073
        %v4075 = vrot.slane %v4061, %v4074
        %v4076 = vcombine.low %v4068, %v4075
        %v4078 = vunpack.c.l.s4 1966171168
        %v4079 = vunpack.c.0.s8 %v4078
        %v4080 = vlaneseq
        %v4081 = vshrl.u32 %v4080, 7
        %v4082 = vsub.s32 %v4079, %v4081
        %v4083 = vrot.slane %v4076, %v4082
        %v4085 = vadd.f32 %v3971, %v4083
        %v4086 = vlaneseq
        %vm4087 = vcmp.ge.s32.totalorder %v4086, 0
        %vm4088 = vcmp.lt.s32.totalorder %v4086, 512
        %vm4089 = vmand %vm4087, %vm4088
        %4090 = vst.msk [vmem:[#allocation3] sm:$0xf] %vm4089, %v4085
        %v4091 = vld [vmem:[#allocation4] sm:$0xf]
        %v4092 = vmul.f32 %v3597, %v3597
        %v4093 = vmul.f32 %v3599, %v3599
        %v4094 = vmul.f32 %v3823, %v3823
        %v4095 = vmul.f32 %v3825, %v3825
        %v4096 = vmul.f32 %v3601, %v3601
        %v4097 = vmul.f32 %v3603, %v3603
        %v4098 = vmul.f32 %v3827, %v3827
        %v4099 = vmul.f32 %v3829, %v3829
        %v4100 = vmul.f32 %v3607, %v3607
        %v4101 = vmul.f32 %v3609, %v3609
        %v4102 = vmul.f32 %v3833, %v3833
        %v4103 = vmul.f32 %v3835, %v3835
        %v4104 = vmul.f32 %v3611, %v3611
        %v4105 = vmul.f32 %v3613, %v3613
        %v4106 = vmul.f32 %v3837, %v3837
        %v4107 = vmul.f32 %v3839, %v3839
        %v4108 = vmul.f32 %v3617, %v3617
        %v4109 = vmul.f32 %v3619, %v3619
        %v4110 = vmul.f32 %v3843, %v3843
        %v4111 = vmul.f32 %v3845, %v3845
        %v4112 = vmul.f32 %v3621, %v3621
        %v4113 = vmul.f32 %v3623, %v3623
        %v4114 = vmul.f32 %v3847, %v3847
        %v4115 = vmul.f32 %v3849, %v3849
        %v4116 = vmul.f32 %v3627, %v3627
        %v4117 = vmul.f32 %v3629, %v3629
        %v4118 = vmul.f32 %v3853, %v3853
        %v4119 = vmul.f32 %v3855, %v3855
        %v4120 = vmul.f32 %v3631, %v3631
        %v4121 = vmul.f32 %v3633, %v3633
        %v4122 = vmul.f32 %v3857, %v3857
        %v4123 = vmul.f32 %v3859, %v3859
        %v4124 = vmul.f32 %v3637, %v3637
        %v4125 = vmul.f32 %v3639, %v3639
        %v4126 = vmul.f32 %v3863, %v3863
        %v4127 = vmul.f32 %v3865, %v3865
        %v4128 = vmul.f32 %v3641, %v3641
        %v4129 = vmul.f32 %v3643, %v3643
        %v4130 = vmul.f32 %v3867, %v3867
        %v4131 = vmul.f32 %v3869, %v3869
        %v4132 = vmul.f32 %v3647, %v3647
        %v4133 = vmul.f32 %v3649, %v3649
        %v4134 = vmul.f32 %v3873, %v3873
        %v4135 = vmul.f32 %v3875, %v3875
        %v4136 = vmul.f32 %v3651, %v3651
        %v4137 = vmul.f32 %v3653, %v3653
        %v4138 = vmul.f32 %v3877, %v3877
        %v4139 = vmul.f32 %v3879, %v3879
        %v4140 = vmul.f32 %v3657, %v3657
        %v4141 = vmul.f32 %v3659, %v3659
        %v4142 = vmul.f32 %v3883, %v3883
        %v4143 = vmul.f32 %v3885, %v3885
        %v4144 = vmul.f32 %v3661, %v3661
        %v4145 = vmul.f32 %v3663, %v3663
        %v4146 = vmul.f32 %v3887, %v3887
        %v4147 = vmul.f32 %v3889, %v3889
        %v4148 = vmul.f32 %v3667, %v3667
        %v4149 = vmul.f32 %v3669, %v3669
        %v4150 = vmul.f32 %v3893, %v3893
        %v4151 = vmul.f32 %v3895, %v3895
        %v4152 = vmul.f32 %v3671, %v3671
        %v4153 = vmul.f32 %v3673, %v3673
        %v4154 = vmul.f32 %v3897, %v3897
        %v4155 = vmul.f32 %v3899, %v3899
        %v4156 = vadd.f32 %v4092, %v4096
        %v4157 = vadd.f32 %v4156, %v4100
        %v4158 = vadd.f32 %v4157, %v4104
        %v4159 = vadd.f32 %v4158, %v4108
        %v4160 = vadd.f32 %v4159, %v4112
        %v4161 = vadd.f32 %v4160, %v4116
        %v4162 = vadd.f32 %v4161, %v4120
        %v4163 = vadd.f32 %v4162, %v4124
        %v4164 = vadd.f32 %v4163, %v4128
        %v4165 = vadd.f32 %v4164, %v4132
        %v4166 = vadd.f32 %v4165, %v4136
        %v4167 = vadd.f32 %v4166, %v4140
        %v4168 = vadd.f32 %v4167, %v4144
        %v4169 = vadd.f32 %v4168, %v4148
        %v4170 = vadd.f32 %v4169, %v4152
        %v4171 = vrot.slane %v4170, 4
        %v4172 = vadd.f32 %v4170, %v4171
        %v4173 = vrot.slane %v4172, 2
        %v4174 = vadd.f32 %v4172, %v4173
        %v4175 = vrot.slane %v4174, 1
        %v4176 = vadd.f32 %v4174, %v4175
        %v4177 = vadd.f32 %v4093, %v4097
        %v4178 = vadd.f32 %v4177, %v4101
        %v4179 = vadd.f32 %v4178, %v4105
        %v4180 = vadd.f32 %v4179, %v4109
        %v4181 = vadd.f32 %v4180, %v4113
        %v4182 = vadd.f32 %v4181, %v4117
        %v4183 = vadd.f32 %v4182, %v4121
        %v4184 = vadd.f32 %v4183, %v4125
        %v4185 = vadd.f32 %v4184, %v4129
        %v4186 = vadd.f32 %v4185, %v4133
        %v4187 = vadd.f32 %v4186, %v4137
        %v4188 = vadd.f32 %v4187, %v4141
        %v4189 = vadd.f32 %v4188, %v4145
        %v4190 = vadd.f32 %v4189, %v4149
        %v4191 = vadd.f32 %v4190, %v4153
        %v4192 = vrot.slane %v4191, 4
        %v4193 = vadd.f32 %v4191, %v4192
        %v4194 = vrot.slane %v4193, 2
        %v4195 = vadd.f32 %v4193, %v4194
        %v4196 = vrot.slane %v4195, 1
        %v4197 = vadd.f32 %v4195, %v4196
        %v4198 = vadd.f32 %v4094, %v4098
        %v4199 = vadd.f32 %v4198, %v4102
        %v4200 = vadd.f32 %v4199, %v4106
        %v4201 = vadd.f32 %v4200, %v4110
        %v4202 = vadd.f32 %v4201, %v4114
        %v4203 = vadd.f32 %v4202, %v4118
        %v4204 = vadd.f32 %v4203, %v4122
        %v4205 = vadd.f32 %v4204, %v4126
        %v4206 = vadd.f32 %v4205, %v4130
        %v4207 = vadd.f32 %v4206, %v4134
        %v4208 = vadd.f32 %v4207, %v4138
        %v4209 = vadd.f32 %v4208, %v4142
        %v4210 = vadd.f32 %v4209, %v4146
        %v4211 = vadd.f32 %v4210, %v4150
        %v4212 = vadd.f32 %v4211, %v4154
        %v4213 = vrot.slane %v4212, 4
        %v4214 = vadd.f32 %v4212, %v4213
        %v4215 = vrot.slane %v4214, 2
        %v4216 = vadd.f32 %v4214, %v4215
        %v4217 = vrot.slane %v4216, 1
        %v4218 = vadd.f32 %v4216, %v4217
        %v4219 = vadd.f32 %v4095, %v4099
        %v4220 = vadd.f32 %v4219, %v4103
        %v4221 = vadd.f32 %v4220, %v4107
        %v4222 = vadd.f32 %v4221, %v4111
        %v4223 = vadd.f32 %v4222, %v4115
        %v4224 = vadd.f32 %v4223, %v4119
        %v4225 = vadd.f32 %v4224, %v4123
        %v4226 = vadd.f32 %v4225, %v4127
        %v4227 = vadd.f32 %v4226, %v4131
        %v4228 = vadd.f32 %v4227, %v4135
        %v4229 = vadd.f32 %v4228, %v4139
        %v4230 = vadd.f32 %v4229, %v4143
        %v4231 = vadd.f32 %v4230, %v4147
        %v4232 = vadd.f32 %v4231, %v4151
        %v4233 = vadd.f32 %v4232, %v4155
        %v4234 = vrot.slane %v4233, 4
        %v4235 = vadd.f32 %v4233, %v4234
        %v4236 = vrot.slane %v4235, 2
        %v4237 = vadd.f32 %v4235, %v4236
        %v4238 = vrot.slane %v4237, 1
        %v4239 = vadd.f32 %v4237, %v4238
        %v4244 = vcombine.low %v4176, %v4197
        %v4245 = vcombine.low %v4218, %v4239
        %v4247 = vunpack.c.l.s4 1966171168
        %v4248 = vunpack.c.0.s8 %v4247
        %v4249 = vlaneseq
        %v4250 = vshrl.u32 %v4249, 7
        %v4251 = vsub.s32 %v4248, %v4250
        %v4252 = vrot.slane %v4244, %v4251
        %v4254 = vunpack.c.l.s4 1966171168
        %v4255 = vunpack.c.0.s8 %v4254
        %v4256 = vlaneseq
        %v4257 = vshrl.u32 %v4256, 7
        %v4258 = vsub.s32 %v4255, %v4257
        %v4259 = vrot.slane %v4245, %v4258
        %v4260 = vcombine.low %v4252, %v4259
        %v4262 = vunpack.c.l.s4 1966171168
        %v4263 = vunpack.c.0.s8 %v4262
        %v4264 = vlaneseq
        %v4265 = vshrl.u32 %v4264, 7
        %v4266 = vsub.s32 %v4263, %v4265
        %v4267 = vrot.slane %v4260, %v4266
        %v4269 = vadd.f32 %v4091, %v4267
        %4270 = vst.msk [vmem:[#allocation4] sm:$0xf] %vm4089, %v4269
        %p4271 = scmp.eq.s32.totalorder %s27, 1
        // Predicated region
        $region81: #{tpu_custom_call.1} parent=59 // pred_check
          %p4272 = pneg %p4271
        $region82: #{tpu_custom_call.1} parent=59 // pred_check_branch
          %4274 = sbr.rel (%p4272) target = $region84
        $region83: #{tpu_custom_call.1} parent=59 // pred_region
          %v4275 = vld [vmem:[#allocation3] sm:$0xf]
          %v4276 = vmul.f32 %v4275, 0.00390625
          %v4277 = vld [vmem:[#allocation4] sm:$0xf]
          %v4278 = vmul.f32 %v4277, 0.00390625
          %v4279 = vmul.f32 %v4276, %v4276
          %v4280 = vsub.f32 %v4278, %v4279
          %v4281 = vld [vmem:[%s5] sm:$0xf]
          %v4282 = vadd.f32 %v4280, 1e-05
          %v4283 = vrsqrt.pop %v4282
          %v4284 = vmul.f32 %v4281, %v4283
          %v4285 = vld [vmem:[%s6] sm:$0xf]
          %v4286 = vmul.f32 %v4276, %v4284
          %v4287 = vsub.f32 %v4285, %v4286
          %v4288 = vld [vmem:[#allocation2] sm:$0xff]
          %v4289 = vld [vmem:[#allocation2 + $0x8] sm:$0xff]
          %v4290 = vld [vmem:[#allocation2 + $0x10] sm:$0xff]
          %v4291 = vld [vmem:[#allocation2 + $0x18] sm:$0xff]
          %v4292 = vld [vmem:[#allocation2 + $0x20] sm:$0xff]
          %v4293 = vld [vmem:[#allocation2 + $0x28] sm:$0xff]
          %v4294 = vld [vmem:[#allocation2 + $0x30] sm:$0xff]
          %v4295 = vld [vmem:[#allocation2 + $0x38] sm:$0xff]
          %v4296 = vld [vmem:[#allocation2 + $0x40] sm:$0xff]
          %v4297 = vld [vmem:[#allocation2 + $0x48] sm:$0xff]
          %v4298 = vld [vmem:[#allocation2 + $0x50] sm:$0xff]
          %v4299 = vld [vmem:[#allocation2 + $0x58] sm:$0xff]
          %v4300 = vld [vmem:[#allocation2 + $0x60] sm:$0xff]
          %v4301 = vld [vmem:[#allocation2 + $0x68] sm:$0xff]
          %v4302 = vld [vmem:[#allocation2 + $0x70] sm:$0xff]
          %v4303 = vld [vmem:[#allocation2 + $0x78] sm:$0xff]
          %v4304 = vld [vmem:[#allocation2 + $0x80] sm:$0xff]
          %v4305 = vld [vmem:[#allocation2 + $0x88] sm:$0xff]
          %v4306 = vld [vmem:[#allocation2 + $0x90] sm:$0xff]
          %v4307 = vld [vmem:[#allocation2 + $0x98] sm:$0xff]
          %v4308 = vld [vmem:[#allocation2 + $0xa0] sm:$0xff]
          %v4309 = vld [vmem:[#allocation2 + $0xa8] sm:$0xff]
          %v4310 = vld [vmem:[#allocation2 + $0xb0] sm:$0xff]
          %v4311 = vld [vmem:[#allocation2 + $0xb8] sm:$0xff]
          %v4312 = vld [vmem:[#allocation2 + $0xc0] sm:$0xff]
          %v4313 = vld [vmem:[#allocation2 + $0xc8] sm:$0xff]
          %v4314 = vld [vmem:[#allocation2 + $0xd0] sm:$0xff]
          %v4315 = vld [vmem:[#allocation2 + $0xd8] sm:$0xff]
          %v4316 = vld [vmem:[#allocation2 + $0xe0] sm:$0xff]
          %v4317 = vld [vmem:[#allocation2 + $0xe8] sm:$0xff]
          %v4318 = vld [vmem:[#allocation2 + $0xf0] sm:$0xff]
          %v4319 = vld [vmem:[#allocation2 + $0xf8] sm:$0xff]
          %v4320 = vld [vmem:[#allocation2 + $0x100] sm:$0xff]
          %v4321 = vld [vmem:[#allocation2 + $0x108] sm:$0xff]
          %v4322 = vld [vmem:[#allocation2 + $0x110] sm:$0xff]
          %v4323 = vld [vmem:[#allocation2 + $0x118] sm:$0xff]
          %v4324 = vld [vmem:[#allocation2 + $0x120] sm:$0xff]
          %v4325 = vld [vmem:[#allocation2 + $0x128] sm:$0xff]
          %v4326 = vld [vmem:[#allocation2 + $0x130] sm:$0xff]
          %v4327 = vld [vmem:[#allocation2 + $0x138] sm:$0xff]
          %v4328 = vld [vmem:[#allocation2 + $0x140] sm:$0xff]
          %v4329 = vld [vmem:[#allocation2 + $0x148] sm:$0xff]
          %v4330 = vld [vmem:[#allocation2 + $0x150] sm:$0xff]
          %v4331 = vld [vmem:[#allocation2 + $0x158] sm:$0xff]
          %v4332 = vld [vmem:[#allocation2 + $0x160] sm:$0xff]
          %v4333 = vld [vmem:[#allocation2 + $0x168] sm:$0xff]
          %v4334 = vld [vmem:[#allocation2 + $0x170] sm:$0xff]
          %v4335 = vld [vmem:[#allocation2 + $0x178] sm:$0xff]
          %v4336 = vld [vmem:[#allocation2 + $0x180] sm:$0xff]
          %v4337 = vld [vmem:[#allocation2 + $0x188] sm:$0xff]
          %v4338 = vld [vmem:[#allocation2 + $0x190] sm:$0xff]
          %v4339 = vld [vmem:[#allocation2 + $0x198] sm:$0xff]
          %v4340 = vld [vmem:[#allocation2 + $0x1a0] sm:$0xff]
          %v4341 = vld [vmem:[#allocation2 + $0x1a8] sm:$0xff]
          %v4342 = vld [vmem:[#allocation2 + $0x1b0] sm:$0xff]
          %v4343 = vld [vmem:[#allocation2 + $0x1b8] sm:$0xff]
          %v4344 = vld [vmem:[#allocation2 + $0x1c0] sm:$0xff]
          %v4345 = vld [vmem:[#allocation2 + $0x1c8] sm:$0xff]
          %v4346 = vld [vmem:[#allocation2 + $0x1d0] sm:$0xff]
          %v4347 = vld [vmem:[#allocation2 + $0x1d8] sm:$0xff]
          %v4348 = vld [vmem:[#allocation2 + $0x1e0] sm:$0xff]
          %v4349 = vld [vmem:[#allocation2 + $0x1e8] sm:$0xff]
          %v4350 = vld [vmem:[#allocation2 + $0x1f0] sm:$0xff]
          %v4351 = vld [vmem:[#allocation2 + $0x1f8] sm:$0xff]
          %v4352 = vunpack.c.l.bf16 %v4288
          %v4353 = vunpack.c.l.bf16 %v4289
          %v4354 = vunpack.c.l.bf16 %v4290
          %v4355 = vunpack.c.l.bf16 %v4291
          %v4356 = vunpack.c.h.bf16 %v4288
          %v4357 = vunpack.c.h.bf16 %v4289
          %v4358 = vunpack.c.h.bf16 %v4290
          %v4359 = vunpack.c.h.bf16 %v4291
          %v4360 = vunpack.c.l.bf16 %v4292
          %v4361 = vunpack.c.l.bf16 %v4293
          %v4362 = vunpack.c.l.bf16 %v4294
          %v4363 = vunpack.c.l.bf16 %v4295
          %v4364 = vunpack.c.h.bf16 %v4292
          %v4365 = vunpack.c.h.bf16 %v4293
          %v4366 = vunpack.c.h.bf16 %v4294
          %v4367 = vunpack.c.h.bf16 %v4295
          %v4368 = vunpack.c.l.bf16 %v4296
          %v4369 = vunpack.c.l.bf16 %v4297
          %v4370 = vunpack.c.l.bf16 %v4298
          %v4371 = vunpack.c.l.bf16 %v4299
          %v4372 = vunpack.c.h.bf16 %v4296
          %v4373 = vunpack.c.h.bf16 %v4297
          %v4374 = vunpack.c.h.bf16 %v4298
          %v4375 = vunpack.c.h.bf16 %v4299
          %v4376 = vunpack.c.l.bf16 %v4300
          %v4377 = vunpack.c.l.bf16 %v4301
          %v4378 = vunpack.c.l.bf16 %v4302
          %v4379 = vunpack.c.l.bf16 %v4303
          %v4380 = vunpack.c.h.bf16 %v4300
          %v4381 = vunpack.c.h.bf16 %v4301
          %v4382 = vunpack.c.h.bf16 %v4302
          %v4383 = vunpack.c.h.bf16 %v4303
          %v4384 = vunpack.c.l.bf16 %v4304
          %v4385 = vunpack.c.l.bf16 %v4305
          %v4386 = vunpack.c.l.bf16 %v4306
          %v4387 = vunpack.c.l.bf16 %v4307
          %v4388 = vunpack.c.h.bf16 %v4304
          %v4389 = vunpack.c.h.bf16 %v4305
          %v4390 = vunpack.c.h.bf16 %v4306
          %v4391 = vunpack.c.h.bf16 %v4307
          %v4392 = vunpack.c.l.bf16 %v4308
          %v4393 = vunpack.c.l.bf16 %v4309
          %v4394 = vunpack.c.l.bf16 %v4310
          %v4395 = vunpack.c.l.bf16 %v4311
          %v4396 = vunpack.c.h.bf16 %v4308
          %v4397 = vunpack.c.h.bf16 %v4309
          %v4398 = vunpack.c.h.bf16 %v4310
          %v4399 = vunpack.c.h.bf16 %v4311
          %v4400 = vunpack.c.l.bf16 %v4312
          %v4401 = vunpack.c.l.bf16 %v4313
          %v4402 = vunpack.c.l.bf16 %v4314
          %v4403 = vunpack.c.l.bf16 %v4315
          %v4404 = vunpack.c.h.bf16 %v4312
          %v4405 = vunpack.c.h.bf16 %v4313
          %v4406 = vunpack.c.h.bf16 %v4314
          %v4407 = vunpack.c.h.bf16 %v4315
          %v4408 = vunpack.c.l.bf16 %v4316
          %v4409 = vunpack.c.l.bf16 %v4317
          %v4410 = vunpack.c.l.bf16 %v4318
          %v4411 = vunpack.c.l.bf16 %v4319
          %v4412 = vunpack.c.h.bf16 %v4316
          %v4413 = vunpack.c.h.bf16 %v4317
          %v4414 = vunpack.c.h.bf16 %v4318
          %v4415 = vunpack.c.h.bf16 %v4319
          %v4416 = vunpack.c.l.bf16 %v4320
          %v4417 = vunpack.c.l.bf16 %v4321
          %v4418 = vunpack.c.l.bf16 %v4322
          %v4419 = vunpack.c.l.bf16 %v4323
          %v4420 = vunpack.c.h.bf16 %v4320
          %v4421 = vunpack.c.h.bf16 %v4321
          %v4422 = vunpack.c.h.bf16 %v4322
          %v4423 = vunpack.c.h.bf16 %v4323
          %v4424 = vunpack.c.l.bf16 %v4324
          %v4425 = vunpack.c.l.bf16 %v4325
          %v4426 = vunpack.c.l.bf16 %v4326
          %v4427 = vunpack.c.l.bf16 %v4327
          %v4428 = vunpack.c.h.bf16 %v4324
          %v4429 = vunpack.c.h.bf16 %v4325
          %v4430 = vunpack.c.h.bf16 %v4326
          %v4431 = vunpack.c.h.bf16 %v4327
          %v4432 = vunpack.c.l.bf16 %v4328
          %v4433 = vunpack.c.l.bf16 %v4329
          %v4434 = vunpack.c.l.bf16 %v4330
          %v4435 = vunpack.c.l.bf16 %v4331
          %v4436 = vunpack.c.h.bf16 %v4328
          %v4437 = vunpack.c.h.bf16 %v4329
          %v4438 = vunpack.c.h.bf16 %v4330
          %v4439 = vunpack.c.h.bf16 %v4331
          %v4440 = vunpack.c.l.bf16 %v4332
          %v4441 = vunpack.c.l.bf16 %v4333
          %v4442 = vunpack.c.l.bf16 %v4334
          %v4443 = vunpack.c.l.bf16 %v4335
          %v4444 = vunpack.c.h.bf16 %v4332
          %v4445 = vunpack.c.h.bf16 %v4333
          %v4446 = vunpack.c.h.bf16 %v4334
          %v4447 = vunpack.c.h.bf16 %v4335
          %v4448 = vunpack.c.l.bf16 %v4336
          %v4449 = vunpack.c.l.bf16 %v4337
          %v4450 = vunpack.c.l.bf16 %v4338
          %v4451 = vunpack.c.l.bf16 %v4339
          %v4452 = vunpack.c.h.bf16 %v4336
          %v4453 = vunpack.c.h.bf16 %v4337
          %v4454 = vunpack.c.h.bf16 %v4338
          %v4455 = vunpack.c.h.bf16 %v4339
          %v4456 = vunpack.c.l.bf16 %v4340
          %v4457 = vunpack.c.l.bf16 %v4341
          %v4458 = vunpack.c.l.bf16 %v4342
          %v4459 = vunpack.c.l.bf16 %v4343
          %v4460 = vunpack.c.h.bf16 %v4340
          %v4461 = vunpack.c.h.bf16 %v4341
          %v4462 = vunpack.c.h.bf16 %v4342
          %v4463 = vunpack.c.h.bf16 %v4343
          %v4464 = vunpack.c.l.bf16 %v4344
          %v4465 = vunpack.c.l.bf16 %v4345
          %v4466 = vunpack.c.l.bf16 %v4346
          %v4467 = vunpack.c.l.bf16 %v4347
          %v4468 = vunpack.c.h.bf16 %v4344
          %v4469 = vunpack.c.h.bf16 %v4345
          %v4470 = vunpack.c.h.bf16 %v4346
          %v4471 = vunpack.c.h.bf16 %v4347
          %v4472 = vunpack.c.l.bf16 %v4348
          %v4473 = vunpack.c.l.bf16 %v4349
          %v4474 = vunpack.c.l.bf16 %v4350
          %v4475 = vunpack.c.l.bf16 %v4351
          %v4476 = vunpack.c.h.bf16 %v4348
          %v4477 = vunpack.c.h.bf16 %v4349
          %v4478 = vunpack.c.h.bf16 %v4350
          %v4479 = vunpack.c.h.bf16 %v4351
          %v4481 = vlaneseq
          %v4482 = vshrl.u32 %v4481, 7
          %v4483 = vsub.s32 0, %v4482
          %v4484 = vrot.slane %v4284, %v4483
          %v4485 = vlaneseq
          %v4486 = vshrl.u32 %v4485, 7
          %v4487 = vsub.s32 1, %v4486
          %v4488 = vrot.slane %v4284, %v4487
          %v4489 = vlaneseq
          %v4490 = vshrl.u32 %v4489, 7
          %v4491 = vsub.s32 2, %v4490
          %v4492 = vrot.slane %v4284, %v4491
          %v4493 = vlaneseq
          %v4494 = vshrl.u32 %v4493, 7
          %v4495 = vsub.s32 3, %v4494
          %v4496 = vrot.slane %v4284, %v4495
          %v4501 = vmul.f32 %v4352, %v4484
          %v4502 = vmul.f32 %v4353, %v4488
          %v4503 = vmul.f32 %v4354, %v4492
          %v4504 = vmul.f32 %v4355, %v4496
          %v4505 = vmul.f32 %v4356, %v4484
          %v4506 = vmul.f32 %v4357, %v4488
          %v4507 = vmul.f32 %v4358, %v4492
          %v4508 = vmul.f32 %v4359, %v4496
          %v4509 = vmul.f32 %v4360, %v4484
          %v4510 = vmul.f32 %v4361, %v4488
          %v4511 = vmul.f32 %v4362, %v4492
          %v4512 = vmul.f32 %v4363, %v4496
          %v4513 = vmul.f32 %v4364, %v4484
          %v4514 = vmul.f32 %v4365, %v4488
          %v4515 = vmul.f32 %v4366, %v4492
          %v4516 = vmul.f32 %v4367, %v4496
          %v4517 = vmul.f32 %v4368, %v4484
          %v4518 = vmul.f32 %v4369, %v4488
          %v4519 = vmul.f32 %v4370, %v4492
          %v4520 = vmul.f32 %v4371, %v4496
          %v4521 = vmul.f32 %v4372, %v4484
          %v4522 = vmul.f32 %v4373, %v4488
          %v4523 = vmul.f32 %v4374, %v4492
          %v4524 = vmul.f32 %v4375, %v4496
          %v4525 = vmul.f32 %v4376, %v4484
          %v4526 = vmul.f32 %v4377, %v4488
          %v4527 = vmul.f32 %v4378, %v4492
          %v4528 = vmul.f32 %v4379, %v4496
          %v4529 = vmul.f32 %v4380, %v4484
          %v4530 = vmul.f32 %v4381, %v4488
          %v4531 = vmul.f32 %v4382, %v4492
          %v4532 = vmul.f32 %v4383, %v4496
          %v4533 = vmul.f32 %v4384, %v4484
          %v4534 = vmul.f32 %v4385, %v4488
          %v4535 = vmul.f32 %v4386, %v4492
          %v4536 = vmul.f32 %v4387, %v4496
          %v4537 = vmul.f32 %v4388, %v4484
          %v4538 = vmul.f32 %v4389, %v4488
          %v4539 = vmul.f32 %v4390, %v4492
          %v4540 = vmul.f32 %v4391, %v4496
          %v4541 = vmul.f32 %v4392, %v4484
          %v4542 = vmul.f32 %v4393, %v4488
          %v4543 = vmul.f32 %v4394, %v4492
          %v4544 = vmul.f32 %v4395, %v4496
          %v4545 = vmul.f32 %v4396, %v4484
          %v4546 = vmul.f32 %v4397, %v4488
          %v4547 = vmul.f32 %v4398, %v4492
          %v4548 = vmul.f32 %v4399, %v4496
          %v4549 = vmul.f32 %v4400, %v4484
          %v4550 = vmul.f32 %v4401, %v4488
          %v4551 = vmul.f32 %v4402, %v4492
          %v4552 = vmul.f32 %v4403, %v4496
          %v4553 = vmul.f32 %v4404, %v4484
          %v4554 = vmul.f32 %v4405, %v4488
          %v4555 = vmul.f32 %v4406, %v4492
          %v4556 = vmul.f32 %v4407, %v4496
          %v4557 = vmul.f32 %v4408, %v4484
          %v4558 = vmul.f32 %v4409, %v4488
          %v4559 = vmul.f32 %v4410, %v4492
          %v4560 = vmul.f32 %v4411, %v4496
          %v4561 = vmul.f32 %v4412, %v4484
          %v4562 = vmul.f32 %v4413, %v4488
          %v4563 = vmul.f32 %v4414, %v4492
          %v4564 = vmul.f32 %v4415, %v4496
          %v4565 = vmul.f32 %v4416, %v4484
          %v4566 = vmul.f32 %v4417, %v4488
          %v4567 = vmul.f32 %v4418, %v4492
          %v4568 = vmul.f32 %v4419, %v4496
          %v4569 = vmul.f32 %v4420, %v4484
          %v4570 = vmul.f32 %v4421, %v4488
          %v4571 = vmul.f32 %v4422, %v4492
          %v4572 = vmul.f32 %v4423, %v4496
          %v4573 = vmul.f32 %v4424, %v4484
          %v4574 = vmul.f32 %v4425, %v4488
          %v4575 = vmul.f32 %v4426, %v4492
          %v4576 = vmul.f32 %v4427, %v4496
          %v4577 = vmul.f32 %v4428, %v4484
          %v4578 = vmul.f32 %v4429, %v4488
          %v4579 = vmul.f32 %v4430, %v4492
          %v4580 = vmul.f32 %v4431, %v4496
          %v4581 = vmul.f32 %v4432, %v4484
          %v4582 = vmul.f32 %v4433, %v4488
          %v4583 = vmul.f32 %v4434, %v4492
          %v4584 = vmul.f32 %v4435, %v4496
          %v4585 = vmul.f32 %v4436, %v4484
          %v4586 = vmul.f32 %v4437, %v4488
          %v4587 = vmul.f32 %v4438, %v4492
          %v4588 = vmul.f32 %v4439, %v4496
          %v4589 = vmul.f32 %v4440, %v4484
          %v4590 = vmul.f32 %v4441, %v4488
          %v4591 = vmul.f32 %v4442, %v4492
          %v4592 = vmul.f32 %v4443, %v4496
          %v4593 = vmul.f32 %v4444, %v4484
          %v4594 = vmul.f32 %v4445, %v4488
          %v4595 = vmul.f32 %v4446, %v4492
          %v4596 = vmul.f32 %v4447, %v4496
          %v4597 = vmul.f32 %v4448, %v4484
          %v4598 = vmul.f32 %v4449, %v4488
          %v4599 = vmul.f32 %v4450, %v4492
          %v4600 = vmul.f32 %v4451, %v4496
          %v4601 = vmul.f32 %v4452, %v4484
          %v4602 = vmul.f32 %v4453, %v4488
          %v4603 = vmul.f32 %v4454, %v4492
          %v4604 = vmul.f32 %v4455, %v4496
          %v4605 = vmul.f32 %v4456, %v4484
          %v4606 = vmul.f32 %v4457, %v4488
          %v4607 = vmul.f32 %v4458, %v4492
          %v4608 = vmul.f32 %v4459, %v4496
          %v4609 = vmul.f32 %v4460, %v4484
          %v4610 = vmul.f32 %v4461, %v4488
          %v4611 = vmul.f32 %v4462, %v4492
          %v4612 = vmul.f32 %v4463, %v4496
          %v4613 = vmul.f32 %v4464, %v4484
          %v4614 = vmul.f32 %v4465, %v4488
          %v4615 = vmul.f32 %v4466, %v4492
          %v4616 = vmul.f32 %v4467, %v4496
          %v4617 = vmul.f32 %v4468, %v4484
          %v4618 = vmul.f32 %v4469, %v4488
          %v4619 = vmul.f32 %v4470, %v4492
          %v4620 = vmul.f32 %v4471, %v4496
          %v4621 = vmul.f32 %v4472, %v4484
          %v4622 = vmul.f32 %v4473, %v4488
          %v4623 = vmul.f32 %v4474, %v4492
          %v4624 = vmul.f32 %v4475, %v4496
          %v4625 = vmul.f32 %v4476, %v4484
          %v4626 = vmul.f32 %v4477, %v4488
          %v4627 = vmul.f32 %v4478, %v4492
          %v4628 = vmul.f32 %v4479, %v4496
          %v4630 = vlaneseq
          %v4631 = vshrl.u32 %v4630, 7
          %v4632 = vsub.s32 0, %v4631
          %v4633 = vrot.slane %v4287, %v4632
          %v4634 = vlaneseq
          %v4635 = vshrl.u32 %v4634, 7
          %v4636 = vsub.s32 1, %v4635
          %v4637 = vrot.slane %v4287, %v4636
          %v4638 = vlaneseq
          %v4639 = vshrl.u32 %v4638, 7
          %v4640 = vsub.s32 2, %v4639
          %v4641 = vrot.slane %v4287, %v4640
          %v4642 = vlaneseq
          %v4643 = vshrl.u32 %v4642, 7
          %v4644 = vsub.s32 3, %v4643
          %v4645 = vrot.slane %v4287, %v4644
          %v4650 = vadd.f32 %v4501, %v4633
          %v4651 = vadd.f32 %v4502, %v4637
          %v4652 = vadd.f32 %v4503, %v4641
          %v4653 = vadd.f32 %v4504, %v4645
          %v4654 = vadd.f32 %v4505, %v4633
          %v4655 = vadd.f32 %v4506, %v4637
          %v4656 = vadd.f32 %v4507, %v4641
          %v4657 = vadd.f32 %v4508, %v4645
          %v4658 = vadd.f32 %v4509, %v4633
          %v4659 = vadd.f32 %v4510, %v4637
          %v4660 = vadd.f32 %v4511, %v4641
          %v4661 = vadd.f32 %v4512, %v4645
          %v4662 = vadd.f32 %v4513, %v4633
          %v4663 = vadd.f32 %v4514, %v4637
          %v4664 = vadd.f32 %v4515, %v4641
          %v4665 = vadd.f32 %v4516, %v4645
          %v4666 = vadd.f32 %v4517, %v4633
          %v4667 = vadd.f32 %v4518, %v4637
          %v4668 = vadd.f32 %v4519, %v4641
          %v4669 = vadd.f32 %v4520, %v4645
          %v4670 = vadd.f32 %v4521, %v4633
          %v4671 = vadd.f32 %v4522, %v4637
          %v4672 = vadd.f32 %v4523, %v4641
          %v4673 = vadd.f32 %v4524, %v4645
          %v4674 = vadd.f32 %v4525, %v4633
          %v4675 = vadd.f32 %v4526, %v4637
          %v4676 = vadd.f32 %v4527, %v4641
          %v4677 = vadd.f32 %v4528, %v4645
          %v4678 = vadd.f32 %v4529, %v4633
          %v4679 = vadd.f32 %v4530, %v4637
          %v4680 = vadd.f32 %v4531, %v4641
          %v4681 = vadd.f32 %v4532, %v4645
          %v4682 = vadd.f32 %v4533, %v4633
          %v4683 = vadd.f32 %v4534, %v4637
          %v4684 = vadd.f32 %v4535, %v4641
          %v4685 = vadd.f32 %v4536, %v4645
          %v4686 = vadd.f32 %v4537, %v4633
          %v4687 = vadd.f32 %v4538, %v4637
          %v4688 = vadd.f32 %v4539, %v4641
          %v4689 = vadd.f32 %v4540, %v4645
          %v4690 = vadd.f32 %v4541, %v4633
          %v4691 = vadd.f32 %v4542, %v4637
          %v4692 = vadd.f32 %v4543, %v4641
          %v4693 = vadd.f32 %v4544, %v4645
          %v4694 = vadd.f32 %v4545, %v4633
          %v4695 = vadd.f32 %v4546, %v4637
          %v4696 = vadd.f32 %v4547, %v4641
          %v4697 = vadd.f32 %v4548, %v4645
          %v4698 = vadd.f32 %v4549, %v4633
          %v4699 = vadd.f32 %v4550, %v4637
          %v4700 = vadd.f32 %v4551, %v4641
          %v4701 = vadd.f32 %v4552, %v4645
          %v4702 = vadd.f32 %v4553, %v4633
          %v4703 = vadd.f32 %v4554, %v4637
          %v4704 = vadd.f32 %v4555, %v4641
          %v4705 = vadd.f32 %v4556, %v4645
          %v4706 = vadd.f32 %v4557, %v4633
          %v4707 = vadd.f32 %v4558, %v4637
          %v4708 = vadd.f32 %v4559, %v4641
          %v4709 = vadd.f32 %v4560, %v4645
          %v4710 = vadd.f32 %v4561, %v4633
          %v4711 = vadd.f32 %v4562, %v4637
          %v4712 = vadd.f32 %v4563, %v4641
          %v4713 = vadd.f32 %v4564, %v4645
          %v4714 = vadd.f32 %v4565, %v4633
          %v4715 = vadd.f32 %v4566, %v4637
          %v4716 = vadd.f32 %v4567, %v4641
          %v4717 = vadd.f32 %v4568, %v4645
          %v4718 = vadd.f32 %v4569, %v4633
          %v4719 = vadd.f32 %v4570, %v4637
          %v4720 = vadd.f32 %v4571, %v4641
          %v4721 = vadd.f32 %v4572, %v4645
          %v4722 = vadd.f32 %v4573, %v4633
          %v4723 = vadd.f32 %v4574, %v4637
          %v4724 = vadd.f32 %v4575, %v4641
          %v4725 = vadd.f32 %v4576, %v4645
          %v4726 = vadd.f32 %v4577, %v4633
          %v4727 = vadd.f32 %v4578, %v4637
          %v4728 = vadd.f32 %v4579, %v4641
          %v4729 = vadd.f32 %v4580, %v4645
          %v4730 = vadd.f32 %v4581, %v4633
          %v4731 = vadd.f32 %v4582, %v4637
          %v4732 = vadd.f32 %v4583, %v4641
          %v4733 = vadd.f32 %v4584, %v4645
          %v4734 = vadd.f32 %v4585, %v4633
          %v4735 = vadd.f32 %v4586, %v4637
          %v4736 = vadd.f32 %v4587, %v4641
          %v4737 = vadd.f32 %v4588, %v4645
          %v4738 = vadd.f32 %v4589, %v4633
          %v4739 = vadd.f32 %v4590, %v4637
          %v4740 = vadd.f32 %v4591, %v4641
          %v4741 = vadd.f32 %v4592, %v4645
          %v4742 = vadd.f32 %v4593, %v4633
          %v4743 = vadd.f32 %v4594, %v4637
          %v4744 = vadd.f32 %v4595, %v4641
          %v4745 = vadd.f32 %v4596, %v4645
          %v4746 = vadd.f32 %v4597, %v4633
          %v4747 = vadd.f32 %v4598, %v4637
          %v4748 = vadd.f32 %v4599, %v4641
          %v4749 = vadd.f32 %v4600, %v4645
          %v4750 = vadd.f32 %v4601, %v4633
          %v4751 = vadd.f32 %v4602, %v4637
          %v4752 = vadd.f32 %v4603, %v4641
          %v4753 = vadd.f32 %v4604, %v4645
          %v4754 = vadd.f32 %v4605, %v4633
          %v4755 = vadd.f32 %v4606, %v4637
          %v4756 = vadd.f32 %v4607, %v4641
          %v4757 = vadd.f32 %v4608, %v4645
          %v4758 = vadd.f32 %v4609, %v4633
          %v4759 = vadd.f32 %v4610, %v4637
          %v4760 = vadd.f32 %v4611, %v4641
          %v4761 = vadd.f32 %v4612, %v4645
          %v4762 = vadd.f32 %v4613, %v4633
          %v4763 = vadd.f32 %v4614, %v4637
          %v4764 = vadd.f32 %v4615, %v4641
          %v4765 = vadd.f32 %v4616, %v4645
          %v4766 = vadd.f32 %v4617, %v4633
          %v4767 = vadd.f32 %v4618, %v4637
          %v4768 = vadd.f32 %v4619, %v4641
          %v4769 = vadd.f32 %v4620, %v4645
          %v4770 = vadd.f32 %v4621, %v4633
          %v4771 = vadd.f32 %v4622, %v4637
          %v4772 = vadd.f32 %v4623, %v4641
          %v4773 = vadd.f32 %v4624, %v4645
          %v4774 = vadd.f32 %v4625, %v4633
          %v4775 = vadd.f32 %v4626, %v4637
          %v4776 = vadd.f32 %v4627, %v4641
          %v4777 = vadd.f32 %v4628, %v4645
          %v4778 = vmax.f32 %v4650, 0.0
          %v4779 = vmax.f32 %v4651, 0.0
          %v4780 = vmax.f32 %v4652, 0.0
          %v4781 = vmax.f32 %v4653, 0.0
          %v4782 = vmax.f32 %v4654, 0.0
          %v4783 = vmax.f32 %v4655, 0.0
          %v4784 = vmax.f32 %v4656, 0.0
          %v4785 = vmax.f32 %v4657, 0.0
          %v4786 = vmax.f32 %v4658, 0.0
          %v4787 = vmax.f32 %v4659, 0.0
          %v4788 = vmax.f32 %v4660, 0.0
          %v4789 = vmax.f32 %v4661, 0.0
          %v4790 = vmax.f32 %v4662, 0.0
          %v4791 = vmax.f32 %v4663, 0.0
          %v4792 = vmax.f32 %v4664, 0.0
          %v4793 = vmax.f32 %v4665, 0.0
          %v4794 = vmax.f32 %v4666, 0.0
          %v4795 = vmax.f32 %v4667, 0.0
          %v4796 = vmax.f32 %v4668, 0.0
          %v4797 = vmax.f32 %v4669, 0.0
          %v4798 = vmax.f32 %v4670, 0.0
          %v4799 = vmax.f32 %v4671, 0.0
          %v4800 = vmax.f32 %v4672, 0.0
          %v4801 = vmax.f32 %v4673, 0.0
          %v4802 = vmax.f32 %v4674, 0.0
          %v4803 = vmax.f32 %v4675, 0.0
          %v4804 = vmax.f32 %v4676, 0.0
          %v4805 = vmax.f32 %v4677, 0.0
          %v4806 = vmax.f32 %v4678, 0.0
          %v4807 = vmax.f32 %v4679, 0.0
          %v4808 = vmax.f32 %v4680, 0.0
          %v4809 = vmax.f32 %v4681, 0.0
          %v4810 = vmax.f32 %v4682, 0.0
          %v4811 = vmax.f32 %v4683, 0.0
          %v4812 = vmax.f32 %v4684, 0.0
          %v4813 = vmax.f32 %v4685, 0.0
          %v4814 = vmax.f32 %v4686, 0.0
          %v4815 = vmax.f32 %v4687, 0.0
          %v4816 = vmax.f32 %v4688, 0.0
          %v4817 = vmax.f32 %v4689, 0.0
          %v4818 = vmax.f32 %v4690, 0.0
          %v4819 = vmax.f32 %v4691, 0.0
          %v4820 = vmax.f32 %v4692, 0.0
          %v4821 = vmax.f32 %v4693, 0.0
          %v4822 = vmax.f32 %v4694, 0.0
          %v4823 = vmax.f32 %v4695, 0.0
          %v4824 = vmax.f32 %v4696, 0.0
          %v4825 = vmax.f32 %v4697, 0.0
          %v4826 = vmax.f32 %v4698, 0.0
          %v4827 = vmax.f32 %v4699, 0.0
          %v4828 = vmax.f32 %v4700, 0.0
          %v4829 = vmax.f32 %v4701, 0.0
          %v4830 = vmax.f32 %v4702, 0.0
          %v4831 = vmax.f32 %v4703, 0.0
          %v4832 = vmax.f32 %v4704, 0.0
          %v4833 = vmax.f32 %v4705, 0.0
          %v4834 = vmax.f32 %v4706, 0.0
          %v4835 = vmax.f32 %v4707, 0.0
          %v4836 = vmax.f32 %v4708, 0.0
          %v4837 = vmax.f32 %v4709, 0.0
          %v4838 = vmax.f32 %v4710, 0.0
          %v4839 = vmax.f32 %v4711, 0.0
          %v4840 = vmax.f32 %v4712, 0.0
          %v4841 = vmax.f32 %v4713, 0.0
          %v4842 = vmax.f32 %v4714, 0.0
          %v4843 = vmax.f32 %v4715, 0.0
          %v4844 = vmax.f32 %v4716, 0.0
          %v4845 = vmax.f32 %v4717, 0.0
          %v4846 = vmax.f32 %v4718, 0.0
          %v4847 = vmax.f32 %v4719, 0.0
          %v4848 = vmax.f32 %v4720, 0.0
          %v4849 = vmax.f32 %v4721, 0.0
          %v4850 = vmax.f32 %v4722, 0.0
          %v4851 = vmax.f32 %v4723, 0.0
          %v4852 = vmax.f32 %v4724, 0.0
          %v4853 = vmax.f32 %v4725, 0.0
          %v4854 = vmax.f32 %v4726, 0.0
          %v4855 = vmax.f32 %v4727, 0.0
          %v4856 = vmax.f32 %v4728, 0.0
          %v4857 = vmax.f32 %v4729, 0.0
          %v4858 = vmax.f32 %v4730, 0.0
          %v4859 = vmax.f32 %v4731, 0.0
          %v4860 = vmax.f32 %v4732, 0.0
          %v4861 = vmax.f32 %v4733, 0.0
          %v4862 = vmax.f32 %v4734, 0.0
          %v4863 = vmax.f32 %v4735, 0.0
          %v4864 = vmax.f32 %v4736, 0.0
          %v4865 = vmax.f32 %v4737, 0.0
          %v4866 = vmax.f32 %v4738, 0.0
          %v4867 = vmax.f32 %v4739, 0.0
          %v4868 = vmax.f32 %v4740, 0.0
          %v4869 = vmax.f32 %v4741, 0.0
          %v4870 = vmax.f32 %v4742, 0.0
          %v4871 = vmax.f32 %v4743, 0.0
          %v4872 = vmax.f32 %v4744, 0.0
          %v4873 = vmax.f32 %v4745, 0.0
          %v4874 = vmax.f32 %v4746, 0.0
          %v4875 = vmax.f32 %v4747, 0.0
          %v4876 = vmax.f32 %v4748, 0.0
          %v4877 = vmax.f32 %v4749, 0.0
          %v4878 = vmax.f32 %v4750, 0.0
          %v4879 = vmax.f32 %v4751, 0.0
          %v4880 = vmax.f32 %v4752, 0.0
          %v4881 = vmax.f32 %v4753, 0.0
          %v4882 = vmax.f32 %v4754, 0.0
          %v4883 = vmax.f32 %v4755, 0.0
          %v4884 = vmax.f32 %v4756, 0.0
          %v4885 = vmax.f32 %v4757, 0.0
          %v4886 = vmax.f32 %v4758, 0.0
          %v4887 = vmax.f32 %v4759, 0.0
          %v4888 = vmax.f32 %v4760, 0.0
          %v4889 = vmax.f32 %v4761, 0.0
          %v4890 = vmax.f32 %v4762, 0.0
          %v4891 = vmax.f32 %v4763, 0.0
          %v4892 = vmax.f32 %v4764, 0.0
          %v4893 = vmax.f32 %v4765, 0.0
          %v4894 = vmax.f32 %v4766, 0.0
          %v4895 = vmax.f32 %v4767, 0.0
          %v4896 = vmax.f32 %v4768, 0.0
          %v4897 = vmax.f32 %v4769, 0.0
          %v4898 = vmax.f32 %v4770, 0.0
          %v4899 = vmax.f32 %v4771, 0.0
          %v4900 = vmax.f32 %v4772, 0.0
          %v4901 = vmax.f32 %v4773, 0.0
          %v4902 = vmax.f32 %v4774, 0.0
          %v4903 = vmax.f32 %v4775, 0.0
          %v4904 = vmax.f32 %v4776, 0.0
          %v4905 = vmax.f32 %v4777, 0.0
          %v4906 = vpack.c.bf16 %v4782, %v4778
          %v4907 = vpack.c.bf16 %v4783, %v4779
          %v4908 = vpack.c.bf16 %v4784, %v4780
          %v4909 = vpack.c.bf16 %v4785, %v4781
          %v4910 = vpack.c.bf16 %v4790, %v4786
          %v4911 = vpack.c.bf16 %v4791, %v4787
          %v4912 = vpack.c.bf16 %v4792, %v4788
          %v4913 = vpack.c.bf16 %v4793, %v4789
          %v4914 = vpack.c.bf16 %v4798, %v4794
          %v4915 = vpack.c.bf16 %v4799, %v4795
          %v4916 = vpack.c.bf16 %v4800, %v4796
          %v4917 = vpack.c.bf16 %v4801, %v4797
          %v4918 = vpack.c.bf16 %v4806, %v4802
          %v4919 = vpack.c.bf16 %v4807, %v4803
          %v4920 = vpack.c.bf16 %v4808, %v4804
          %v4921 = vpack.c.bf16 %v4809, %v4805
          %v4922 = vpack.c.bf16 %v4814, %v4810
          %v4923 = vpack.c.bf16 %v4815, %v4811
          %v4924 = vpack.c.bf16 %v4816, %v4812
          %v4925 = vpack.c.bf16 %v4817, %v4813
          %v4926 = vpack.c.bf16 %v4822, %v4818
          %v4927 = vpack.c.bf16 %v4823, %v4819
          %v4928 = vpack.c.bf16 %v4824, %v4820
          %v4929 = vpack.c.bf16 %v4825, %v4821
          %v4930 = vpack.c.bf16 %v4830, %v4826
          %v4931 = vpack.c.bf16 %v4831, %v4827
          %v4932 = vpack.c.bf16 %v4832, %v4828
          %v4933 = vpack.c.bf16 %v4833, %v4829
          %v4934 = vpack.c.bf16 %v4838, %v4834
          %v4935 = vpack.c.bf16 %v4839, %v4835
          %v4936 = vpack.c.bf16 %v4840, %v4836
          %v4937 = vpack.c.bf16 %v4841, %v4837
          %v4938 = vpack.c.bf16 %v4846, %v4842
          %v4939 = vpack.c.bf16 %v4847, %v4843
          %v4940 = vpack.c.bf16 %v4848, %v4844
          %v4941 = vpack.c.bf16 %v4849, %v4845
          %v4942 = vpack.c.bf16 %v4854, %v4850
          %v4943 = vpack.c.bf16 %v4855, %v4851
          %v4944 = vpack.c.bf16 %v4856, %v4852
          %v4945 = vpack.c.bf16 %v4857, %v4853
          %v4946 = vpack.c.bf16 %v4862, %v4858
          %v4947 = vpack.c.bf16 %v4863, %v4859
          %v4948 = vpack.c.bf16 %v4864, %v4860
          %v4949 = vpack.c.bf16 %v4865, %v4861
          %v4950 = vpack.c.bf16 %v4870, %v4866
          %v4951 = vpack.c.bf16 %v4871, %v4867
          %v4952 = vpack.c.bf16 %v4872, %v4868
          %v4953 = vpack.c.bf16 %v4873, %v4869
          %v4954 = vpack.c.bf16 %v4878, %v4874
          %v4955 = vpack.c.bf16 %v4879, %v4875
          %v4956 = vpack.c.bf16 %v4880, %v4876
          %v4957 = vpack.c.bf16 %v4881, %v4877
          %v4958 = vpack.c.bf16 %v4886, %v4882
          %v4959 = vpack.c.bf16 %v4887, %v4883
          %v4960 = vpack.c.bf16 %v4888, %v4884
          %v4961 = vpack.c.bf16 %v4889, %v4885
          %v4962 = vpack.c.bf16 %v4894, %v4890
          %v4963 = vpack.c.bf16 %v4895, %v4891
          %v4964 = vpack.c.bf16 %v4896, %v4892
          %v4965 = vpack.c.bf16 %v4897, %v4893
          %v4966 = vpack.c.bf16 %v4902, %v4898
          %v4967 = vpack.c.bf16 %v4903, %v4899
          %v4968 = vpack.c.bf16 %v4904, %v4900
          %v4969 = vpack.c.bf16 %v4905, %v4901
          %v4970 = vld [vmem:[#allocation11] sm:$0xf]
          %v4971 = vld [vmem:[#allocation11 + $0x4] sm:$0xf]
          %v4972 = vld [vmem:[#allocation11 + $0x8] sm:$0xf]
          %v4973 = vld [vmem:[#allocation11 + $0xc] sm:$0xf]
          %v4974 = vld [vmem:[#allocation11 + $0x10] sm:$0xf]
          %v4975 = vld [vmem:[#allocation11 + $0x14] sm:$0xf]
          %v4976 = vld [vmem:[#allocation11 + $0x18] sm:$0xf]
          %v4977 = vld [vmem:[#allocation11 + $0x1c] sm:$0xf]
          %v4978 = vld [vmem:[#allocation11 + $0x20] sm:$0xf]
          %v4979 = vld [vmem:[#allocation11 + $0x24] sm:$0xf]
          %v4980 = vld [vmem:[#allocation11 + $0x28] sm:$0xf]
          %v4981 = vld [vmem:[#allocation11 + $0x2c] sm:$0xf]
          %v4982 = vld [vmem:[#allocation11 + $0x30] sm:$0xf]
          %v4983 = vld [vmem:[#allocation11 + $0x34] sm:$0xf]
          %v4984 = vld [vmem:[#allocation11 + $0x38] sm:$0xf]
          %v4985 = vld [vmem:[#allocation11 + $0x3c] sm:$0xf]
          %v4986 = vld [vmem:[#allocation11 + $0x40] sm:$0xf]
          %v4987 = vld [vmem:[#allocation11 + $0x44] sm:$0xf]
          %v4988 = vld [vmem:[#allocation11 + $0x48] sm:$0xf]
          %v4989 = vld [vmem:[#allocation11 + $0x4c] sm:$0xf]
          %v4990 = vld [vmem:[#allocation11 + $0x50] sm:$0xf]
          %v4991 = vld [vmem:[#allocation11 + $0x54] sm:$0xf]
          %v4992 = vld [vmem:[#allocation11 + $0x58] sm:$0xf]
          %v4993 = vld [vmem:[#allocation11 + $0x5c] sm:$0xf]
          %v4994 = vld [vmem:[#allocation11 + $0x60] sm:$0xf]
          %v4995 = vld [vmem:[#allocation11 + $0x64] sm:$0xf]
          %v4996 = vld [vmem:[#allocation11 + $0x68] sm:$0xf]
          %v4997 = vld [vmem:[#allocation11 + $0x6c] sm:$0xf]
          %v4998 = vld [vmem:[#allocation11 + $0x70] sm:$0xf]
          %v4999 = vld [vmem:[#allocation11 + $0x74] sm:$0xf]
          %v5000 = vld [vmem:[#allocation11 + $0x78] sm:$0xf]
          %v5001 = vld [vmem:[#allocation11 + $0x7c] sm:$0xf]
          %v5002 = vld [vmem:[#allocation11 + $0x80] sm:$0xf]
          %v5003 = vld [vmem:[#allocation11 + $0x84] sm:$0xf]
          %v5004 = vld [vmem:[#allocation11 + $0x88] sm:$0xf]
          %v5005 = vld [vmem:[#allocation11 + $0x8c] sm:$0xf]
          %v5006 = vld [vmem:[#allocation11 + $0x90] sm:$0xf]
          %v5007 = vld [vmem:[#allocation11 + $0x94] sm:$0xf]
          %v5008 = vld [vmem:[#allocation11 + $0x98] sm:$0xf]
          %v5009 = vld [vmem:[#allocation11 + $0x9c] sm:$0xf]
          %v5010 = vld [vmem:[#allocation11 + $0xa0] sm:$0xf]
          %v5011 = vld [vmem:[#allocation11 + $0xa4] sm:$0xf]
          %v5012 = vld [vmem:[#allocation11 + $0xa8] sm:$0xf]
          %v5013 = vld [vmem:[#allocation11 + $0xac] sm:$0xf]
          %v5014 = vld [vmem:[#allocation11 + $0xb0] sm:$0xf]
          %v5015 = vld [vmem:[#allocation11 + $0xb4] sm:$0xf]
          %v5016 = vld [vmem:[#allocation11 + $0xb8] sm:$0xf]
          %v5017 = vld [vmem:[#allocation11 + $0xbc] sm:$0xf]
          %v5018 = vld [vmem:[#allocation11 + $0xc0] sm:$0xf]
          %v5019 = vld [vmem:[#allocation11 + $0xc4] sm:$0xf]
          %v5020 = vld [vmem:[#allocation11 + $0xc8] sm:$0xf]
          %v5021 = vld [vmem:[#allocation11 + $0xcc] sm:$0xf]
          %v5022 = vld [vmem:[#allocation11 + $0xd0] sm:$0xf]
          %v5023 = vld [vmem:[#allocation11 + $0xd4] sm:$0xf]
          %v5024 = vld [vmem:[#allocation11 + $0xd8] sm:$0xf]
          %v5025 = vld [vmem:[#allocation11 + $0xdc] sm:$0xf]
          %v5026 = vld [vmem:[#allocation11 + $0xe0] sm:$0xf]
          %v5027 = vld [vmem:[#allocation11 + $0xe4] sm:$0xf]
          %v5028 = vld [vmem:[#allocation11 + $0xe8] sm:$0xf]
          %v5029 = vld [vmem:[#allocation11 + $0xec] sm:$0xf]
          %v5030 = vld [vmem:[#allocation11 + $0xf0] sm:$0xf]
          %v5031 = vld [vmem:[#allocation11 + $0xf4] sm:$0xf]
          %v5032 = vld [vmem:[#allocation11 + $0xf8] sm:$0xf]
          %v5033 = vld [vmem:[#allocation11 + $0xfc] sm:$0xf]
          %v5098 = vunpack.c.l.b16 %v4970
          %v5099 = vunpack.c.l.b16 %v4971
          %v5100 = vunpack.c.l.b16 %v4972
          %v5101 = vunpack.c.l.b16 %v4973
          %v5102 = vunpack.c.l.b16 %v4974
          %v5103 = vunpack.c.l.b16 %v4975
          %v5104 = vunpack.c.l.b16 %v4976
          %v5105 = vunpack.c.l.b16 %v4977
          %v5106 = vunpack.c.l.b16 %v4978
          %v5107 = vunpack.c.l.b16 %v4979
          %v5108 = vunpack.c.l.b16 %v4980
          %v5109 = vunpack.c.l.b16 %v4981
          %v5110 = vunpack.c.l.b16 %v4982
          %v5111 = vunpack.c.l.b16 %v4983
          %v5112 = vunpack.c.l.b16 %v4984
          %v5113 = vunpack.c.l.b16 %v4985
          %v5114 = vunpack.c.l.b16 %v4986
          %v5115 = vunpack.c.l.b16 %v4987
          %v5116 = vunpack.c.l.b16 %v4988
          %v5117 = vunpack.c.l.b16 %v4989
          %v5118 = vunpack.c.l.b16 %v4990
          %v5119 = vunpack.c.l.b16 %v4991
          %v5120 = vunpack.c.l.b16 %v4992
          %v5121 = vunpack.c.l.b16 %v4993
          %v5122 = vunpack.c.l.b16 %v4994
          %v5123 = vunpack.c.l.b16 %v4995
          %v5124 = vunpack.c.l.b16 %v4996
          %v5125 = vunpack.c.l.b16 %v4997
          %v5126 = vunpack.c.l.b16 %v4998
          %v5127 = vunpack.c.l.b16 %v4999
          %v5128 = vunpack.c.l.b16 %v5000
          %v5129 = vunpack.c.l.b16 %v5001
          %v5130 = vunpack.c.l.b16 %v5002
          %v5131 = vunpack.c.l.b16 %v5003
          %v5132 = vunpack.c.l.b16 %v5004
          %v5133 = vunpack.c.l.b16 %v5005
          %v5134 = vunpack.c.l.b16 %v5006
          %v5135 = vunpack.c.l.b16 %v5007
          %v5136 = vunpack.c.l.b16 %v5008
          %v5137 = vunpack.c.l.b16 %v5009
          %v5138 = vunpack.c.l.b16 %v5010
          %v5139 = vunpack.c.l.b16 %v5011
          %v5140 = vunpack.c.l.b16 %v5012
          %v5141 = vunpack.c.l.b16 %v5013
          %v5142 = vunpack.c.l.b16 %v5014
          %v5143 = vunpack.c.l.b16 %v5015
          %v5144 = vunpack.c.l.b16 %v5016
          %v5145 = vunpack.c.l.b16 %v5017
          %v5146 = vunpack.c.l.b16 %v5018
          %v5147 = vunpack.c.l.b16 %v5019
          %v5148 = vunpack.c.l.b16 %v5020
          %v5149 = vunpack.c.l.b16 %v5021
          %v5150 = vunpack.c.l.b16 %v5022
          %v5151 = vunpack.c.l.b16 %v5023
          %v5152 = vunpack.c.l.b16 %v5024
          %v5153 = vunpack.c.l.b16 %v5025
          %v5154 = vunpack.c.l.b16 %v5026
          %v5155 = vunpack.c.l.b16 %v5027
          %v5156 = vunpack.c.l.b16 %v5028
          %v5157 = vunpack.c.l.b16 %v5029
          %v5158 = vunpack.c.l.b16 %v5030
          %v5159 = vunpack.c.l.b16 %v5031
          %v5160 = vunpack.c.l.b16 %v5032
          %v5161 = vunpack.c.l.b16 %v5033
          %v5162 = vpack.c.b16 %v5099, %v5098
          %v5163 = vpack.c.b16 %v5101, %v5100
          %v5164 = vpack.c.b16 %v5103, %v5102
          %v5165 = vpack.c.b16 %v5105, %v5104
          %v5166 = vpack.c.b16 %v5107, %v5106
          %v5167 = vpack.c.b16 %v5109, %v5108
          %v5168 = vpack.c.b16 %v5111, %v5110
          %v5169 = vpack.c.b16 %v5113, %v5112
          %v5170 = vpack.c.b16 %v5115, %v5114
          %v5171 = vpack.c.b16 %v5117, %v5116
          %v5172 = vpack.c.b16 %v5119, %v5118
          %v5173 = vpack.c.b16 %v5121, %v5120
          %v5174 = vpack.c.b16 %v5123, %v5122
          %v5175 = vpack.c.b16 %v5125, %v5124
          %v5176 = vpack.c.b16 %v5127, %v5126
          %v5177 = vpack.c.b16 %v5129, %v5128
          %v5178 = vpack.c.b16 %v5131, %v5130
          %v5179 = vpack.c.b16 %v5133, %v5132
          %v5180 = vpack.c.b16 %v5135, %v5134
          %v5181 = vpack.c.b16 %v5137, %v5136
          %v5182 = vpack.c.b16 %v5139, %v5138
          %v5183 = vpack.c.b16 %v5141, %v5140
          %v5184 = vpack.c.b16 %v5143, %v5142
          %v5185 = vpack.c.b16 %v5145, %v5144
          %v5186 = vpack.c.b16 %v5147, %v5146
          %v5187 = vpack.c.b16 %v5149, %v5148
          %v5188 = vpack.c.b16 %v5151, %v5150
          %v5189 = vpack.c.b16 %v5153, %v5152
          %v5190 = vpack.c.b16 %v5155, %v5154
          %v5191 = vpack.c.b16 %v5157, %v5156
          %v5192 = vpack.c.b16 %v5159, %v5158
          %v5193 = vpack.c.b16 %v5161, %v5160
          %5226 = vmatprep.subr.bf16.mxu0 0
          %5227 = vmatpush1.bf16.msra.mxu0 %v5162
          %5228 = vmatprep.subr.bf16.mxu0 0
          %5229 = vmatpush1.bf16.msra.mxu0 %v5163
          %5230 = vmatprep.subr.bf16.mxu0 0
          %5231 = vmatpush1.bf16.msra.mxu0 %v5164
          %5232 = vmatprep.subr.bf16.mxu0 0
          %5233 = vmatpush1.bf16.msra.mxu0 %v5165
          %5234 = vmatprep.subr.bf16.mxu0 0
          %5235 = vmatpush1.bf16.msra.mxu0 %v5166
          %5236 = vmatprep.subr.bf16.mxu0 0
          %5237 = vmatpush1.bf16.msra.mxu0 %v5167
          %5238 = vmatprep.subr.bf16.mxu0 0
          %5239 = vmatpush1.bf16.msra.mxu0 %v5168
          %5240 = vmatprep.subr.bf16.mxu0 0
          %5241 = vmatpush1.bf16.msra.mxu0 %v5169
          %5242 = vmatprep.subr.bf16.mxu0 0
          %5243 = vmatpush1.bf16.msra.mxu0 %v5170
          %5244 = vmatprep.subr.bf16.mxu0 0
          %5245 = vmatpush1.bf16.msra.mxu0 %v5171
          %5246 = vmatprep.subr.bf16.mxu0 0
          %5247 = vmatpush1.bf16.msra.mxu0 %v5172
          %5248 = vmatprep.subr.bf16.mxu0 0
          %5249 = vmatpush1.bf16.msra.mxu0 %v5173
          %5250 = vmatprep.subr.bf16.mxu0 0
          %5251 = vmatpush1.bf16.msra.mxu0 %v5174
          %5252 = vmatprep.subr.bf16.mxu0 0
          %5253 = vmatpush1.bf16.msra.mxu0 %v5175
          %5254 = vmatprep.subr.bf16.mxu0 0
          %5255 = vmatpush1.bf16.msra.mxu0 %v5176
          %5256 = vmatprep.subr.bf16.mxu0 0
          %5257 = vmatpush1.bf16.msra.mxu0 %v5177
          %5258 = vmatprep.mubr.bf16.mxu0 %v4907
          %5259 = vmatmul.mubr.bf16.gmra.mrb[0].mxu0 %v4906
          %v5260 = vpop.f32.mrb[0].mxu0
          %v5261 = vadd.f32 0.0, %v5260
          %v5262 = vpop.f32.mrb[0].mxu0
          %v5263 = vpop.f32.mrb[0].mxu0
          %v5264 = vadd.f32 0.0, %v5263
          %v5265 = vpop.f32.mrb[0].mxu0
          %5266 = vmatprep.mubr.bf16.mxu0 %v4911
          %5267 = vmatmul.mubr.bf16.gmra.mrb[0].mxu0 %v4910
          %v5268 = vpop.f32.mrb[0].mxu0
          %v5269 = vadd.f32 0.0, %v5268
          %v5270 = vpop.f32.mrb[0].mxu0
          %v5271 = vpop.f32.mrb[0].mxu0
          %v5272 = vadd.f32 0.0, %v5271
          %v5273 = vpop.f32.mrb[0].mxu0
          %5274 = vmatprep.mubr.bf16.mxu0 %v4915
          %5275 = vmatmul.mubr.bf16.gmra.mrb[0].mxu0 %v4914
          %v5276 = vpop.f32.mrb[0].mxu0
          %v5277 = vadd.f32 0.0, %v5276
          %v5278 = vpop.f32.mrb[0].mxu0
          %v5279 = vpop.f32.mrb[0].mxu0
          %v5280 = vadd.f32 0.0, %v5279
          %v5281 = vpop.f32.mrb[0].mxu0
          %5282 = vmatprep.mubr.bf16.mxu0 %v4919
          %5283 = vmatmul.mubr.bf16.gmra.mrb[0].mxu0 %v4918
          %v5284 = vpop.f32.mrb[0].mxu0
          %v5285 = vadd.f32 0.0, %v5284
          %v5286 = vpop.f32.mrb[0].mxu0
          %v5287 = vpop.f32.mrb[0].mxu0
          %v5288 = vadd.f32 0.0, %v5287
          %v5289 = vpop.f32.mrb[0].mxu0
          %5290 = vmatprep.mubr.bf16.mxu0 %v4923
          %5291 = vmatmul.mubr.bf16.gmra.mrb[0].mxu0 %v4922
          %v5292 = vpop.f32.mrb[0].mxu0
          %v5293 = vadd.f32 0.0, %v5292
          %v5294 = vpop.f32.mrb[0].mxu0
          %v5295 = vpop.f32.mrb[0].mxu0
          %v5296 = vadd.f32 0.0, %v5295
          %v5297 = vpop.f32.mrb[0].mxu0
          %5298 = vmatprep.mubr.bf16.mxu0 %v4927
          %5299 = vmatmul.mubr.bf16.gmra.mrb[0].mxu0 %v4926
          %v5300 = vpop.f32.mrb[0].mxu0
          %v5301 = vadd.f32 0.0, %v5300
          %v5302 = vpop.f32.mrb[0].mxu0
          %v5303 = vpop.f32.mrb[0].mxu0
          %v5304 = vadd.f32 0.0, %v5303
          %v5305 = vpop.f32.mrb[0].mxu0
          %5306 = vmatprep.mubr.bf16.mxu0 %v4931
          %5307 = vmatmul.mubr.bf16.gmra.mrb[0].mxu0 %v4930
          %v5308 = vpop.f32.mrb[0].mxu0
          %v5309 = vadd.f32 0.0, %v5308
          %v5310 = vpop.f32.mrb[0].mxu0
          %v5311 = vpop.f32.mrb[0].mxu0
          %v5312 = vadd.f32 0.0, %v5311
          %v5313 = vpop.f32.mrb[0].mxu0
          %5314 = vmatprep.mubr.bf16.mxu0 %v4935
          %5315 = vmatmul.mubr.bf16.gmra.mrb[0].mxu0 %v4934
          %v5316 = vpop.f32.mrb[0].mxu0
          %v5317 = vadd.f32 0.0, %v5316
          %v5318 = vpop.f32.mrb[0].mxu0
          %v5319 = vpop.f32.mrb[0].mxu0
          %v5320 = vadd.f32 0.0, %v5319
          %v5321 = vpop.f32.mrb[0].mxu0
          %5322 = vmatprep.mubr.bf16.mxu0 %v4939
          %5323 = vmatmul.mubr.bf16.gmra.mrb[0].mxu0 %v4938
          %v5324 = vpop.f32.mrb[0].mxu0
          %v5325 = vadd.f32 0.0, %v5324
          %v5326 = vpop.f32.mrb[0].mxu0
          %v5327 = vpop.f32.mrb[0].mxu0
          %v5328 = vadd.f32 0.0, %v5327
          %v5329 = vpop.f32.mrb[0].mxu0
          %5330 = vmatprep.mubr.bf16.mxu0 %v4943
          %5331 = vmatmul.mubr.bf16.gmra.mrb[0].mxu0 %v4942
          %v5332 = vpop.f32.mrb[0].mxu0
          %v5333 = vadd.f32 0.0, %v5332
          %v5334 = vpop.f32.mrb[0].mxu0
          %v5335 = vpop.f32.mrb[0].mxu0
          %v5336 = vadd.f32 0.0, %v5335
          %v5337 = vpop.f32.mrb[0].mxu0
          %5338 = vmatprep.mubr.bf16.mxu0 %v4947
          %5339 = vmatmul.mubr.bf16.gmra.mrb[0].mxu0 %v4946
          %v5340 = vpop.f32.mrb[0].mxu0
          %v5341 = vadd.f32 0.0, %v5340
          %v5342 = vpop.f32.mrb[0].mxu0
          %v5343 = vpop.f32.mrb[0].mxu0
          %v5344 = vadd.f32 0.0, %v5343
          %v5345 = vpop.f32.mrb[0].mxu0
          %5346 = vmatprep.mubr.bf16.mxu0 %v4951
          %5347 = vmatmul.mubr.bf16.gmra.mrb[0].mxu0 %v4950
          %v5348 = vpop.f32.mrb[0].mxu0
          %v5349 = vadd.f32 0.0, %v5348
          %v5350 = vpop.f32.mrb[0].mxu0
          %v5351 = vpop.f32.mrb[0].mxu0
          %v5352 = vadd.f32 0.0, %v5351
          %v5353 = vpop.f32.mrb[0].mxu0
          %5354 = vmatprep.mubr.bf16.mxu0 %v4955
          %5355 = vmatmul.mubr.bf16.gmra.mrb[0].mxu0 %v4954
          %v5356 = vpop.f32.mrb[0].mxu0
          %v5357 = vadd.f32 0.0, %v5356
          %v5358 = vpop.f32.mrb[0].mxu0
          %v5359 = vpop.f32.mrb[0].mxu0
          %v5360 = vadd.f32 0.0, %v5359
          %v5361 = vpop.f32.mrb[0].mxu0
          %5362 = vmatprep.mubr.bf16.mxu0 %v4959
          %5363 = vmatmul.mubr.bf16.gmra.mrb[0].mxu0 %v4958
          %v5364 = vpop.f32.mrb[0].mxu0
          %v5365 = vadd.f32 0.0, %v5364
          %v5366 = vpop.f32.mrb[0].mxu0
          %v5367 = vpop.f32.mrb[0].mxu0
          %v5368 = vadd.f32 0.0, %v5367
          %v5369 = vpop.f32.mrb[0].mxu0
          %5370 = vmatprep.mubr.bf16.mxu0 %v4963
          %5371 = vmatmul.mubr.bf16.gmra.mrb[0].mxu0 %v4962
          %v5372 = vpop.f32.mrb[0].mxu0
          %v5373 = vadd.f32 0.0, %v5372
          %v5374 = vpop.f32.mrb[0].mxu0
          %v5375 = vpop.f32.mrb[0].mxu0
          %v5376 = vadd.f32 0.0, %v5375
          %v5377 = vpop.f32.mrb[0].mxu0
          %5378 = vmatprep.mubr.bf16.mxu0 %v4967
          %5379 = vmatmul.mubr.bf16.gmra.mrb[0].mxu0 %v4966
          %v5380 = vpop.f32.mrb[0].mxu0
          %v5381 = vadd.f32 0.0, %v5380
          %v5382 = vpop.f32.mrb[0].mxu0
          %v5383 = vpop.f32.mrb[0].mxu0
          %v5384 = vadd.f32 0.0, %v5383
          %v5385 = vpop.f32.mrb[0].mxu0
          %5386 = vdwg.mxu0
          %5387 = vmatprep.subr.bf16.mxu0 0
          %5388 = vmatpush1.bf16.msra.mxu0 %v5178
          %5389 = vmatprep.subr.bf16.mxu0 0
          %5390 = vmatpush1.bf16.msra.mxu0 %v5179
          %5391 = vmatprep.subr.bf16.mxu0 0
          %5392 = vmatpush1.bf16.msra.mxu0 %v5180
          %5393 = vmatprep.subr.bf16.mxu0 0
          %5394 = vmatpush1.bf16.msra.mxu0 %v5181
          %5395 = vmatprep.subr.bf16.mxu0 0
          %5396 = vmatpush1.bf16.msra.mxu0 %v5182
          %5397 = vmatprep.subr.bf16.mxu0 0
          %5398 = vmatpush1.bf16.msra.mxu0 %v5183
          %5399 = vmatprep.subr.bf16.mxu0 0
          %5400 = vmatpush1.bf16.msra.mxu0 %v5184
          %5401 = vmatprep.subr.bf16.mxu0 0
          %5402 = vmatpush1.bf16.msra.mxu0 %v5185
          %5403 = vmatprep.subr.bf16.mxu0 0
          %5404 = vmatpush1.bf16.msra.mxu0 %v5186
          %5405 = vmatprep.subr.bf16.mxu0 0
          %5406 = vmatpush1.bf16.msra.mxu0 %v5187
          %5407 = vmatprep.subr.bf16.mxu0 0
          %5408 = vmatpush1.bf16.msra.mxu0 %v5188
          %5409 = vmatprep.subr.bf16.mxu0 0
          %5410 = vmatpush1.bf16.msra.mxu0 %v5189
          %5411 = vmatprep.subr.bf16.mxu0 0
          %5412 = vmatpush1.bf16.msra.mxu0 %v5190
          %5413 = vmatprep.subr.bf16.mxu0 0
          %5414 = vmatpush1.bf16.msra.mxu0 %v5191
          %5415 = vmatprep.subr.bf16.mxu0 0
          %5416 = vmatpush1.bf16.msra.mxu0 %v5192
          %5417 = vmatprep.subr.bf16.mxu0 0
          %5418 = vmatpush1.bf16.msra.mxu0 %v5193
          %5419 = vmatprep.mubr.bf16.mxu0 %v4909
          %5420 = vmatmul.mubr.bf16.gmra.mrb[0].mxu0 %v4908
          %v5421 = vpop.f32.mrb[0].mxu0
          %v5422 = vadd.f32 %v5261, %v5421
          %v5423 = vpop.f32.mrb[0].mxu0
          %v5424 = vpop.f32.mrb[0].mxu0
          %v5425 = vadd.f32 %v5264, %v5424
          %v5426 = vpop.f32.mrb[0].mxu0
          %5427 = vmatprep.mubr.bf16.mxu0 %v4913
          %5428 = vmatmul.mubr.bf16.gmra.mrb[0].mxu0 %v4912
          %v5429 = vpop.f32.mrb[0].mxu0
          %v5430 = vadd.f32 %v5269, %v5429
          %v5431 = vpop.f32.mrb[0].mxu0
          %v5432 = vpop.f32.mrb[0].mxu0
          %v5433 = vadd.f32 %v5272, %v5432
          %v5434 = vpop.f32.mrb[0].mxu0
          %5435 = vmatprep.mubr.bf16.mxu0 %v4917
          %5436 = vmatmul.mubr.bf16.gmra.mrb[0].mxu0 %v4916
          %v5437 = vpop.f32.mrb[0].mxu0
          %v5438 = vadd.f32 %v5277, %v5437
          %v5439 = vpop.f32.mrb[0].mxu0
          %v5440 = vpop.f32.mrb[0].mxu0
          %v5441 = vadd.f32 %v5280, %v5440
          %v5442 = vpop.f32.mrb[0].mxu0
          %5443 = vmatprep.mubr.bf16.mxu0 %v4921
          %5444 = vmatmul.mubr.bf16.gmra.mrb[0].mxu0 %v4920
          %v5445 = vpop.f32.mrb[0].mxu0
          %v5446 = vadd.f32 %v5285, %v5445
          %v5447 = vpop.f32.mrb[0].mxu0
          %v5448 = vpop.f32.mrb[0].mxu0
          %v5449 = vadd.f32 %v5288, %v5448
          %v5450 = vpop.f32.mrb[0].mxu0
          %5451 = vmatprep.mubr.bf16.mxu0 %v4925
          %5452 = vmatmul.mubr.bf16.gmra.mrb[0].mxu0 %v4924
          %v5453 = vpop.f32.mrb[0].mxu0
          %v5454 = vadd.f32 %v5293, %v5453
          %v5455 = vpop.f32.mrb[0].mxu0
          %v5456 = vpop.f32.mrb[0].mxu0
          %v5457 = vadd.f32 %v5296, %v5456
          %v5458 = vpop.f32.mrb[0].mxu0
          %5459 = vmatprep.mubr.bf16.mxu0 %v4929
          %5460 = vmatmul.mubr.bf16.gmra.mrb[0].mxu0 %v4928
          %v5461 = vpop.f32.mrb[0].mxu0
          %v5462 = vadd.f32 %v5301, %v5461
          %v5463 = vpop.f32.mrb[0].mxu0
          %v5464 = vpop.f32.mrb[0].mxu0
          %v5465 = vadd.f32 %v5304, %v5464
          %v5466 = vpop.f32.mrb[0].mxu0
          %5467 = vmatprep.mubr.bf16.mxu0 %v4933
          %5468 = vmatmul.mubr.bf16.gmra.mrb[0].mxu0 %v4932
          %v5469 = vpop.f32.mrb[0].mxu0
          %v5470 = vadd.f32 %v5309, %v5469
          %v5471 = vpop.f32.mrb[0].mxu0
          %v5472 = vpop.f32.mrb[0].mxu0
          %v5473 = vadd.f32 %v5312, %v5472
          %v5474 = vpop.f32.mrb[0].mxu0
          %5475 = vmatprep.mubr.bf16.mxu0 %v4937
          %5476 = vmatmul.mubr.bf16.gmra.mrb[0].mxu0 %v4936
          %v5477 = vpop.f32.mrb[0].mxu0
          %v5478 = vadd.f32 %v5317, %v5477
          %v5479 = vpop.f32.mrb[0].mxu0
          %v5480 = vpop.f32.mrb[0].mxu0
          %v5481 = vadd.f32 %v5320, %v5480
          %v5482 = vpop.f32.mrb[0].mxu0
          %5483 = vmatprep.mubr.bf16.mxu0 %v4941
          %5484 = vmatmul.mubr.bf16.gmra.mrb[0].mxu0 %v4940
          %v5485 = vpop.f32.mrb[0].mxu0
          %v5486 = vadd.f32 %v5325, %v5485
          %v5487 = vpop.f32.mrb[0].mxu0
          %v5488 = vpop.f32.mrb[0].mxu0
          %v5489 = vadd.f32 %v5328, %v5488
          %v5490 = vpop.f32.mrb[0].mxu0
          %5491 = vmatprep.mubr.bf16.mxu0 %v4945
          %5492 = vmatmul.mubr.bf16.gmra.mrb[0].mxu0 %v4944
          %v5493 = vpop.f32.mrb[0].mxu0
          %v5494 = vadd.f32 %v5333, %v5493
          %v5495 = vpop.f32.mrb[0].mxu0
          %v5496 = vpop.f32.mrb[0].mxu0
          %v5497 = vadd.f32 %v5336, %v5496
          %v5498 = vpop.f32.mrb[0].mxu0
          %5499 = vmatprep.mubr.bf16.mxu0 %v4949
          %5500 = vmatmul.mubr.bf16.gmra.mrb[0].mxu0 %v4948
          %v5501 = vpop.f32.mrb[0].mxu0
          %v5502 = vadd.f32 %v5341, %v5501
          %v5503 = vpop.f32.mrb[0].mxu0
          %v5504 = vpop.f32.mrb[0].mxu0
          %v5505 = vadd.f32 %v5344, %v5504
          %v5506 = vpop.f32.mrb[0].mxu0
          %5507 = vmatprep.mubr.bf16.mxu0 %v4953
          %5508 = vmatmul.mubr.bf16.gmra.mrb[0].mxu0 %v4952
          %v5509 = vpop.f32.mrb[0].mxu0
          %v5510 = vadd.f32 %v5349, %v5509
          %v5511 = vpop.f32.mrb[0].mxu0
          %v5512 = vpop.f32.mrb[0].mxu0
          %v5513 = vadd.f32 %v5352, %v5512
          %v5514 = vpop.f32.mrb[0].mxu0
          %5515 = vmatprep.mubr.bf16.mxu0 %v4957
          %5516 = vmatmul.mubr.bf16.gmra.mrb[0].mxu0 %v4956
          %v5517 = vpop.f32.mrb[0].mxu0
          %v5518 = vadd.f32 %v5357, %v5517
          %v5519 = vpop.f32.mrb[0].mxu0
          %v5520 = vpop.f32.mrb[0].mxu0
          %v5521 = vadd.f32 %v5360, %v5520
          %v5522 = vpop.f32.mrb[0].mxu0
          %5523 = vmatprep.mubr.bf16.mxu0 %v4961
          %5524 = vmatmul.mubr.bf16.gmra.mrb[0].mxu0 %v4960
          %v5525 = vpop.f32.mrb[0].mxu0
          %v5526 = vadd.f32 %v5365, %v5525
          %v5527 = vpop.f32.mrb[0].mxu0
          %v5528 = vpop.f32.mrb[0].mxu0
          %v5529 = vadd.f32 %v5368, %v5528
          %v5530 = vpop.f32.mrb[0].mxu0
          %5531 = vmatprep.mubr.bf16.mxu0 %v4965
          %5532 = vmatmul.mubr.bf16.gmra.mrb[0].mxu0 %v4964
          %v5533 = vpop.f32.mrb[0].mxu0
          %v5534 = vadd.f32 %v5373, %v5533
          %v5535 = vpop.f32.mrb[0].mxu0
          %v5536 = vpop.f32.mrb[0].mxu0
          %v5537 = vadd.f32 %v5376, %v5536
          %v5538 = vpop.f32.mrb[0].mxu0
          %5539 = vmatprep.mubr.bf16.mxu0 %v4969
          %5540 = vmatmul.mubr.bf16.gmra.mrb[0].mxu0 %v4968
          %v5541 = vpop.f32.mrb[0].mxu0
          %v5542 = vadd.f32 %v5381, %v5541
          %v5543 = vpop.f32.mrb[0].mxu0
          %v5544 = vpop.f32.mrb[0].mxu0
          %v5545 = vadd.f32 %v5384, %v5544
          %v5546 = vpop.f32.mrb[0].mxu0
          %5547 = vdwg.mxu0
          %v5548 = vadd.f32 %v5422, %v5425
          %v5549 = vadd.f32 %v5548, %v5430
          %v5550 = vadd.f32 %v5549, %v5433
          %v5551 = vadd.f32 %v5550, %v5438
          %v5552 = vadd.f32 %v5551, %v5441
          %v5553 = vadd.f32 %v5552, %v5446
          %v5554 = vadd.f32 %v5553, %v5449
          %v5555 = vadd.f32 %v5554, %v5454
          %v5556 = vadd.f32 %v5555, %v5457
          %v5557 = vadd.f32 %v5556, %v5462
          %v5558 = vadd.f32 %v5557, %v5465
          %v5559 = vadd.f32 %v5558, %v5470
          %v5560 = vadd.f32 %v5559, %v5473
          %v5561 = vadd.f32 %v5560, %v5478
          %v5562 = vadd.f32 %v5561, %v5481
          %v5563 = vadd.f32 %v5562, %v5486
          %v5564 = vadd.f32 %v5563, %v5489
          %v5565 = vadd.f32 %v5564, %v5494
          %v5566 = vadd.f32 %v5565, %v5497
          %v5567 = vadd.f32 %v5566, %v5502
          %v5568 = vadd.f32 %v5567, %v5505
          %v5569 = vadd.f32 %v5568, %v5510
          %v5570 = vadd.f32 %v5569, %v5513
          %v5571 = vadd.f32 %v5570, %v5518
          %v5572 = vadd.f32 %v5571, %v5521
          %v5573 = vadd.f32 %v5572, %v5526
          %v5574 = vadd.f32 %v5573, %v5529
          %v5575 = vadd.f32 %v5574, %v5534
          %v5576 = vadd.f32 %v5575, %v5537
          %v5577 = vadd.f32 %v5576, %v5542
          %v5578 = vadd.f32 %v5577, %v5545
          %v5579 = vrot.slane %v5578, 4
          %v5580 = vadd.f32 %v5578, %v5579
          %v5581 = vrot.slane %v5580, 2
          %v5582 = vadd.f32 %v5580, %v5581
          %v5583 = vrot.slane %v5582, 1
          %v5584 = vadd.f32 %v5582, %v5583
          %v5585 = vrcp.pop 256.0
          %v5586 = vmul.f32 %v5584, %v5585
          %v5587 = vmul.f32 %v5422, %v5422
          %v5588 = vmul.f32 %v5425, %v5425
          %v5589 = vmul.f32 %v5430, %v5430
          %v5590 = vmul.f32 %v5433, %v5433
          %v5591 = vmul.f32 %v5438, %v5438
          %v5592 = vmul.f32 %v5441, %v5441
          %v5593 = vmul.f32 %v5446, %v5446
          %v5594 = vmul.f32 %v5449, %v5449
          %v5595 = vmul.f32 %v5454, %v5454
          %v5596 = vmul.f32 %v5457, %v5457
          %v5597 = vmul.f32 %v5462, %v5462
          %v5598 = vmul.f32 %v5465, %v5465
          %v5599 = vmul.f32 %v5470, %v5470
          %v5600 = vmul.f32 %v5473, %v5473
          %v5601 = vmul.f32 %v5478, %v5478
          %v5602 = vmul.f32 %v5481, %v5481
          %v5603 = vmul.f32 %v5486, %v5486
          %v5604 = vmul.f32 %v5489, %v5489
          %v5605 = vmul.f32 %v5494, %v5494
          %v5606 = vmul.f32 %v5497, %v5497
          %v5607 = vmul.f32 %v5502, %v5502
          %v5608 = vmul.f32 %v5505, %v5505
          %v5609 = vmul.f32 %v5510, %v5510
          %v5610 = vmul.f32 %v5513, %v5513
          %v5611 = vmul.f32 %v5518, %v5518
          %v5612 = vmul.f32 %v5521, %v5521
          %v5613 = vmul.f32 %v5526, %v5526
          %v5614 = vmul.f32 %v5529, %v5529
          %v5615 = vmul.f32 %v5534, %v5534
          %v5616 = vmul.f32 %v5537, %v5537
          %v5617 = vmul.f32 %v5542, %v5542
          %v5618 = vmul.f32 %v5545, %v5545
          %v5619 = vadd.f32 %v5587, %v5588
          %v5620 = vadd.f32 %v5619, %v5589
          %v5621 = vadd.f32 %v5620, %v5590
          %v5622 = vadd.f32 %v5621, %v5591
          %v5623 = vadd.f32 %v5622, %v5592
          %v5624 = vadd.f32 %v5623, %v5593
          %v5625 = vadd.f32 %v5624, %v5594
          %v5626 = vadd.f32 %v5625, %v5595
          %v5627 = vadd.f32 %v5626, %v5596
          %v5628 = vadd.f32 %v5627, %v5597
          %v5629 = vadd.f32 %v5628, %v5598
          %v5630 = vadd.f32 %v5629, %v5599
          %v5631 = vadd.f32 %v5630, %v5600
          %v5632 = vadd.f32 %v5631, %v5601
          %v5633 = vadd.f32 %v5632, %v5602
          %v5634 = vadd.f32 %v5633, %v5603
          %v5635 = vadd.f32 %v5634, %v5604
          %v5636 = vadd.f32 %v5635, %v5605
          %v5637 = vadd.f32 %v5636, %v5606
          %v5638 = vadd.f32 %v5637, %v5607
          %v5639 = vadd.f32 %v5638, %v5608
          %v5640 = vadd.f32 %v5639, %v5609
          %v5641 = vadd.f32 %v5640, %v5610
          %v5642 = vadd.f32 %v5641, %v5611
          %v5643 = vadd.f32 %v5642, %v5612
          %v5644 = vadd.f32 %v5643, %v5613
          %v5645 = vadd.f32 %v5644, %v5614
          %v5646 = vadd.f32 %v5645, %v5615
          %v5647 = vadd.f32 %v5646, %v5616
          %v5648 = vadd.f32 %v5647, %v5617
          %v5649 = vadd.f32 %v5648, %v5618
          %v5650 = vrot.slane %v5649, 4
          %v5651 = vadd.f32 %v5649, %v5650
          %v5652 = vrot.slane %v5651, 2
          %v5653 = vadd.f32 %v5651, %v5652
          %v5654 = vrot.slane %v5653, 1
          %v5655 = vadd.f32 %v5653, %v5654
          %v5656 = vmul.f32 %v5655, %v5585
          %v5657 = vmul.f32 %v5586, %v5586
          %v5658 = vsub.f32 %v5656, %v5657
          %v5659 = vld [vmem:[%s8] sm:$0x1]
          %v5660 = vadd.f32 %v5658, 1e-05
          %v5661 = vrsqrt.pop %v5660
          %v5662 = vmul.f32 %v5659, %v5661
          %v5663 = vld [vmem:[%s9] sm:$0x1]
          %v5664 = vmul.f32 %v5586, %v5662
          %v5665 = vsub.f32 %v5663, %v5664
          %v5667 = vlaneseq
          %v5668 = vshrl.u32 %v5667, 7
          %v5669 = vsub.s32 0, %v5668
          %v5670 = vrot.slane %v5662, %v5669
          %v5672 = vmul.f32 %v5422, %v5670
          %v5673 = vmul.f32 %v5425, %v5670
          %v5674 = vmul.f32 %v5430, %v5670
          %v5675 = vmul.f32 %v5433, %v5670
          %v5676 = vmul.f32 %v5438, %v5670
          %v5677 = vmul.f32 %v5441, %v5670
          %v5678 = vmul.f32 %v5446, %v5670
          %v5679 = vmul.f32 %v5449, %v5670
          %v5680 = vmul.f32 %v5454, %v5670
          %v5681 = vmul.f32 %v5457, %v5670
          %v5682 = vmul.f32 %v5462, %v5670
          %v5683 = vmul.f32 %v5465, %v5670
          %v5684 = vmul.f32 %v5470, %v5670
          %v5685 = vmul.f32 %v5473, %v5670
          %v5686 = vmul.f32 %v5478, %v5670
          %v5687 = vmul.f32 %v5481, %v5670
          %v5688 = vmul.f32 %v5486, %v5670
          %v5689 = vmul.f32 %v5489, %v5670
          %v5690 = vmul.f32 %v5494, %v5670
          %v5691 = vmul.f32 %v5497, %v5670
          %v5692 = vmul.f32 %v5502, %v5670
          %v5693 = vmul.f32 %v5505, %v5670
          %v5694 = vmul.f32 %v5510, %v5670
          %v5695 = vmul.f32 %v5513, %v5670
          %v5696 = vmul.f32 %v5518, %v5670
          %v5697 = vmul.f32 %v5521, %v5670
          %v5698 = vmul.f32 %v5526, %v5670
          %v5699 = vmul.f32 %v5529, %v5670
          %v5700 = vmul.f32 %v5534, %v5670
          %v5701 = vmul.f32 %v5537, %v5670
          %v5702 = vmul.f32 %v5542, %v5670
          %v5703 = vmul.f32 %v5545, %v5670
          %v5705 = vlaneseq
          %v5706 = vshrl.u32 %v5705, 7
          %v5707 = vsub.s32 0, %v5706
          %v5708 = vrot.slane %v5665, %v5707
          %v5710 = vadd.f32 %v5672, %v5708
          %v5711 = vadd.f32 %v5673, %v5708
          %v5712 = vadd.f32 %v5674, %v5708
          %v5713 = vadd.f32 %v5675, %v5708
          %v5714 = vadd.f32 %v5676, %v5708
          %v5715 = vadd.f32 %v5677, %v5708
          %v5716 = vadd.f32 %v5678, %v5708
          %v5717 = vadd.f32 %v5679, %v5708
          %v5718 = vadd.f32 %v5680, %v5708
          %v5719 = vadd.f32 %v5681, %v5708
          %v5720 = vadd.f32 %v5682, %v5708
          %v5721 = vadd.f32 %v5683, %v5708
          %v5722 = vadd.f32 %v5684, %v5708
          %v5723 = vadd.f32 %v5685, %v5708
          %v5724 = vadd.f32 %v5686, %v5708
          %v5725 = vadd.f32 %v5687, %v5708
          %v5726 = vadd.f32 %v5688, %v5708
          %v5727 = vadd.f32 %v5689, %v5708
          %v5728 = vadd.f32 %v5690, %v5708
          %v5729 = vadd.f32 %v5691, %v5708
          %v5730 = vadd.f32 %v5692, %v5708
          %v5731 = vadd.f32 %v5693, %v5708
          %v5732 = vadd.f32 %v5694, %v5708
          %v5733 = vadd.f32 %v5695, %v5708
          %v5734 = vadd.f32 %v5696, %v5708
          %v5735 = vadd.f32 %v5697, %v5708
          %v5736 = vadd.f32 %v5698, %v5708
          %v5737 = vadd.f32 %v5699, %v5708
          %v5738 = vadd.f32 %v5700, %v5708
          %v5739 = vadd.f32 %v5701, %v5708
          %v5740 = vadd.f32 %v5702, %v5708
          %v5741 = vadd.f32 %v5703, %v5708
          %5742 = vst [vmem:[#allocation13] sm:$0xff] %v5710
          %5743 = vst [vmem:[#allocation13 + $0x8] sm:$0xff] %v5711
          %5744 = vst [vmem:[#allocation13 + $0x10] sm:$0xff] %v5712
          %5745 = vst [vmem:[#allocation13 + $0x18] sm:$0xff] %v5713
          %5746 = vst [vmem:[#allocation13 + $0x20] sm:$0xff] %v5714
          %5747 = vst [vmem:[#allocation13 + $0x28] sm:$0xff] %v5715
          %5748 = vst [vmem:[#allocation13 + $0x30] sm:$0xff] %v5716
          %5749 = vst [vmem:[#allocation13 + $0x38] sm:$0xff] %v5717
          %5750 = vst [vmem:[#allocation13 + $0x40] sm:$0xff] %v5718
          %5751 = vst [vmem:[#allocation13 + $0x48] sm:$0xff] %v5719
          %5752 = vst [vmem:[#allocation13 + $0x50] sm:$0xff] %v5720
          %5753 = vst [vmem:[#allocation13 + $0x58] sm:$0xff] %v5721
          %5754 = vst [vmem:[#allocation13 + $0x60] sm:$0xff] %v5722
          %5755 = vst [vmem:[#allocation13 + $0x68] sm:$0xff] %v5723
          %5756 = vst [vmem:[#allocation13 + $0x70] sm:$0xff] %v5724
          %5757 = vst [vmem:[#allocation13 + $0x78] sm:$0xff] %v5725
          %5758 = vst [vmem:[#allocation13 + $0x80] sm:$0xff] %v5726
          %5759 = vst [vmem:[#allocation13 + $0x88] sm:$0xff] %v5727
          %5760 = vst [vmem:[#allocation13 + $0x90] sm:$0xff] %v5728
          %5761 = vst [vmem:[#allocation13 + $0x98] sm:$0xff] %v5729
          %5762 = vst [vmem:[#allocation13 + $0xa0] sm:$0xff] %v5730
          %5763 = vst [vmem:[#allocation13 + $0xa8] sm:$0xff] %v5731
          %5764 = vst [vmem:[#allocation13 + $0xb0] sm:$0xff] %v5732
          %5765 = vst [vmem:[#allocation13 + $0xb8] sm:$0xff] %v5733
          %5766 = vst [vmem:[#allocation13 + $0xc0] sm:$0xff] %v5734
          %5767 = vst [vmem:[#allocation13 + $0xc8] sm:$0xff] %v5735
          %5768 = vst [vmem:[#allocation13 + $0xd0] sm:$0xff] %v5736
          %5769 = vst [vmem:[#allocation13 + $0xd8] sm:$0xff] %v5737
          %5770 = vst [vmem:[#allocation13 + $0xe0] sm:$0xff] %v5738
          %5771 = vst [vmem:[#allocation13 + $0xe8] sm:$0xff] %v5739
          %5772 = vst [vmem:[#allocation13 + $0xf0] sm:$0xff] %v5740
          %5773 = vst [vmem:[#allocation13 + $0xf8] sm:$0xff] %v5741
        $region84: #{tpu_custom_call.1} parent=59 // pred_fallthru
          _
        // Predicated region
        $region85: #{tpu_custom_call.1} parent=59 // pred_check
          %p5774 = pneg %p255
        $region86: #{tpu_custom_call.1} parent=59 // pred_check_branch
          %5776 = sbr.rel (%p5774) target = $region88
        $region87: #{tpu_custom_call.1} parent=59 // pred_region
          %s5778 = ssub.s32 4096, 4096
          %5779 = vsyncadd [#allocation7], %s5778
          %s5780 = sshll.u32 [#allocation13], 4
          %s5781 = int_to_ptr.vmem [resolvable:$true] %s5780
          %5786 = dma.vmem_to_hbm [thread:$0]  %s5781, 4096, %s10, [#allocation7], 128, 128, 8
        $region88: #{tpu_custom_call.1} parent=59 // pred_fallthru
          _
        // Predicated region
        $region89: #{tpu_custom_call.1} parent=59 // pred_check
          %p5787 = pneg %p255
        $region90: #{tpu_custom_call.1} parent=59 // pred_check_branch
          %5789 = sbr.rel (%p5787) target = $region92
        $region91: #{tpu_custom_call.1} parent=59 // pred_region
          %5790 = dma.done [#allocation7], 4096
        $region92: #{tpu_custom_call.1} parent=59 // pred_fallthru
          _
      $region60: #{tpu_custom_call.1} parent=5 // pred_fallthru
        _
      %p5791 = scmp.le.s32.totalorder 2, %s22
      // Predicated region
      $region93: #{tpu_custom_call.1} parent=5 // pred_check
        %p5792 = pneg %p5791
      $region94: #{tpu_custom_call.1} parent=5 // pred_check_branch
        %5794 = sbr.rel (%p5792) target = $region96
      $region95: #{tpu_custom_call.1} parent=5 // pred_region
        %s5795 = ssub.s32 %s22, 2
      $region96: #{tpu_custom_call.1} parent=5 // pred_fallthru
        _
    $region6: #{tpu_custom_call.1} parent=1 // loop_footer
      %s26 = sadd.s32 1, %s22
    $region7: #{tpu_custom_call.1} parent=1 // loop_footer_branch
      %21 = sbr.rel target = $region3
    $region8: #{tpu_custom_call.1} parent=1 // loop_exit
      _
    %5796 = vsyncpa [#allocation6], 1
    %s5797 = scalar_lea.sflag [#allocation6], 1
    %5798 = vsyncpa %s5797, 1
    %5799 = vsyncpa [#allocation9], 1
    %5800 = vsyncpa [#allocation12], 1
    %5801 = vsyncpa [#allocation7], 1
    %s5802 = scalar_lea.sflag [#allocation7], 1
    %5803 = vsyncpa %s5802, 1

</llo_original>
